<compile_context>
chip_gen: v6e
topology: v6e:2x2x1
jax: 0.10.0
libtpu: 0.0.40
codegen_flags: <defaults>
</compile_context>

<pallas_src>
import functools

import jax
import jax.numpy as jnp
from jax.experimental import pallas as pl
from jax.experimental.pallas import tpu as pltpu

BN_EPS = 1e-5
EPI_TM = 512          # epilogue row-tile (measured sweet spot ~512 rows)
LANE = 128            # channel dims padded to multiples of 128 (lane-dense stores)


def _round_up(a, b):
    return (a + b - 1) // b * b


# ---------------------------------------------------------------------------
# Kernel 1: fused IRBottleneck trunk, one image per grid step.
#   conv1(1x1)+bn0/bn1(folded)+PReLU -> conv2(3x3, 9 shifted matmuls)+bn2+PReLU
#   -> conv3(1x1)+bn3.  Intermediates never leave VMEM; no im2col buffer.
# ---------------------------------------------------------------------------
def _ir_block_kernel(x_ref, w1_ref, b1_ref, w2_ref, b2_ref, w3_ref, b3_ref,
                     a_ref, h3_ref, *, H, W, P_pad):
    HW = H * W
    PAD = _round_up(W + 1, 8)          # aligned zero-pad rows on each side
    a = a_ref[...]                     # (1, 1) shared PReLU slope, broadcasts

    # ---- stage 1: 1x1 conv (bn0 & bn1 pre-folded into w1/b1) + PReLU ----
    h1 = jnp.dot(x_ref[...], w1_ref[...], preferred_element_type=jnp.float32)
    h1 = h1 + b1_ref[...]
    h1 = (jnp.maximum(h1, 0.0) + a * jnp.minimum(h1, 0.0)).astype(jnp.bfloat16)

    # ---- stage 2: 3x3/pad=1 conv as 9 shifted bf16 MXU matmuls, f32 acc ----
    zpad = jnp.zeros((PAD, P_pad), jnp.bfloat16)
    hp = jnp.concatenate([zpad, h1, zpad], axis=0)   # aligned (mult-of-8) concat
    col = jax.lax.broadcasted_iota(jnp.int32, (HW, P_pad), 0) % W
    acc = jnp.zeros((HW, P_pad), jnp.float32)
    for ky in range(3):
        for kx in range(3):
            d = (ky - 1) * W + (kx - 1)
            win = hp[PAD + d:PAD + d + HW, :]
            if kx == 0:        # left image edge has no left neighbour
                win = jnp.where(col == 0, jnp.zeros_like(win), win)
            elif kx == 2:      # right image edge
                win = jnp.where(col == W - 1, jnp.zeros_like(win), win)
            t = ky * 3 + kx
            acc = acc + jnp.dot(win, w2_ref[t * P_pad:(t + 1) * P_pad, :],
                                preferred_element_type=jnp.float32)
    h2 = acc + b2_ref[...]
    h2 = (jnp.maximum(h2, 0.0) + a * jnp.minimum(h2, 0.0)).astype(jnp.bfloat16)

    # ---- stage 3: 1x1 conv (bn3 pre-folded) ----
    h3 = jnp.dot(h2, w3_ref[...], preferred_element_type=jnp.float32)
    h3_ref[...] = (h3 + b3_ref[...]).astype(h3_ref.dtype)


# ---------------------------------------------------------------------------
# Kernel 2: epilogue.  out = PReLU(h3 * se_gate + residual)
#   residual = 1x1 downsample conv (bn folded) of x, or identity.
# ---------------------------------------------------------------------------
def _epilogue_downsample_kernel(h3_ref, g_ref, x_ref, wd_ref, bd_ref, a_ref,
                                o_ref):
    res = jnp.dot(x_ref[...], wd_ref[...], preferred_element_type=jnp.float32)
    res = res + bd_ref[...]
    v = h3_ref[...].astype(jnp.float32) * g_ref[...] + res
    a = a_ref[...]
    o_ref[...] = (jnp.maximum(v, 0.0) + a * jnp.minimum(v, 0.0)).astype(o_ref.dtype)


def _epilogue_identity_kernel(h3_ref, g_ref, x_ref, a_ref, o_ref):
    v = h3_ref[...].astype(jnp.float32) * g_ref[...] + x_ref[...].astype(jnp.float32)
    a = a_ref[...]
    o_ref[...] = (jnp.maximum(v, 0.0) + a * jnp.minimum(v, 0.0)).astype(o_ref.dtype)


# ---------------------------------------------------------------------------
# Host-side parameter folding (eval-mode BN folded into weights, channel pad).
# ---------------------------------------------------------------------------
def fold_bn(gamma, beta, mean, var, eps=BN_EPS):
    s = gamma / jnp.sqrt(var + eps)
    return s, beta - mean * s


def fold_and_pad_params(p, cin, planes, expansion=4):
    c4 = planes * expansion
    cin_p, pp, c4_p = _round_up(cin, LANE), _round_up(planes, LANE), _round_up(c4, LANE)
    s0, t0 = fold_bn(*p["bn0"])
    s1, t1 = fold_bn(*p["bn1"])
    s2, t2 = fold_bn(*p["bn2"])
    s3, t3 = fold_bn(*p["bn3"])

    w1 = p["w1"][:, :, 0, 0]                                    # (P, Cin)
    w1e = (s1[:, None] * w1 * s0[None, :]).T                    # (Cin, P)
    b1e = s1 * (w1 @ t0) + t1
    w2e = jnp.transpose(p["w2"], (2, 3, 1, 0)) * s2[None, None, None, :]
    w2e = w2e.reshape(9, planes, planes)                        # tap-major (ky*3+kx)
    w3e = (s3[:, None] * p["w3"][:, :, 0, 0]).T                 # (P, C4)

    def padw(w, r, c):
        return (jnp.zeros((r, c), jnp.float32)
                .at[:w.shape[0], :w.shape[1]].set(w).astype(jnp.bfloat16))

    def padb(b, c):
        return jnp.zeros((1, c), jnp.float32).at[0, :b.shape[0]].set(b)

    W2 = jnp.zeros((9, pp, pp), jnp.float32).at[:, :planes, :planes].set(w2e)

    fp = {
        "cin": cin, "planes": planes, "c4": c4,
        "cin_p": cin_p, "pp": pp, "c4_p": c4_p,
        "W1": padw(w1e, cin_p, pp), "B1": padb(b1e, pp),
        "W2": W2.reshape(9 * pp, pp).astype(jnp.bfloat16), "B2": padb(t2, pp),
        "W3": padw(w3e, pp, c4_p), "B3": padb(t3, c4_p),
        "a_arr": jnp.full((1, 1), p["a_blk"], jnp.float32),
        "a_se": p["a_se"],
        "se_w1": p["se_w1"], "se_b1": p["se_b1"],
        "se_w2": p["se_w2"], "se_b2": p["se_b2"],
        "has_downsample": "wd" in p,
    }
    if "wd" in p:
        sd, td = fold_bn(*p["bnd"])
        wde = (sd[:, None] * p["wd"][:, :, 0, 0]).T             # (Cin, C4)
        fp["Wd"] = padw(wde, cin_p, c4_p)
        fp["Bd"] = padb(td, c4_p)
    return fp


# ---------------------------------------------------------------------------
# IRBottleneck forward (eval-mode BN) using the fused Pallas kernels.
# ---------------------------------------------------------------------------
def irbottleneck_forward(x_nchw, fp, stride):
    n, cin, h, w = x_nchw.shape
    cin_p, pp, c4_p, c4 = fp["cin_p"], fp["pp"], fp["c4_p"], fp["c4"]
    hw = h * w
    assert hw % 8 == 0

    # NCHW -> channels-last bf16, channel-padded to a lane-dense multiple of 128.
    x_nhwc = jnp.transpose(x_nchw, (0, 2, 3, 1)).astype(jnp.bfloat16)
    x_pad = jnp.zeros((n, h, w, cin_p), jnp.bfloat16).at[..., :cin].set(x_nhwc)
    x_flat = x_pad.reshape(n, hw, cin_p)

    # ---- kernel 1: fused conv1/conv2/conv3 trunk ----
    kern1 = functools.partial(_ir_block_kernel, H=h, W=w, P_pad=pp)
    flops1 = 2 * n * hw * (cin_p * pp + 9 * pp * pp + pp * c4_p)
    bytes1 = 2 * (n * hw * (cin_p + c4_p) + cin_p * pp + 9 * pp * pp + pp * c4_p)
    h3_full = pl.pallas_call(
        kern1,
        out_shape=jax.ShapeDtypeStruct((n, hw, c4_p), jnp.bfloat16),
        grid=(n,),
        in_specs=[
            pl.BlockSpec((None, hw, cin_p), lambda i: (i, 0, 0)),
            pl.BlockSpec((cin_p, pp), lambda i: (0, 0)),
            pl.BlockSpec((1, pp), lambda i: (0, 0)),
            pl.BlockSpec((9 * pp, pp), lambda i: (0, 0)),
            pl.BlockSpec((1, pp), lambda i: (0, 0)),
            pl.BlockSpec((pp, c4_p), lambda i: (0, 0)),
            pl.BlockSpec((1, c4_p), lambda i: (0, 0)),
            pl.BlockSpec((1, 1), lambda i: (0, 0)),
        ],
        out_specs=pl.BlockSpec((None, hw, c4_p), lambda i: (i, 0, 0)),
        compiler_params=pltpu.CompilerParams(
            dimension_semantics=("parallel",),
            vmem_limit_bytes=64 * 1024 * 1024),
        cost_estimate=pl.CostEstimate(
            flops=flops1, transcendentals=0, bytes_accessed=bytes1),
    )(x_flat, fp["W1"], fp["B1"], fp["W2"], fp["B2"], fp["W3"], fp["B3"],
      fp["a_arr"])

    # stride>1: the 3x3 conv was computed at stride 1; subsample the output
    # (out_s(i,j) == out_1(s*i, s*j) for pad=1, k=3).
    ho = (h - 1) // stride + 1
    wo = (w - 1) // stride + 1
    hwo = ho * wo
    h3s = h3_full.reshape(n, h, w, c4_p)[:, ::stride, ::stride, :]

    # ---- SE gate (tiny per-image global-pool + 2-layer MLP; host-side glue) ----
    pooled = jnp.mean(h3s[..., :c4].astype(jnp.float32), axis=(1, 2))
    z = pooled @ fp["se_w1"].T + fp["se_b1"]
    z = jnp.maximum(z, 0.0) + fp["a_se"] * jnp.minimum(z, 0.0)
    z = z @ fp["se_w2"].T + fp["se_b2"]
    gate = jax.nn.sigmoid(z)
    gate_p = jnp.zeros((n, 1, c4_p), jnp.float32).at[:, 0, :c4].set(gate)

    # ---- kernel 2: SE scale + residual (downsample or identity) + PReLU ----
    x_s = x_pad[:, ::stride, ::stride, :].reshape(n, hwo, cin_p)
    tm = EPI_TM if hwo >= EPI_TM else _round_up(hwo, 8)
    hwo_p = _round_up(hwo, tm)
    nblk = hwo_p // tm

    def _pad_rows(a):
        if a.shape[1] == hwo_p:
            return a
        return jnp.zeros((n, hwo_p, a.shape[2]), a.dtype).at[:, :hwo, :].set(a)

    h3s_flat = _pad_rows(h3s.reshape(n, hwo, c4_p))
    xs_flat = _pad_rows(x_s)

    if fp["has_downsample"]:
        kern2 = _epilogue_downsample_kernel
        args = (h3s_flat, gate_p, xs_flat, fp["Wd"], fp["Bd"], fp["a_arr"])
        in_specs = [
            pl.BlockSpec((None, tm, c4_p), lambda i, j: (i, j, 0)),
            pl.BlockSpec((None, 1, c4_p), lambda i, j: (i, 0, 0)),
            pl.BlockSpec((None, tm, cin_p), lambda i, j: (i, j, 0)),
            pl.BlockSpec((cin_p, c4_p), lambda i, j: (0, 0)),
            pl.BlockSpec((1, c4_p), lambda i, j: (0, 0)),
            pl.BlockSpec((1, 1), lambda i, j: (0, 0)),
        ]
        flops2 = 2 * n * hwo_p * cin_p * c4_p
    else:
        assert cin_p == c4_p and fp["cin"] == c4
        kern2 = _epilogue_identity_kernel
        args = (h3s_flat, gate_p, xs_flat, fp["a_arr"])
        in_specs = [
            pl.BlockSpec((None, tm, c4_p), lambda i, j: (i, j, 0)),
            pl.BlockSpec((None, 1, c4_p), lambda i, j: (i, 0, 0)),
            pl.BlockSpec((None, tm, cin_p), lambda i, j: (i, j, 0)),
            pl.BlockSpec((1, 1), lambda i, j: (0, 0)),
        ]
        flops2 = 2 * n * hwo_p * c4_p
    bytes2 = 2 * n * hwo_p * (c4_p + cin_p) + 4 * n * hwo_p * c4_p + 2 * cin_p * c4_p

    out_flat = pl.pallas_call(
        kern2,
        out_shape=jax.ShapeDtypeStruct((n, hwo_p, c4_p), jnp.float32),
        grid=(n, nblk),
        in_specs=in_specs,
        out_specs=pl.BlockSpec((None, tm, c4_p), lambda i, j: (i, j, 0)),
        compiler_params=pltpu.CompilerParams(
            dimension_semantics=("parallel", "parallel"),
            vmem_limit_bytes=64 * 1024 * 1024),
        cost_estimate=pl.CostEstimate(
            flops=flops2, transcendentals=0, bytes_accessed=bytes2),
    )(*args)

    out = out_flat[:, :hwo, :c4].reshape(n, ho, wo, c4)
    return jnp.transpose(out, (0, 3, 1, 2))            # back to NCHW


# ---------------------------------------------------------------------------
# Pure-JAX f32 reference (NCHW, lax.conv) for correctness checking.
# ---------------------------------------------------------------------------
def irbottleneck_reference(x, p, stride):
    def bn(y, prm):
        g, b, m, v = prm
        s = g / jnp.sqrt(v + BN_EPS)
        return y * s[None, :, None, None] + (b - m * s)[None, :, None, None]

    def prelu(y, a):
        return jnp.maximum(y, 0.0) + a * jnp.minimum(y, 0.0)

    def conv(y, wgt, stride=1, pad=0):
        return jax.lax.conv_general_dilated(
            y, wgt, (stride, stride), [(pad, pad), (pad, pad)],
            dimension_numbers=("NCHW", "OIHW", "NCHW"),
            precision=jax.lax.Precision.HIGHEST)

    out = bn(x, p["bn0"])
    out = prelu(bn(conv(out, p["w1"]), p["bn1"]), p["a_blk"])
    out = prelu(bn(conv(out, p["w2"], stride, 1), p["bn2"]), p["a_blk"])
    out = bn(conv(out, p["w3"]), p["bn3"])
    pooled = jnp.mean(out, axis=(2, 3))
    z = pooled @ p["se_w1"].T + p["se_b1"]
    z = prelu(z, p["a_se"])
    z = z @ p["se_w2"].T + p["se_b2"]
    out = out * jax.nn.sigmoid(z)[:, :, None, None]
    residual = bn(conv(x, p["wd"], stride), p["bnd"]) if "wd" in p else x
    return prelu(out + residual, p["a_blk"])


# ---------------------------------------------------------------------------
# Deterministic synthetic parameters (eval-mode BN running stats).
# ---------------------------------------------------------------------------
def _xavier(key, shape, fan_in, fan_out):
    return ((2.0 / (fan_in + fan_out)) ** 0.5) * jax.random.normal(key, shape, jnp.float32)


def _bn_params(key, c):
    k1, k2, k3, k4 = jax.random.split(key, 4)
    gamma = 1.0 + 0.1 * jax.random.normal(k1, (c,), jnp.float32)
    beta = 0.1 * jax.random.normal(k2, (c,), jnp.float32)
    mean = 0.1 * jax.random.normal(k3, (c,), jnp.float32)
    var = 0.5 + jax.random.uniform(k4, (c,), jnp.float32)
    return gamma, beta, mean, var


def make_block_params(key, cin, planes, stride, expansion=4):
    c4 = planes * expansion
    ks = jax.random.split(key, 12)
    p = {
        "w1": _xavier(ks[0], (planes, cin, 1, 1), cin, planes),
        "w2": _xavier(ks[1], (planes, planes, 3, 3), 9 * planes, 9 * planes),
        "w3": _xavier(ks[2], (c4, planes, 1, 1), planes, c4),
        "bn0": _bn_params(ks[3], cin),
        "bn1": _bn_params(ks[4], planes),
        "bn2": _bn_params(ks[5], planes),
        "bn3": _bn_params(ks[6], c4),
        "a_blk": 0.25,          # shared nn.PReLU() slope of the block
        "a_se": 0.25,           # nn.PReLU() inside the SE MLP
        # SE on planes*expansion channels (the original SEBlock(planes) would not
        # run against the planes*4-channel bn3 output in PyTorch).
        "se_w1": _xavier(ks[7], (c4 // 16, c4), c4, c4 // 16),
        "se_b1": 0.05 * jax.random.normal(ks[8], (c4 // 16,), jnp.float32),
        "se_w2": _xavier(ks[9], (c4, c4 // 16), c4 // 16, c4),
        "se_b2": 0.05 * jax.random.normal(ks[10], (c4,), jnp.float32),
    }
    if stride != 1 or cin != c4:    # same rule as ResNetFace._make_layer
        kd1, kd2 = jax.random.split(ks[11])
        p["wd"] = _xavier(kd1, (c4, cin, 1, 1), cin, c4)
        p["bnd"] = _bn_params(kd2, c4)
    return p


if __name__ == "__main__":
    key = jax.random.PRNGKey(0)
    N = 2
    # (cin, planes, stride, H, W) -- IRBottleneck (expansion=4) variants:
    configs = [
        (64, 32, 1, 16, 16),     # channel-expanding downsample, stride 1
        (128, 32, 2, 16, 16),    # stride-2 downsample
        (128, 32, 1, 16, 16),    # identity residual (cin == planes*4)
    ]
    keys = jax.random.split(key, 3 * len(configs))

    for idx, (cin, planes, stride, H, W) in enumerate(configs):
        kp, kx = keys[3 * idx], keys[3 * idx + 1]
        p = make_block_params(kp, cin, planes, stride)
        fp = fold_and_pad_params(p, cin, planes)
        x = jax.random.normal(kx, (N, cin, H, W), jnp.float32)

        out = jax.block_until_ready(irbottleneck_forward(x, fp, stride))
        ref = irbottleneck_reference(x, p, stride)

        err = float(jnp.max(jnp.abs(out - ref)))
        scale = float(jnp.max(jnp.abs(ref)))
        if not err <= 5e-2 * max(1.0, scale):
            raise AssertionError(
                f"config {idx} (cin={cin}, stride={stride}): "
                f"max abs err {err:.4f} vs ref scale {scale:.4f}")

    print("KERNEL_OK")
</pallas_src>

<mosaic_0001>
module attributes {stable_mosaic.version = 11 : i64} {
  func.func @_ir_block_kernel(%arg0: i32, %arg1: memref<1x256x128xbf16, #tpu.memory_space<vmem>>, %arg2: memref<128x128xbf16, #tpu.memory_space<vmem>>, %arg3: memref<1x128xf32, #tpu.memory_space<vmem>>, %arg4: memref<1152x128xbf16, #tpu.memory_space<vmem>>, %arg5: memref<1x128xf32, #tpu.memory_space<vmem>>, %arg6: memref<128x128xbf16, #tpu.memory_space<vmem>>, %arg7: memref<1x128xf32, #tpu.memory_space<vmem>>, %arg8: memref<1x1xf32, #tpu.memory_space<vmem>>, %arg9: memref<1x256x128xbf16, #tpu.memory_space<vmem>>) attributes {dimension_semantics = [#tpu.dimension_semantics<parallel>], iteration_bounds = array<i64: 2>, scalar_prefetch = 0 : i64, scratch_operands = 0 : i64, tpu.core_type = #tpu.core_type<tc>, window_params = [{transform_indices = @transform_0, window_bounds = array<i64: 1, 256, 128>}, {pipeline_mode = #tpu.pipeline_mode<synchronous>, transform_indices = @transform_1, window_bounds = array<i64: 128, 128>}, {pipeline_mode = #tpu.pipeline_mode<synchronous>, transform_indices = @transform_2, window_bounds = array<i64: 1, 128>}, {pipeline_mode = #tpu.pipeline_mode<synchronous>, transform_indices = @transform_3, window_bounds = array<i64: 1152, 128>}, {pipeline_mode = #tpu.pipeline_mode<synchronous>, transform_indices = @transform_4, window_bounds = array<i64: 1, 128>}, {pipeline_mode = #tpu.pipeline_mode<synchronous>, transform_indices = @transform_5, window_bounds = array<i64: 128, 128>}, {pipeline_mode = #tpu.pipeline_mode<synchronous>, transform_indices = @transform_6, window_bounds = array<i64: 1, 128>}, {pipeline_mode = #tpu.pipeline_mode<synchronous>, transform_indices = @transform_7, window_bounds = array<i64: 1, 1>}, {transform_indices = @transform_8, window_bounds = array<i64: 1, 256, 128>}]} {
    %c0 = arith.constant 0 : index
    %c0_0 = arith.constant 0 : index
    %0 = vector.load %arg8[%c0, %c0_0] : memref<1x1xf32, #tpu.memory_space<vmem>>, vector<1x1xf32>
    %c0_1 = arith.constant 0 : index
    %c0_2 = arith.constant 0 : index
    %c0_3 = arith.constant 0 : index
    %1 = vector.load %arg1[%c0_1, %c0_2, %c0_3] : memref<1x256x128xbf16, #tpu.memory_space<vmem>>, vector<1x256x128xbf16>
    %2 = vector.shape_cast %1 : vector<1x256x128xbf16> to vector<256x128xbf16>
    %c0_4 = arith.constant 0 : index
    %c0_5 = arith.constant 0 : index
    %3 = vector.load %arg2[%c0_4, %c0_5] : memref<128x128xbf16, #tpu.memory_space<vmem>>, vector<128x128xbf16>
    %cst = arith.constant dense<0.000000e+00> : vector<256x128xf32>
    %4 = tpu.matmul %2, %3, %cst {dimension_numbers = #tpu.dot_dimension_numbers<[1], [0], [0], [1], [0, 0, 1, 1], [], []>} : vector<256x128xbf16>, vector<128x128xbf16>, vector<256x128xf32> -> vector<256x128xf32>
    %c0_6 = arith.constant 0 : index
    %c0_7 = arith.constant 0 : index
    %5 = vector.load %arg3[%c0_6, %c0_7] : memref<1x128xf32, #tpu.memory_space<vmem>>, vector<1x128xf32>
    %6 = vector.broadcast %5 : vector<1x128xf32> to vector<256x128xf32>
    %7 = arith.addf %4, %6 : vector<256x128xf32>
    %cst_8 = arith.constant 0.000000e+00 : f32
    %8 = vector.broadcast %cst_8 : f32 to vector<256x128xf32>
    %9 = arith.maximumf %7, %8 : vector<256x128xf32>
    %cst_9 = arith.constant 0.000000e+00 : f32
    %10 = vector.broadcast %cst_9 : f32 to vector<256x128xf32>
    %11 = arith.minimumf %7, %10 : vector<256x128xf32>
    %12 = vector.broadcast %0 : vector<1x1xf32> to vector<256x128xf32>
    %13 = arith.mulf %12, %11 : vector<256x128xf32>
    %14 = arith.addf %9, %13 : vector<256x128xf32>
    %15 = arith.truncf %14 : vector<256x128xf32> to vector<256x128xbf16>
    %cst_10 = arith.constant 0.000000e+00 : bf16
    %16 = vector.broadcast %cst_10 : bf16 to vector<24x128xbf16>
    %17 = tpu.concatenate %16, %15, %16 in 0 : vector<24x128xbf16>, vector<256x128xbf16>, vector<24x128xbf16> -> vector<304x128xbf16>
    %18 = tpu.iota {dimensions = array<i32: 0>} : vector<256x128xi32>
    %c16_i32 = arith.constant 16 : i32
    %c0_i32 = arith.constant 0 : i32
    %19 = arith.cmpi eq, %c16_i32, %c0_i32 : i32
    %c1_i32 = arith.constant 1 : i32
    %20 = arith.select %19, %c1_i32, %c16_i32 : i32
    %21 = vector.broadcast %20 : i32 to vector<256x128xi32>
    %22 = arith.remsi %18, %21 : vector<256x128xi32>
    %c0_i32_11 = arith.constant 0 : i32
    %23 = vector.broadcast %c0_i32_11 : i32 to vector<256x128xi32>
    %24 = arith.cmpi ne, %22, %23 : vector<256x128xi32>
    %c0_i32_12 = arith.constant 0 : i32
    %25 = vector.broadcast %c0_i32_12 : i32 to vector<256x128xi32>
    %26 = arith.cmpi slt, %22, %25 : vector<256x128xi32>
    %c0_i32_13 = arith.constant 0 : i32
    %27 = arith.cmpi slt, %20, %c0_i32_13 : i32
    %28 = vector.broadcast %27 : i1 to vector<256x128xi1>
    %29 = vector.broadcast %28 : vector<256x128xi1> to vector<256x128xi1>
    %30 = arith.xori %26, %29 : vector<256x128xi1>
    %31 = arith.andi %30, %24 : vector<256x128xi1>
    %32 = vector.broadcast %20 : i32 to vector<256x128xi32>
    %33 = arith.addi %22, %32 : vector<256x128xi32>
    %34 = arith.select %31, %33, %22 : vector<256x128xi1>, vector<256x128xi32>
    %cst_14 = arith.constant 0.000000e+00 : f32
    %35 = vector.broadcast %cst_14 : f32 to vector<256x128xf32>
    %36 = vector.extract_strided_slice %17 {offsets = [7, 0], sizes = [256, 128], strides = [1, 1]} : vector<304x128xbf16> to vector<256x128xbf16>
    %c0_i32_15 = arith.constant 0 : i32
    %37 = vector.broadcast %c0_i32_15 : i32 to vector<256x128xi32>
    %38 = arith.cmpi eq, %34, %37 : vector<256x128xi32>
    %cst_16 = arith.constant 0.000000e+00 : bf16
    %39 = vector.broadcast %cst_16 : bf16 to vector<256x128xbf16>
    %40 = arith.select %38, %39, %36 : vector<256x128xi1>, vector<256x128xbf16>
    %c0_17 = arith.constant 0 : index
    %c0_18 = arith.constant 0 : index
    %41 = vector.load %arg4[%c0_17, %c0_18] : memref<1152x128xbf16, #tpu.memory_space<vmem>>, vector<128x128xbf16>
    %cst_19 = arith.constant dense<0.000000e+00> : vector<256x128xf32>
    %42 = tpu.matmul %40, %41, %cst_19 {dimension_numbers = #tpu.dot_dimension_numbers<[1], [0], [0], [1], [0, 0, 1, 1], [], []>} : vector<256x128xbf16>, vector<128x128xbf16>, vector<256x128xf32> -> vector<256x128xf32>
    %43 = arith.addf %35, %42 : vector<256x128xf32>
    %44 = vector.extract_strided_slice %17 {offsets = [8, 0], sizes = [256, 128], strides = [1, 1]} : vector<304x128xbf16> to vector<256x128xbf16>
    %c128 = arith.constant 128 : index
    %c0_20 = arith.constant 0 : index
    %45 = vector.load %arg4[%c128, %c0_20] : memref<1152x128xbf16, #tpu.memory_space<vmem>>, vector<128x128xbf16>
    %cst_21 = arith.constant dense<0.000000e+00> : vector<256x128xf32>
    %46 = tpu.matmul %44, %45, %cst_21 {dimension_numbers = #tpu.dot_dimension_numbers<[1], [0], [0], [1], [0, 0, 1, 1], [], []>} : vector<256x128xbf16>, vector<128x128xbf16>, vector<256x128xf32> -> vector<256x128xf32>
    %47 = arith.addf %43, %46 : vector<256x128xf32>
    %48 = vector.extract_strided_slice %17 {offsets = [9, 0], sizes = [256, 128], strides = [1, 1]} : vector<304x128xbf16> to vector<256x128xbf16>
    %c15_i32 = arith.constant 15 : i32
    %49 = vector.broadcast %c15_i32 : i32 to vector<256x128xi32>
    %50 = arith.cmpi eq, %34, %49 : vector<256x128xi32>
    %cst_22 = arith.constant 0.000000e+00 : bf16
    %51 = vector.broadcast %cst_22 : bf16 to vector<256x128xbf16>
    %52 = arith.select %50, %51, %48 : vector<256x128xi1>, vector<256x128xbf16>
    %c256 = arith.constant 256 : index
    %c0_23 = arith.constant 0 : index
    %53 = vector.load %arg4[%c256, %c0_23] : memref<1152x128xbf16, #tpu.memory_space<vmem>>, vector<128x128xbf16>
    %cst_24 = arith.constant dense<0.000000e+00> : vector<256x128xf32>
    %54 = tpu.matmul %52, %53, %cst_24 {dimension_numbers = #tpu.dot_dimension_numbers<[1], [0], [0], [1], [0, 0, 1, 1], [], []>} : vector<256x128xbf16>, vector<128x128xbf16>, vector<256x128xf32> -> vector<256x128xf32>
    %55 = arith.addf %47, %54 : vector<256x128xf32>
    %56 = vector.extract_strided_slice %17 {offsets = [23, 0], sizes = [256, 128], strides = [1, 1]} : vector<304x128xbf16> to vector<256x128xbf16>
    %c0_i32_25 = arith.constant 0 : i32
    %57 = vector.broadcast %c0_i32_25 : i32 to vector<256x128xi32>
    %58 = arith.cmpi eq, %34, %57 : vector<256x128xi32>
    %cst_26 = arith.constant 0.000000e+00 : bf16
    %59 = vector.broadcast %cst_26 : bf16 to vector<256x128xbf16>
    %60 = arith.select %58, %59, %56 : vector<256x128xi1>, vector<256x128xbf16>
    %c384 = arith.constant 384 : index
    %c0_27 = arith.constant 0 : index
    %61 = vector.load %arg4[%c384, %c0_27] : memref<1152x128xbf16, #tpu.memory_space<vmem>>, vector<128x128xbf16>
    %cst_28 = arith.constant dense<0.000000e+00> : vector<256x128xf32>
    %62 = tpu.matmul %60, %61, %cst_28 {dimension_numbers = #tpu.dot_dimension_numbers<[1], [0], [0], [1], [0, 0, 1, 1], [], []>} : vector<256x128xbf16>, vector<128x128xbf16>, vector<256x128xf32> -> vector<256x128xf32>
    %63 = arith.addf %55, %62 : vector<256x128xf32>
    %64 = vector.extract_strided_slice %17 {offsets = [24, 0], sizes = [256, 128], strides = [1, 1]} : vector<304x128xbf16> to vector<256x128xbf16>
    %c512 = arith.constant 512 : index
    %c0_29 = arith.constant 0 : index
    %65 = vector.load %arg4[%c512, %c0_29] : memref<1152x128xbf16, #tpu.memory_space<vmem>>, vector<128x128xbf16>
    %cst_30 = arith.constant dense<0.000000e+00> : vector<256x128xf32>
    %66 = tpu.matmul %64, %65, %cst_30 {dimension_numbers = #tpu.dot_dimension_numbers<[1], [0], [0], [1], [0, 0, 1, 1], [], []>} : vector<256x128xbf16>, vector<128x128xbf16>, vector<256x128xf32> -> vector<256x128xf32>
    %67 = arith.addf %63, %66 : vector<256x128xf32>
    %68 = vector.extract_strided_slice %17 {offsets = [25, 0], sizes = [256, 128], strides = [1, 1]} : vector<304x128xbf16> to vector<256x128xbf16>
    %c15_i32_31 = arith.constant 15 : i32
    %69 = vector.broadcast %c15_i32_31 : i32 to vector<256x128xi32>
    %70 = arith.cmpi eq, %34, %69 : vector<256x128xi32>
    %cst_32 = arith.constant 0.000000e+00 : bf16
    %71 = vector.broadcast %cst_32 : bf16 to vector<256x128xbf16>
    %72 = arith.select %70, %71, %68 : vector<256x128xi1>, vector<256x128xbf16>
    %c640 = arith.constant 640 : index
    %c0_33 = arith.constant 0 : index
    %73 = vector.load %arg4[%c640, %c0_33] : memref<1152x128xbf16, #tpu.memory_space<vmem>>, vector<128x128xbf16>
    %cst_34 = arith.constant dense<0.000000e+00> : vector<256x128xf32>
    %74 = tpu.matmul %72, %73, %cst_34 {dimension_numbers = #tpu.dot_dimension_numbers<[1], [0], [0], [1], [0, 0, 1, 1], [], []>} : vector<256x128xbf16>, vector<128x128xbf16>, vector<256x128xf32> -> vector<256x128xf32>
    %75 = arith.addf %67, %74 : vector<256x128xf32>
    %76 = vector.extract_strided_slice %17 {offsets = [39, 0], sizes = [256, 128], strides = [1, 1]} : vector<304x128xbf16> to vector<256x128xbf16>
    %c0_i32_35 = arith.constant 0 : i32
    %77 = vector.broadcast %c0_i32_35 : i32 to vector<256x128xi32>
    %78 = arith.cmpi eq, %34, %77 : vector<256x128xi32>
    %cst_36 = arith.constant 0.000000e+00 : bf16
    %79 = vector.broadcast %cst_36 : bf16 to vector<256x128xbf16>
    %80 = arith.select %78, %79, %76 : vector<256x128xi1>, vector<256x128xbf16>
    %c768 = arith.constant 768 : index
    %c0_37 = arith.constant 0 : index
    %81 = vector.load %arg4[%c768, %c0_37] : memref<1152x128xbf16, #tpu.memory_space<vmem>>, vector<128x128xbf16>
    %cst_38 = arith.constant dense<0.000000e+00> : vector<256x128xf32>
    %82 = tpu.matmul %80, %81, %cst_38 {dimension_numbers = #tpu.dot_dimension_numbers<[1], [0], [0], [1], [0, 0, 1, 1], [], []>} : vector<256x128xbf16>, vector<128x128xbf16>, vector<256x128xf32> -> vector<256x128xf32>
    %83 = arith.addf %75, %82 : vector<256x128xf32>
    %84 = vector.extract_strided_slice %17 {offsets = [40, 0], sizes = [256, 128], strides = [1, 1]} : vector<304x128xbf16> to vector<256x128xbf16>
    %c896 = arith.constant 896 : index
    %c0_39 = arith.constant 0 : index
    %85 = vector.load %arg4[%c896, %c0_39] : memref<1152x128xbf16, #tpu.memory_space<vmem>>, vector<128x128xbf16>
    %cst_40 = arith.constant dense<0.000000e+00> : vector<256x128xf32>
    %86 = tpu.matmul %84, %85, %cst_40 {dimension_numbers = #tpu.dot_dimension_numbers<[1], [0], [0], [1], [0, 0, 1, 1], [], []>} : vector<256x128xbf16>, vector<128x128xbf16>, vector<256x128xf32> -> vector<256x128xf32>
    %87 = arith.addf %83, %86 : vector<256x128xf32>
    %88 = vector.extract_strided_slice %17 {offsets = [41, 0], sizes = [256, 128], strides = [1, 1]} : vector<304x128xbf16> to vector<256x128xbf16>
    %c15_i32_41 = arith.constant 15 : i32
    %89 = vector.broadcast %c15_i32_41 : i32 to vector<256x128xi32>
    %90 = arith.cmpi eq, %34, %89 : vector<256x128xi32>
    %cst_42 = arith.constant 0.000000e+00 : bf16
    %91 = vector.broadcast %cst_42 : bf16 to vector<256x128xbf16>
    %92 = arith.select %90, %91, %88 : vector<256x128xi1>, vector<256x128xbf16>
    %c1024 = arith.constant 1024 : index
    %c0_43 = arith.constant 0 : index
    %93 = vector.load %arg4[%c1024, %c0_43] : memref<1152x128xbf16, #tpu.memory_space<vmem>>, vector<128x128xbf16>
    %cst_44 = arith.constant dense<0.000000e+00> : vector<256x128xf32>
    %94 = tpu.matmul %92, %93, %cst_44 {dimension_numbers = #tpu.dot_dimension_numbers<[1], [0], [0], [1], [0, 0, 1, 1], [], []>} : vector<256x128xbf16>, vector<128x128xbf16>, vector<256x128xf32> -> vector<256x128xf32>
    %95 = arith.addf %87, %94 : vector<256x128xf32>
    %c0_45 = arith.constant 0 : index
    %c0_46 = arith.constant 0 : index
    %96 = vector.load %arg5[%c0_45, %c0_46] : memref<1x128xf32, #tpu.memory_space<vmem>>, vector<1x128xf32>
    %97 = vector.broadcast %96 : vector<1x128xf32> to vector<256x128xf32>
    %98 = arith.addf %95, %97 : vector<256x128xf32>
    %cst_47 = arith.constant 0.000000e+00 : f32
    %99 = vector.broadcast %cst_47 : f32 to vector<256x128xf32>
    %100 = arith.maximumf %98, %99 : vector<256x128xf32>
    %cst_48 = arith.constant 0.000000e+00 : f32
    %101 = vector.broadcast %cst_48 : f32 to vector<256x128xf32>
    %102 = arith.minimumf %98, %101 : vector<256x128xf32>
    %103 = vector.broadcast %0 : vector<1x1xf32> to vector<256x128xf32>
    %104 = arith.mulf %103, %102 : vector<256x128xf32>
    %105 = arith.addf %100, %104 : vector<256x128xf32>
    %106 = arith.truncf %105 : vector<256x128xf32> to vector<256x128xbf16>
    %c0_49 = arith.constant 0 : index
    %c0_50 = arith.constant 0 : index
    %107 = vector.load %arg6[%c0_49, %c0_50] : memref<128x128xbf16, #tpu.memory_space<vmem>>, vector<128x128xbf16>
    %cst_51 = arith.constant dense<0.000000e+00> : vector<256x128xf32>
    %108 = tpu.matmul %106, %107, %cst_51 {dimension_numbers = #tpu.dot_dimension_numbers<[1], [0], [0], [1], [0, 0, 1, 1], [], []>} : vector<256x128xbf16>, vector<128x128xbf16>, vector<256x128xf32> -> vector<256x128xf32>
    %c0_52 = arith.constant 0 : index
    %c0_53 = arith.constant 0 : index
    %109 = vector.load %arg7[%c0_52, %c0_53] : memref<1x128xf32, #tpu.memory_space<vmem>>, vector<1x128xf32>
    %110 = vector.broadcast %109 : vector<1x128xf32> to vector<256x128xf32>
    %111 = arith.addf %108, %110 : vector<256x128xf32>
    %112 = arith.truncf %111 : vector<256x128xf32> to vector<256x128xbf16>
    %c0_54 = arith.constant 0 : index
    %c0_55 = arith.constant 0 : index
    %c0_56 = arith.constant 0 : index
    %113 = vector.load %arg9[%c0_54, %c0_55, %c0_56] : memref<1x256x128xbf16, #tpu.memory_space<vmem>>, vector<1x256x128xbf16>
    %114 = vector.shape_cast %113 : vector<1x256x128xbf16> to vector<256x128xbf16>
    %115 = vector.shape_cast %112 : vector<256x128xbf16> to vector<1x256x128xbf16>
    tpu.vector_store %arg9[%c0_54, %c0_55, %c0_56], %115 {strides = array<i32>} : memref<1x256x128xbf16, #tpu.memory_space<vmem>>, vector<1x256x128xbf16>,
    return
  }
  func.func @transform_0(%arg0: i32) -> (i32, i32, i32) {
    %c0_i32 = arith.constant 0 : i32
    %c0_i32_0 = arith.constant 0 : i32
    %c0_i32_1 = arith.constant 0 : i32
    return %arg0, %c0_i32, %c0_i32_0 : i32, i32, i32
  }
  func.func @transform_1(%arg0: i32) -> (i32, i32) {
    %c0_i32 = arith.constant 0 : i32
    %c0_i32_0 = arith.constant 0 : i32
    %c0_i32_1 = arith.constant 0 : i32
    return %c0_i32, %c0_i32_0 : i32, i32
  }
  func.func @transform_2(%arg0: i32) -> (i32, i32) {
    %c0_i32 = arith.constant 0 : i32
    %c0_i32_0 = arith.constant 0 : i32
    %c0_i32_1 = arith.constant 0 : i32
    return %c0_i32, %c0_i32_0 : i32, i32
  }
  func.func @transform_3(%arg0: i32) -> (i32, i32) {
    %c0_i32 = arith.constant 0 : i32
    %c0_i32_0 = arith.constant 0 : i32
    %c0_i32_1 = arith.constant 0 : i32
    return %c0_i32, %c0_i32_0 : i32, i32
  }
  func.func @transform_4(%arg0: i32) -> (i32, i32) {
    %c0_i32 = arith.constant 0 : i32
    %c0_i32_0 = arith.constant 0 : i32
    %c0_i32_1 = arith.constant 0 : i32
    return %c0_i32, %c0_i32_0 : i32, i32
  }
  func.func @transform_5(%arg0: i32) -> (i32, i32) {
    %c0_i32 = arith.constant 0 : i32
    %c0_i32_0 = arith.constant 0 : i32
    %c0_i32_1 = arith.constant 0 : i32
    return %c0_i32, %c0_i32_0 : i32, i32
  }
  func.func @transform_6(%arg0: i32) -> (i32, i32) {
    %c0_i32 = arith.constant 0 : i32
    %c0_i32_0 = arith.constant 0 : i32
    %c0_i32_1 = arith.constant 0 : i32
    return %c0_i32, %c0_i32_0 : i32, i32
  }
  func.func @transform_7(%arg0: i32) -> (i32, i32) {
    %c0_i32 = arith.constant 0 : i32
    %c0_i32_0 = arith.constant 0 : i32
    %c0_i32_1 = arith.constant 0 : i32
    return %c0_i32, %c0_i32_0 : i32, i32
  }
  func.func @transform_8(%arg0: i32) -> (i32, i32, i32) {
    %c0_i32 = arith.constant 0 : i32
    %c0_i32_0 = arith.constant 0 : i32
    %c0_i32_1 = arith.constant 0 : i32
    return %arg0, %c0_i32, %c0_i32_0 : i32, i32, i32
  }
}

</mosaic_0001>

<llo_original>
// kernel: tpu_custom_call.1
$region0: #{tpu_custom_call.1}
  #allocation0 [shape = 'u32[]', space=smem, size = 0x4, offset = 0x4, fixed_abs, tag = 'smem constant byte address 0x4 - core index']
  #allocation1 [shape = 'u32[144,128]{1,0:T(1,128)}', space=vmem, size = 0x12000, scoped, tag = 'internal scratch']
  #allocation2 [shape = 'f32[1,1]{1,0:T(1,128)S(1)}', space=vmem, size = 0x200, scoped, tag = 'scoped memory for tpu_custom_call.1']
  %s0 = inlined_call_operand.hbm [shape: bf16[2,256,128], index: 0, kind: input, shape index: {}]
  %s1 = inlined_call_operand.hbm [shape: bf16[128,128], index: 1, kind: input, shape index: {}]
  %s2 = inlined_call_operand.vmem [shape: f32[1,128], index: 2, kind: input, shape index: {}]
  %s3 = inlined_call_operand.hbm [shape: bf16[1152,128], index: 3, kind: input, shape index: {}]
  %s4 = inlined_call_operand.vmem [shape: f32[1,128], index: 4, kind: input, shape index: {}]
  %s5 = inlined_call_operand.hbm [shape: bf16[128,128], index: 5, kind: input, shape index: {}]
  %s6 = inlined_call_operand.vmem [shape: f32[1,128], index: 6, kind: input, shape index: {}]
  %s7 = inlined_call_operand.<no memory space> [shape: f32[1,1], index: 7, kind: input, shape index: {}]
  %s8 = inlined_call_operand.hbm [shape: bf16[2,256,128], index: 8, kind: output, shape index: {}]
  %s9 = sld [smem:[#allocation0]]
  $region81: #{tpu_custom_call.1} parent=0
    _
  %s11 = ssub.s32 1, %s9
  %s12 = scalar_select 0, %s11, %s9
  %v13 = vstv %s7
  %14 = vst [vmem:[#allocation2] sm:$0x1] %v13
  $region1: #{tpu_custom_call.1} parent=0
    #allocation3 [shape = 'u8[131072]{0}', space=vmem, size = 0x20000, scoped, tag = 'input window, operand 0']
    #allocation4 [shape = 's32[2]{0}', space=sflag, size = 0x8, scoped, tag = 'scoped memory for tpu_custom_call.1']
    #allocation5 [shape = 's32[2]{0}', space=sflag, size = 0x8, scoped, tag = 'scoped memory for tpu_custom_call.1']
    #allocation6 [shape = 'u8[32768]{0}', space=vmem, size = 0x8000, scoped, tag = 'input window, operand 1, single buffered']
    #allocation7 [shape = 's32[1]{0}', space=sflag, size = 0x4, scoped, tag = 'scoped memory for tpu_custom_call.1']
    #allocation8 [shape = 'u8[294912]{0}', space=vmem, size = 0x48000, scoped, tag = 'input window, operand 3, single buffered']
    #allocation9 [shape = 'u8[32768]{0}', space=vmem, size = 0x8000, scoped, tag = 'input window, operand 5, single buffered']
    #allocation10 [shape = 's32[1]{0}', space=sflag, size = 0x4, scoped, tag = 'scoped memory for tpu_custom_call.1']
    #allocation11 [shape = 'u8[131072]{0}', space=vmem, size = 0x20000, scoped, tag = 'output window, operand 0']
    %15 = vsyncpa [#allocation4], 0
    %s16 = scalar_lea.sflag [#allocation4], 1
    %17 = vsyncpa %s16, 0
    %18 = vsyncpa [#allocation7], 0
    %19 = vsyncpa [#allocation10], 0
    %20 = vsyncpa [#allocation5], 0
    %s21 = scalar_lea.sflag [#allocation5], 1
    %22 = vsyncpa %s21, 0
    loop: start=0, step=1, limit=4
    $region2: #{tpu_custom_call.1} parent=1 // loop_pre_header
      _
    $region3: #{tpu_custom_call.1} parent=1 // loop_header
      %s24 = sphi 0, %s28
      %p25 = scmp.ge.s32.totalorder %s24, 4
      %s34 = sphi 0, %s36
      %s37 = sphi 0, %s34
      %s38 = sphi 0, %s37
      %s54 = sphi 0, %s38
      %s58 = sphi 0, %s58
      %s60 = sphi 0, %s58
      %s61 = sphi 0, %s60
      %s75 = sphi 0, %s61
      %s79 = sphi 0, %s79
      %s81 = sphi 0, %s79
      %s82 = sphi 0, %s81
      %s96 = sphi 0, %s82
      %s100 = sphi 0, %s100
      %s102 = sphi 0, %s100
      %s103 = sphi 0, %s102
      %s117 = sphi 0, %s103
      %s121 = sphi 0, %s121
      %s123 = sphi 0, %s121
      %s124 = sphi 0, %s123
      %s138 = sphi 0, %s124
      %s142 = sphi 0, %s142
      %s144 = sphi 0, %s142
      %s145 = sphi 0, %s144
      %s159 = sphi 0, %s145
      %s163 = sphi 0, %s163
      %s165 = sphi 0, %s163
      %s166 = sphi 0, %s165
      %s180 = sphi 0, %s166
      %s184 = sphi 0, %s184
      %s186 = sphi 0, %s184
      %s187 = sphi 0, %s186
      %s201 = sphi 0, %s187
      %s207 = sphi 0, %s209
      %s210 = sphi 0, %s207
      %s211 = sphi 0, %s210
      %s227 = sphi 0, %s211
    $region4: #{tpu_custom_call.1} parent=1 // loop_header_branch
      %27 = sbr.rel (%p25) target = $region8
    $region5: #{tpu_custom_call.1} parent=1 // loop_body
      %s29 = ssub.s32 %s24, 1
      %s30 = ssub.s32 %s24, 2
      %s31 = sadd.s32 %s24, 1
      %s32 = ssub.s32 %s24, %s31
      %p33 = scmp.eq.s32.totalorder %s32, 0
      %s35 = sadd.s32 %s34, 1
      %s36 = scalar_select %p33, %s34, %s35
      %p39 = pneg %p33
      %p40 = scmp.eq.s32.totalorder %s24, 1
      %p41 = por %p39, %p40
      %p42 = scmp.ne.s32.totalorder %s34, %s37
      %p43 = scmp.eq.s32.totalorder %s24, 0
      %p44 = por %p42, %p43
      %p45 = scmp.ne.s32.totalorder %s34, %s37
      %p46 = scmp.eq.s32.totalorder %s29, 1
      %p47 = por %p45, %p46
      %p48 = scmp.ne.s32.totalorder %s37, %s38
      %p49 = scmp.eq.s32.totalorder %s29, 0
      %p50 = por %p48, %p49
      %p51 = scmp.ne.s32.totalorder %s37, %s38
      %p52 = scmp.eq.s32.totalorder %s30, 1
      %p53 = por %p51, %p52
      %p55 = scmp.ne.s32.totalorder %s38, %s54
      %p56 = scmp.eq.s32.totalorder %s30, 0
      %p57 = por %p55, %p56
      %s59 = sadd.s32 %s58, 1
      %p62 = scmp.eq.s32.totalorder %s24, 1
      %p63 = scmp.ne.s32.totalorder %s58, %s60
      %p64 = scmp.eq.s32.totalorder %s24, 0
      %p65 = por %p63, %p64
      %p66 = scmp.ne.s32.totalorder %s58, %s60
      %p67 = scmp.eq.s32.totalorder %s29, 1
      %p68 = por %p66, %p67
      %p69 = scmp.ne.s32.totalorder %s60, %s61
      %p70 = scmp.eq.s32.totalorder %s29, 0
      %p71 = por %p69, %p70
      %p72 = scmp.ne.s32.totalorder %s60, %s61
      %p73 = scmp.eq.s32.totalorder %s30, 1
      %p74 = por %p72, %p73
      %p76 = scmp.ne.s32.totalorder %s61, %s75
      %p77 = scmp.eq.s32.totalorder %s30, 0
      %p78 = por %p76, %p77
      %s80 = sadd.s32 %s79, 1
      %p83 = scmp.eq.s32.totalorder %s24, 1
      %p84 = scmp.ne.s32.totalorder %s79, %s81
      %p85 = scmp.eq.s32.totalorder %s24, 0
      %p86 = por %p84, %p85
      %p87 = scmp.ne.s32.totalorder %s79, %s81
      %p88 = scmp.eq.s32.totalorder %s29, 1
      %p89 = por %p87, %p88
      %p90 = scmp.ne.s32.totalorder %s81, %s82
      %p91 = scmp.eq.s32.totalorder %s29, 0
      %p92 = por %p90, %p91
      %p93 = scmp.ne.s32.totalorder %s81, %s82
      %p94 = scmp.eq.s32.totalorder %s30, 1
      %p95 = por %p93, %p94
      %p97 = scmp.ne.s32.totalorder %s82, %s96
      %p98 = scmp.eq.s32.totalorder %s30, 0
      %p99 = por %p97, %p98
      %s101 = sadd.s32 %s100, 1
      %p104 = scmp.eq.s32.totalorder %s24, 1
      %p105 = scmp.ne.s32.totalorder %s100, %s102
      %p106 = scmp.eq.s32.totalorder %s24, 0
      %p107 = por %p105, %p106
      %p108 = scmp.ne.s32.totalorder %s100, %s102
      %p109 = scmp.eq.s32.totalorder %s29, 1
      %p110 = por %p108, %p109
      %p111 = scmp.ne.s32.totalorder %s102, %s103
      %p112 = scmp.eq.s32.totalorder %s29, 0
      %p113 = por %p111, %p112
      %p114 = scmp.ne.s32.totalorder %s102, %s103
      %p115 = scmp.eq.s32.totalorder %s30, 1
      %p116 = por %p114, %p115
      %p118 = scmp.ne.s32.totalorder %s103, %s117
      %p119 = scmp.eq.s32.totalorder %s30, 0
      %p120 = por %p118, %p119
      %s122 = sadd.s32 %s121, 1
      %p125 = scmp.eq.s32.totalorder %s24, 1
      %p126 = scmp.ne.s32.totalorder %s121, %s123
      %p127 = scmp.eq.s32.totalorder %s24, 0
      %p128 = por %p126, %p127
      %p129 = scmp.ne.s32.totalorder %s121, %s123
      %p130 = scmp.eq.s32.totalorder %s29, 1
      %p131 = por %p129, %p130
      %p132 = scmp.ne.s32.totalorder %s123, %s124
      %p133 = scmp.eq.s32.totalorder %s29, 0
      %p134 = por %p132, %p133
      %p135 = scmp.ne.s32.totalorder %s123, %s124
      %p136 = scmp.eq.s32.totalorder %s30, 1
      %p137 = por %p135, %p136
      %p139 = scmp.ne.s32.totalorder %s124, %s138
      %p140 = scmp.eq.s32.totalorder %s30, 0
      %p141 = por %p139, %p140
      %s143 = sadd.s32 %s142, 1
      %p146 = scmp.eq.s32.totalorder %s24, 1
      %p147 = scmp.ne.s32.totalorder %s142, %s144
      %p148 = scmp.eq.s32.totalorder %s24, 0
      %p149 = por %p147, %p148
      %p150 = scmp.ne.s32.totalorder %s142, %s144
      %p151 = scmp.eq.s32.totalorder %s29, 1
      %p152 = por %p150, %p151
      %p153 = scmp.ne.s32.totalorder %s144, %s145
      %p154 = scmp.eq.s32.totalorder %s29, 0
      %p155 = por %p153, %p154
      %p156 = scmp.ne.s32.totalorder %s144, %s145
      %p157 = scmp.eq.s32.totalorder %s30, 1
      %p158 = por %p156, %p157
      %p160 = scmp.ne.s32.totalorder %s145, %s159
      %p161 = scmp.eq.s32.totalorder %s30, 0
      %p162 = por %p160, %p161
      %s164 = sadd.s32 %s163, 1
      %p167 = scmp.eq.s32.totalorder %s24, 1
      %p168 = scmp.ne.s32.totalorder %s163, %s165
      %p169 = scmp.eq.s32.totalorder %s24, 0
      %p170 = por %p168, %p169
      %p171 = scmp.ne.s32.totalorder %s163, %s165
      %p172 = scmp.eq.s32.totalorder %s29, 1
      %p173 = por %p171, %p172
      %p174 = scmp.ne.s32.totalorder %s165, %s166
      %p175 = scmp.eq.s32.totalorder %s29, 0
      %p176 = por %p174, %p175
      %p177 = scmp.ne.s32.totalorder %s165, %s166
      %p178 = scmp.eq.s32.totalorder %s30, 1
      %p179 = por %p177, %p178
      %p181 = scmp.ne.s32.totalorder %s166, %s180
      %p182 = scmp.eq.s32.totalorder %s30, 0
      %p183 = por %p181, %p182
      %s185 = sadd.s32 %s184, 1
      %p188 = scmp.eq.s32.totalorder %s24, 1
      %p189 = scmp.ne.s32.totalorder %s184, %s186
      %p190 = scmp.eq.s32.totalorder %s24, 0
      %p191 = por %p189, %p190
      %p192 = scmp.ne.s32.totalorder %s184, %s186
      %p193 = scmp.eq.s32.totalorder %s29, 1
      %p194 = por %p192, %p193
      %p195 = scmp.ne.s32.totalorder %s186, %s187
      %p196 = scmp.eq.s32.totalorder %s29, 0
      %p197 = por %p195, %p196
      %p198 = scmp.ne.s32.totalorder %s186, %s187
      %p199 = scmp.eq.s32.totalorder %s30, 1
      %p200 = por %p198, %p199
      %p202 = scmp.ne.s32.totalorder %s187, %s201
      %p203 = scmp.eq.s32.totalorder %s30, 0
      %p204 = por %p202, %p203
      %s205 = ssub.s32 %s24, %s31
      %p206 = scmp.eq.s32.totalorder %s205, 0
      %s208 = sadd.s32 %s207, 1
      %s209 = scalar_select %p206, %s207, %s208
      %p212 = pneg %p206
      %p213 = scmp.eq.s32.totalorder %s24, 1
      %p214 = por %p212, %p213
      %p215 = scmp.ne.s32.totalorder %s207, %s210
      %p216 = scmp.eq.s32.totalorder %s24, 0
      %p217 = por %p215, %p216
      %p218 = scmp.ne.s32.totalorder %s207, %s210
      %p219 = scmp.eq.s32.totalorder %s29, 1
      %p220 = por %p218, %p219
      %p221 = scmp.ne.s32.totalorder %s210, %s211
      %p222 = scmp.eq.s32.totalorder %s29, 0
      %p223 = por %p221, %p222
      %p224 = scmp.ne.s32.totalorder %s210, %s211
      %p225 = scmp.eq.s32.totalorder %s30, 1
      %p226 = por %p224, %p225
      %p228 = scmp.ne.s32.totalorder %s211, %s227
      %p229 = scmp.eq.s32.totalorder %s30, 0
      %p230 = por %p228, %p229
      %p231 = scmp.le.s32.totalorder 1, %s24
      %p232 = scmp.lt.s32.totalorder %s24, 3
      %p233 = pnand %p231, %p232
      %p234 = pneg %p233
      // Predicated region
      $region9: #{tpu_custom_call.1} parent=5 // pred_check
        _
      $region10: #{tpu_custom_call.1} parent=5 // pred_check_branch
        %236 = sbr.rel (%p233) target = $region12
      $region11: #{tpu_custom_call.1} parent=5 // pred_region
        %s237 = ssub.s32 %s24, 1
        // Predicated region
        $region13: #{tpu_custom_call.1} parent=11 // pred_check
          %p238 = pneg %p71
        $region14: #{tpu_custom_call.1} parent=11 // pred_check_branch
          %240 = sbr.rel (%p238) target = $region16
        $region15: #{tpu_custom_call.1} parent=11 // pred_region
          %s242 = ssub.s32 1024, 1024
          %243 = vsyncadd [#allocation7], %s242
          %s244 = sshll.u32 [#allocation6], 4
          %s245 = int_to_ptr.vmem [resolvable:$true] %s244
          %250 = dma.hbm_to_vmem [thread:$0]  %s1, 1024, %s245, [#allocation7], 64, 64, 4
        $region16: #{tpu_custom_call.1} parent=11 // pred_fallthru
          _
        // Predicated region
        $region17: #{tpu_custom_call.1} parent=11 // pred_check
          %p251 = pneg %p92
        $region18: #{tpu_custom_call.1} parent=11 // pred_check_branch
          %253 = sbr.rel (%p251) target = $region20
        $region19: #{tpu_custom_call.1} parent=11 // pred_region
          _
        $region20: #{tpu_custom_call.1} parent=11 // pred_fallthru
          _
        // Predicated region
        $region21: #{tpu_custom_call.1} parent=11 // pred_check
          %p254 = pneg %p113
        $region22: #{tpu_custom_call.1} parent=11 // pred_check_branch
          %256 = sbr.rel (%p254) target = $region24
        $region23: #{tpu_custom_call.1} parent=11 // pred_region
          %s258 = ssub.s32 9216, 9216
          %259 = vsyncadd [#allocation7], %s258
          %s260 = sshll.u32 [#allocation8], 4
          %s261 = int_to_ptr.vmem [resolvable:$true] %s260
          %266 = dma.hbm_to_vmem [thread:$0]  %s3, 9216, %s261, [#allocation7], 64, 64, 4
        $region24: #{tpu_custom_call.1} parent=11 // pred_fallthru
          _
        // Predicated region
        $region25: #{tpu_custom_call.1} parent=11 // pred_check
          %p267 = pneg %p134
        $region26: #{tpu_custom_call.1} parent=11 // pred_check_branch
          %269 = sbr.rel (%p267) target = $region28
        $region27: #{tpu_custom_call.1} parent=11 // pred_region
          _
        $region28: #{tpu_custom_call.1} parent=11 // pred_fallthru
          _
        // Predicated region
        $region29: #{tpu_custom_call.1} parent=11 // pred_check
          %p270 = pneg %p155
        $region30: #{tpu_custom_call.1} parent=11 // pred_check_branch
          %272 = sbr.rel (%p270) target = $region32
        $region31: #{tpu_custom_call.1} parent=11 // pred_region
          %s274 = ssub.s32 1024, 1024
          %275 = vsyncadd [#allocation10], %s274
          %s276 = sshll.u32 [#allocation9], 4
          %s277 = int_to_ptr.vmem [resolvable:$true] %s276
          %282 = dma.hbm_to_vmem [thread:$0]  %s5, 1024, %s277, [#allocation10], 64, 64, 4
        $region32: #{tpu_custom_call.1} parent=11 // pred_fallthru
          _
        // Predicated region
        $region33: #{tpu_custom_call.1} parent=11 // pred_check
          %p283 = pneg %p176
        $region34: #{tpu_custom_call.1} parent=11 // pred_check_branch
          %285 = sbr.rel (%p283) target = $region36
        $region35: #{tpu_custom_call.1} parent=11 // pred_region
          _
        $region36: #{tpu_custom_call.1} parent=11 // pred_fallthru
          _
        // Predicated region
        $region37: #{tpu_custom_call.1} parent=11 // pred_check
          %p286 = pneg %p197
        $region38: #{tpu_custom_call.1} parent=11 // pred_check_branch
          %288 = sbr.rel (%p286) target = $region40
        $region39: #{tpu_custom_call.1} parent=11 // pred_region
          _
        $region40: #{tpu_custom_call.1} parent=11 // pred_fallthru
          _
      $region12: #{tpu_custom_call.1} parent=5 // pred_fallthru
        _
      %p289 = scmp.lt.s32.totalorder %s24, 2
      // Predicated region
      $region41: #{tpu_custom_call.1} parent=5 // pred_check
        %p290 = pneg %p289
      $region42: #{tpu_custom_call.1} parent=5 // pred_check_branch
        %292 = sbr.rel (%p290) target = $region44
      $region43: #{tpu_custom_call.1} parent=5 // pred_region
        // Predicated region
        $region45: #{tpu_custom_call.1} parent=43 // pred_check
          %p293 = pneg %p44
        $region46: #{tpu_custom_call.1} parent=43 // pred_check_branch
          %295 = sbr.rel (%p293) target = $region48
        $region47: #{tpu_custom_call.1} parent=43 // pred_region
          %s296 = sand.u32 %s34, 1
          %s297 = scalar_lea.sflag [#allocation4], %s296
          %s298 = sand.u32 %s34, 1
          %s299 = smul.addr %s298, 128
          %s300 = scalar_lea.vmem [#allocation3], %s299
          %s302 = ssub.s32 2048, 2048
          %303 = vsyncadd %s297, %s302
          %s304 = smul.addr %s24, 32
          %s305 = smul.addr %s304, 64
          %s306 = scalar_lea.hbm %s0, %s305
          %s307 = sshll.u32 %s300, 4
          %s308 = int_to_ptr.vmem [resolvable:$true] %s307
          %313 = dma.hbm_to_vmem [thread:$0]  %s306, 2048, %s308, %s297, 64, 64, 4
        $region48: #{tpu_custom_call.1} parent=43 // pred_fallthru
          _
      $region44: #{tpu_custom_call.1} parent=5 // pred_fallthru
        _
      %p314 = scmp.le.s32.totalorder 1, %s24
      %p315 = scmp.lt.s32.totalorder %s24, 3
      %p316 = pnand %p314, %p315
      %p317 = pneg %p316
      // Predicated region
      $region49: #{tpu_custom_call.1} parent=5 // pred_check
        _
      $region50: #{tpu_custom_call.1} parent=5 // pred_check_branch
        %319 = sbr.rel (%p316) target = $region52
      $region51: #{tpu_custom_call.1} parent=5 // pred_region
        %s320 = ssub.s32 %s24, 1
        %s321 = sand.u32 %s37, 1
        %s322 = scalar_lea.sflag [#allocation4], %s321
        %s323 = sand.u32 %s37, 1
        %s324 = smul.addr %s323, 128
        %s325 = scalar_lea.vmem [#allocation3], %s324
        // Predicated region
        $region53: #{tpu_custom_call.1} parent=51 // pred_check
          %p326 = pneg %p50
        $region54: #{tpu_custom_call.1} parent=51 // pred_check_branch
          %328 = sbr.rel (%p326) target = $region56
        $region55: #{tpu_custom_call.1} parent=51 // pred_region
          %329 = dma.done %s322, 2048
        $region56: #{tpu_custom_call.1} parent=51 // pred_fallthru
          _
        // Predicated region
        $region57: #{tpu_custom_call.1} parent=51 // pred_check
          %p330 = pneg %p71
        $region58: #{tpu_custom_call.1} parent=51 // pred_check_branch
          %332 = sbr.rel (%p330) target = $region60
        $region59: #{tpu_custom_call.1} parent=51 // pred_region
          %333 = dma.done [#allocation7], 1024
        $region60: #{tpu_custom_call.1} parent=51 // pred_fallthru
          _
        // Predicated region
        $region61: #{tpu_custom_call.1} parent=51 // pred_check
          %p334 = pneg %p113
        $region62: #{tpu_custom_call.1} parent=51 // pred_check_branch
          %336 = sbr.rel (%p334) target = $region64
        $region63: #{tpu_custom_call.1} parent=51 // pred_region
          %337 = dma.done [#allocation7], 9216
        $region64: #{tpu_custom_call.1} parent=51 // pred_fallthru
          _
        // Predicated region
        $region65: #{tpu_custom_call.1} parent=51 // pred_check
          %p338 = pneg %p155
        $region66: #{tpu_custom_call.1} parent=51 // pred_check_branch
          %340 = sbr.rel (%p338) target = $region68
        $region67: #{tpu_custom_call.1} parent=51 // pred_region
          %341 = dma.done [#allocation10], 1024
        $region68: #{tpu_custom_call.1} parent=51 // pred_fallthru
          _
        %s342 = sand.u32 %s37, 1
        %s343 = scalar_lea.sflag [#allocation4], %s342
        %s344 = sand.u32 %s37, 1
        %s345 = smul.addr %s344, 128
        %s346 = scalar_lea.vmem [#allocation3], %s345
        %p347 = pneg %p50
        %p348 = pneg %p47
        %p349 = pneg %p71
        %p350 = pneg %p68
        %p351 = pneg %p92
        %p352 = pneg %p89
        %p353 = pneg %p113
        %p354 = pneg %p110
        %p355 = pneg %p134
        %p356 = pneg %p131
        %p357 = pneg %p155
        %p358 = pneg %p152
        %p359 = pneg %p176
        %p360 = pneg %p173
        %p361 = pneg %p197
        %p362 = pneg %p194
        %p363 = pneg %p223
        %p364 = pneg %p220
        %s365 = sand.u32 %s210, 1
        %s366 = scalar_lea.sflag [#allocation5], %s365
        %s367 = sand.u32 %s210, 1
        %s368 = smul.addr %s367, 128
        %s369 = scalar_lea.vmem [#allocation11], %s368
        %v373 = vld [vmem:[#allocation2] sm:$0x1]
        %v374 = vld [vmem:[%s325] sm:$0xf]
        %v375 = vld [vmem:[%s325 + $0x4] sm:$0xf]
        %v376 = vld [vmem:[%s325 + $0x8] sm:$0xf]
        %v377 = vld [vmem:[%s325 + $0xc] sm:$0xf]
        %v378 = vld [vmem:[%s325 + $0x10] sm:$0xf]
        %v379 = vld [vmem:[%s325 + $0x14] sm:$0xf]
        %v380 = vld [vmem:[%s325 + $0x18] sm:$0xf]
        %v381 = vld [vmem:[%s325 + $0x1c] sm:$0xf]
        %v382 = vld [vmem:[%s325 + $0x20] sm:$0xf]
        %v383 = vld [vmem:[%s325 + $0x24] sm:$0xf]
        %v384 = vld [vmem:[%s325 + $0x28] sm:$0xf]
        %v385 = vld [vmem:[%s325 + $0x2c] sm:$0xf]
        %v386 = vld [vmem:[%s325 + $0x30] sm:$0xf]
        %v387 = vld [vmem:[%s325 + $0x34] sm:$0xf]
        %v388 = vld [vmem:[%s325 + $0x38] sm:$0xf]
        %v389 = vld [vmem:[%s325 + $0x3c] sm:$0xf]
        %v390 = vld [vmem:[%s325 + $0x40] sm:$0xf]
        %v391 = vld [vmem:[%s325 + $0x44] sm:$0xf]
        %v392 = vld [vmem:[%s325 + $0x48] sm:$0xf]
        %v393 = vld [vmem:[%s325 + $0x4c] sm:$0xf]
        %v394 = vld [vmem:[%s325 + $0x50] sm:$0xf]
        %v395 = vld [vmem:[%s325 + $0x54] sm:$0xf]
        %v396 = vld [vmem:[%s325 + $0x58] sm:$0xf]
        %v397 = vld [vmem:[%s325 + $0x5c] sm:$0xf]
        %v398 = vld [vmem:[%s325 + $0x60] sm:$0xf]
        %v399 = vld [vmem:[%s325 + $0x64] sm:$0xf]
        %v400 = vld [vmem:[%s325 + $0x68] sm:$0xf]
        %v401 = vld [vmem:[%s325 + $0x6c] sm:$0xf]
        %v402 = vld [vmem:[%s325 + $0x70] sm:$0xf]
        %v403 = vld [vmem:[%s325 + $0x74] sm:$0xf]
        %v404 = vld [vmem:[%s325 + $0x78] sm:$0xf]
        %v405 = vld [vmem:[%s325 + $0x7c] sm:$0xf]
        %v406 = vld [vmem:[#allocation6] sm:$0xf]
        %v407 = vld [vmem:[#allocation6 + $0x4] sm:$0xf]
        %v408 = vld [vmem:[#allocation6 + $0x8] sm:$0xf]
        %v409 = vld [vmem:[#allocation6 + $0xc] sm:$0xf]
        %v410 = vld [vmem:[#allocation6 + $0x10] sm:$0xf]
        %v411 = vld [vmem:[#allocation6 + $0x14] sm:$0xf]
        %v412 = vld [vmem:[#allocation6 + $0x18] sm:$0xf]
        %v413 = vld [vmem:[#allocation6 + $0x1c] sm:$0xf]
        %v414 = vld [vmem:[#allocation6 + $0x20] sm:$0xf]
        %v415 = vld [vmem:[#allocation6 + $0x24] sm:$0xf]
        %v416 = vld [vmem:[#allocation6 + $0x28] sm:$0xf]
        %v417 = vld [vmem:[#allocation6 + $0x2c] sm:$0xf]
        %v418 = vld [vmem:[#allocation6 + $0x30] sm:$0xf]
        %v419 = vld [vmem:[#allocation6 + $0x34] sm:$0xf]
        %v420 = vld [vmem:[#allocation6 + $0x38] sm:$0xf]
        %v421 = vld [vmem:[#allocation6 + $0x3c] sm:$0xf]
        %v422 = vld [vmem:[%s2] sm:$0x1]
        %v424 = vlaneseq
        %v425 = vshrl.u32 %v424, 7
        %v426 = vsub.s32 0, %v425
        %v427 = vrot.slane %v422, %v426
        %v461 = vunpack.c.l.b16 %v374
        %v462 = vunpack.c.l.b16 %v375
        %v463 = vunpack.c.l.b16 %v376
        %v464 = vunpack.c.l.b16 %v377
        %v465 = vunpack.c.l.b16 %v378
        %v466 = vunpack.c.l.b16 %v379
        %v467 = vunpack.c.l.b16 %v380
        %v468 = vunpack.c.l.b16 %v381
        %v469 = vunpack.c.l.b16 %v382
        %v470 = vunpack.c.l.b16 %v383
        %v471 = vunpack.c.l.b16 %v384
        %v472 = vunpack.c.l.b16 %v385
        %v473 = vunpack.c.l.b16 %v386
        %v474 = vunpack.c.l.b16 %v387
        %v475 = vunpack.c.l.b16 %v388
        %v476 = vunpack.c.l.b16 %v389
        %v477 = vunpack.c.l.b16 %v390
        %v478 = vunpack.c.l.b16 %v391
        %v479 = vunpack.c.l.b16 %v392
        %v480 = vunpack.c.l.b16 %v393
        %v481 = vunpack.c.l.b16 %v394
        %v482 = vunpack.c.l.b16 %v395
        %v483 = vunpack.c.l.b16 %v396
        %v484 = vunpack.c.l.b16 %v397
        %v485 = vunpack.c.l.b16 %v398
        %v486 = vunpack.c.l.b16 %v399
        %v487 = vunpack.c.l.b16 %v400
        %v488 = vunpack.c.l.b16 %v401
        %v489 = vunpack.c.l.b16 %v402
        %v490 = vunpack.c.l.b16 %v403
        %v491 = vunpack.c.l.b16 %v404
        %v492 = vunpack.c.l.b16 %v405
        %v493 = vpack.c.b16 %v462, %v461
        %v494 = vpack.c.b16 %v464, %v463
        %v495 = vpack.c.b16 %v466, %v465
        %v496 = vpack.c.b16 %v468, %v467
        %v497 = vpack.c.b16 %v470, %v469
        %v498 = vpack.c.b16 %v472, %v471
        %v499 = vpack.c.b16 %v474, %v473
        %v500 = vpack.c.b16 %v476, %v475
        %v501 = vpack.c.b16 %v478, %v477
        %v502 = vpack.c.b16 %v480, %v479
        %v503 = vpack.c.b16 %v482, %v481
        %v504 = vpack.c.b16 %v484, %v483
        %v505 = vpack.c.b16 %v486, %v485
        %v506 = vpack.c.b16 %v488, %v487
        %v507 = vpack.c.b16 %v490, %v489
        %v508 = vpack.c.b16 %v492, %v491
        %v541 = vunpack.c.l.b16 %v406
        %v542 = vunpack.c.l.b16 %v407
        %v543 = vunpack.c.l.b16 %v408
        %v544 = vunpack.c.l.b16 %v409
        %v545 = vunpack.c.l.b16 %v410
        %v546 = vunpack.c.l.b16 %v411
        %v547 = vunpack.c.l.b16 %v412
        %v548 = vunpack.c.l.b16 %v413
        %v549 = vunpack.c.l.b16 %v414
        %v550 = vunpack.c.l.b16 %v415
        %v551 = vunpack.c.l.b16 %v416
        %v552 = vunpack.c.l.b16 %v417
        %v553 = vunpack.c.l.b16 %v418
        %v554 = vunpack.c.l.b16 %v419
        %v555 = vunpack.c.l.b16 %v420
        %v556 = vunpack.c.l.b16 %v421
        %v557 = vpack.c.b16 %v542, %v541
        %v558 = vpack.c.b16 %v544, %v543
        %v559 = vpack.c.b16 %v546, %v545
        %v560 = vpack.c.b16 %v548, %v547
        %v561 = vpack.c.b16 %v550, %v549
        %v562 = vpack.c.b16 %v552, %v551
        %v563 = vpack.c.b16 %v554, %v553
        %v564 = vpack.c.b16 %v556, %v555
        %573 = vmatprep.subr.bf16.mxu0 0
        %574 = vmatpush1.bf16.msra.mxu0 %v564
        %575 = vmatprep.subr.bf16.mxu0 0
        %576 = vmatpush1.bf16.msra.mxu0 %v563
        %577 = vmatprep.subr.bf16.mxu0 0
        %578 = vmatpush1.bf16.msra.mxu0 %v562
        %579 = vmatprep.subr.bf16.mxu0 0
        %580 = vmatpush1.bf16.msra.mxu0 %v561
        %581 = vmatprep.subr.bf16.mxu0 0
        %582 = vmatpush1.bf16.msra.mxu0 %v560
        %583 = vmatprep.subr.bf16.mxu0 0
        %584 = vmatpush1.bf16.msra.mxu0 %v559
        %585 = vmatprep.subr.bf16.mxu0 0
        %586 = vmatpush1.bf16.msra.mxu0 %v558
        %587 = vmatprep.subr.bf16.mxu0 0
        %588 = vmatpush1.bf16.msra.mxu0 %v557
        %589 = vmatprep.subr.bf16.mxu0 0
        %590 = vmatpush2.bf16.msra.mxu0 0
        %591 = vmatprep.subr.bf16.mxu0 0
        %592 = vmatpush2.bf16.msra.mxu0 0
        %593 = vmatprep.subr.bf16.mxu0 0
        %594 = vmatpush2.bf16.msra.mxu0 0
        %595 = vmatprep.subr.bf16.mxu0 0
        %596 = vmatpush2.bf16.msra.mxu0 0
        %597 = vmatprep.subr.bf16.mxu0 0
        %598 = vmatpush2.bf16.msra.mxu0 0
        %599 = vmatprep.subr.bf16.mxu0 0
        %600 = vmatpush2.bf16.msra.mxu0 0
        %601 = vmatprep.subr.bf16.mxu0 0
        %602 = vmatpush2.bf16.msra.mxu0 0
        %603 = vmatprep.subr.bf16.mxu0 0
        %604 = vmatpush2.bf16.msra.mxu0 0
        %605 = vmatprep.mubr.bf16.mxu0 0
        %606 = vmatmul.mubr.bf16.gmra.mxu0 %v493
        %v607 = vpop.f32.mrf.mxu0
        %v608 = vadd.f32 %v427, %v607
        %v609 = vpop.f32.mrf.mxu0
        %v610 = vpop.f32.mrf.mxu0
        %v611 = vadd.f32 %v427, %v610
        %v612 = vpop.f32.mrf.mxu0
        %613 = vmatprep.mubr.bf16.mxu0 0
        %614 = vmatmul.mubr.bf16.gmra.mxu0 %v494
        %v615 = vpop.f32.mrf.mxu0
        %v616 = vadd.f32 %v427, %v615
        %v617 = vpop.f32.mrf.mxu0
        %v618 = vpop.f32.mrf.mxu0
        %v619 = vadd.f32 %v427, %v618
        %v620 = vpop.f32.mrf.mxu0
        %621 = vmatprep.mubr.bf16.mxu0 0
        %622 = vmatmul.mubr.bf16.gmra.mxu0 %v495
        %v623 = vpop.f32.mrf.mxu0
        %v624 = vadd.f32 %v427, %v623
        %v625 = vpop.f32.mrf.mxu0
        %v626 = vpop.f32.mrf.mxu0
        %v627 = vadd.f32 %v427, %v626
        %v628 = vpop.f32.mrf.mxu0
        %629 = vmatprep.mubr.bf16.mxu0 0
        %630 = vmatmul.mubr.bf16.gmra.mxu0 %v496
        %v631 = vpop.f32.mrf.mxu0
        %v632 = vadd.f32 %v427, %v631
        %v633 = vpop.f32.mrf.mxu0
        %v634 = vpop.f32.mrf.mxu0
        %v635 = vadd.f32 %v427, %v634
        %v636 = vpop.f32.mrf.mxu0
        %637 = vmatprep.mubr.bf16.mxu0 0
        %638 = vmatmul.mubr.bf16.gmra.mxu0 %v497
        %v639 = vpop.f32.mrf.mxu0
        %v640 = vadd.f32 %v427, %v639
        %v641 = vpop.f32.mrf.mxu0
        %v642 = vpop.f32.mrf.mxu0
        %v643 = vadd.f32 %v427, %v642
        %v644 = vpop.f32.mrf.mxu0
        %645 = vmatprep.mubr.bf16.mxu0 0
        %646 = vmatmul.mubr.bf16.gmra.mxu0 %v498
        %v647 = vpop.f32.mrf.mxu0
        %v648 = vadd.f32 %v427, %v647
        %v649 = vpop.f32.mrf.mxu0
        %v650 = vpop.f32.mrf.mxu0
        %v651 = vadd.f32 %v427, %v650
        %v652 = vpop.f32.mrf.mxu0
        %653 = vmatprep.mubr.bf16.mxu0 0
        %654 = vmatmul.mubr.bf16.gmra.mxu0 %v499
        %v655 = vpop.f32.mrf.mxu0
        %v656 = vadd.f32 %v427, %v655
        %v657 = vpop.f32.mrf.mxu0
        %v658 = vpop.f32.mrf.mxu0
        %v659 = vadd.f32 %v427, %v658
        %v660 = vpop.f32.mrf.mxu0
        %661 = vmatprep.mubr.bf16.mxu0 0
        %662 = vmatmul.mubr.bf16.gmra.mxu0 %v500
        %v663 = vpop.f32.mrf.mxu0
        %v664 = vadd.f32 %v427, %v663
        %v665 = vpop.f32.mrf.mxu0
        %v666 = vpop.f32.mrf.mxu0
        %v667 = vadd.f32 %v427, %v666
        %v668 = vpop.f32.mrf.mxu0
        %669 = vmatprep.mubr.bf16.mxu0 0
        %670 = vmatmul.mubr.bf16.gmra.mxu0 %v501
        %v671 = vpop.f32.mrf.mxu0
        %v672 = vadd.f32 %v427, %v671
        %v673 = vpop.f32.mrf.mxu0
        %v674 = vpop.f32.mrf.mxu0
        %v675 = vadd.f32 %v427, %v674
        %v676 = vpop.f32.mrf.mxu0
        %677 = vmatprep.mubr.bf16.mxu0 0
        %678 = vmatmul.mubr.bf16.gmra.mxu0 %v502
        %v679 = vpop.f32.mrf.mxu0
        %v680 = vadd.f32 %v427, %v679
        %v681 = vpop.f32.mrf.mxu0
        %v682 = vpop.f32.mrf.mxu0
        %v683 = vadd.f32 %v427, %v682
        %v684 = vpop.f32.mrf.mxu0
        %685 = vmatprep.mubr.bf16.mxu0 0
        %686 = vmatmul.mubr.bf16.gmra.mxu0 %v503
        %v687 = vpop.f32.mrf.mxu0
        %v688 = vadd.f32 %v427, %v687
        %v689 = vpop.f32.mrf.mxu0
        %v690 = vpop.f32.mrf.mxu0
        %v691 = vadd.f32 %v427, %v690
        %v692 = vpop.f32.mrf.mxu0
        %693 = vmatprep.mubr.bf16.mxu0 0
        %694 = vmatmul.mubr.bf16.gmra.mxu0 %v504
        %v695 = vpop.f32.mrf.mxu0
        %v696 = vadd.f32 %v427, %v695
        %v697 = vpop.f32.mrf.mxu0
        %v698 = vpop.f32.mrf.mxu0
        %v699 = vadd.f32 %v427, %v698
        %v700 = vpop.f32.mrf.mxu0
        %701 = vmatprep.mubr.bf16.mxu0 0
        %702 = vmatmul.mubr.bf16.gmra.mxu0 %v505
        %v703 = vpop.f32.mrf.mxu0
        %v704 = vadd.f32 %v427, %v703
        %v705 = vpop.f32.mrf.mxu0
        %v706 = vpop.f32.mrf.mxu0
        %v707 = vadd.f32 %v427, %v706
        %v708 = vpop.f32.mrf.mxu0
        %709 = vmatprep.mubr.bf16.mxu0 0
        %710 = vmatmul.mubr.bf16.gmra.mxu0 %v506
        %v711 = vpop.f32.mrf.mxu0
        %v712 = vadd.f32 %v427, %v711
        %v713 = vpop.f32.mrf.mxu0
        %v714 = vpop.f32.mrf.mxu0
        %v715 = vadd.f32 %v427, %v714
        %v716 = vpop.f32.mrf.mxu0
        %717 = vmatprep.mubr.bf16.mxu0 0
        %718 = vmatmul.mubr.bf16.gmra.mxu0 %v507
        %v719 = vpop.f32.mrf.mxu0
        %v720 = vadd.f32 %v427, %v719
        %v721 = vpop.f32.mrf.mxu0
        %v722 = vpop.f32.mrf.mxu0
        %v723 = vadd.f32 %v427, %v722
        %v724 = vpop.f32.mrf.mxu0
        %725 = vmatprep.mubr.bf16.mxu0 0
        %726 = vmatmul.mubr.bf16.gmra.mxu0 %v508
        %v727 = vpop.f32.mrf.mxu0
        %v728 = vadd.f32 %v427, %v727
        %v729 = vpop.f32.mrf.mxu0
        %v730 = vpop.f32.mrf.mxu0
        %v731 = vadd.f32 %v427, %v730
        %v732 = vpop.f32.mrf.mxu0
        %733 = vdwg.mxu0
        %v734 = vmax.f32 %v608, 0.0
        %v735 = vmax.f32 %v611, 0.0
        %v736 = vmax.f32 %v616, 0.0
        %v737 = vmax.f32 %v619, 0.0
        %v738 = vmax.f32 %v624, 0.0
        %v739 = vmax.f32 %v627, 0.0
        %v740 = vmax.f32 %v632, 0.0
        %v741 = vmax.f32 %v635, 0.0
        %v742 = vmax.f32 %v640, 0.0
        %v743 = vmax.f32 %v643, 0.0
        %v744 = vmax.f32 %v648, 0.0
        %v745 = vmax.f32 %v651, 0.0
        %v746 = vmax.f32 %v656, 0.0
        %v747 = vmax.f32 %v659, 0.0
        %v748 = vmax.f32 %v664, 0.0
        %v749 = vmax.f32 %v667, 0.0
        %v750 = vmax.f32 %v672, 0.0
        %v751 = vmax.f32 %v675, 0.0
        %v752 = vmax.f32 %v680, 0.0
        %v753 = vmax.f32 %v683, 0.0
        %v754 = vmax.f32 %v688, 0.0
        %v755 = vmax.f32 %v691, 0.0
        %v756 = vmax.f32 %v696, 0.0
        %v757 = vmax.f32 %v699, 0.0
        %v758 = vmax.f32 %v704, 0.0
        %v759 = vmax.f32 %v707, 0.0
        %v760 = vmax.f32 %v712, 0.0
        %v761 = vmax.f32 %v715, 0.0
        %v762 = vmax.f32 %v720, 0.0
        %v763 = vmax.f32 %v723, 0.0
        %v764 = vmax.f32 %v728, 0.0
        %v765 = vmax.f32 %v731, 0.0
        %v766 = vmin.f32 %v608, 0.0
        %v767 = vmin.f32 %v611, 0.0
        %v768 = vmin.f32 %v616, 0.0
        %v769 = vmin.f32 %v619, 0.0
        %v770 = vmin.f32 %v624, 0.0
        %v771 = vmin.f32 %v627, 0.0
        %v772 = vmin.f32 %v632, 0.0
        %v773 = vmin.f32 %v635, 0.0
        %v774 = vmin.f32 %v640, 0.0
        %v775 = vmin.f32 %v643, 0.0
        %v776 = vmin.f32 %v648, 0.0
        %v777 = vmin.f32 %v651, 0.0
        %v778 = vmin.f32 %v656, 0.0
        %v779 = vmin.f32 %v659, 0.0
        %v780 = vmin.f32 %v664, 0.0
        %v781 = vmin.f32 %v667, 0.0
        %v782 = vmin.f32 %v672, 0.0
        %v783 = vmin.f32 %v675, 0.0
        %v784 = vmin.f32 %v680, 0.0
        %v785 = vmin.f32 %v683, 0.0
        %v786 = vmin.f32 %v688, 0.0
        %v787 = vmin.f32 %v691, 0.0
        %v788 = vmin.f32 %v696, 0.0
        %v789 = vmin.f32 %v699, 0.0
        %v790 = vmin.f32 %v704, 0.0
        %v791 = vmin.f32 %v707, 0.0
        %v792 = vmin.f32 %v712, 0.0
        %v793 = vmin.f32 %v715, 0.0
        %v794 = vmin.f32 %v720, 0.0
        %v795 = vmin.f32 %v723, 0.0
        %v796 = vmin.f32 %v728, 0.0
        %v797 = vmin.f32 %v731, 0.0
        %v799 = vlaneseq
        %v800 = vshrl.u32 %v799, 7
        %v801 = vsub.s32 0, %v800
        %v802 = vrot.slane %v373, %v801
        %803 = vset.pattern.permute.xlu0 0
        %804 = vperm.xlu0 %803, %v802
        %v805 = vpop.permute.xlu0 %804
        %v807 = vmul.f32 %v805, %v766
        %v808 = vmul.f32 %v805, %v767
        %v809 = vmul.f32 %v805, %v768
        %v810 = vmul.f32 %v805, %v769
        %v811 = vmul.f32 %v805, %v770
        %v812 = vmul.f32 %v805, %v771
        %v813 = vmul.f32 %v805, %v772
        %v814 = vmul.f32 %v805, %v773
        %v815 = vmul.f32 %v805, %v774
        %v816 = vmul.f32 %v805, %v775
        %v817 = vmul.f32 %v805, %v776
        %v818 = vmul.f32 %v805, %v777
        %v819 = vmul.f32 %v805, %v778
        %v820 = vmul.f32 %v805, %v779
        %v821 = vmul.f32 %v805, %v780
        %v822 = vmul.f32 %v805, %v781
        %v823 = vmul.f32 %v805, %v782
        %v824 = vmul.f32 %v805, %v783
        %v825 = vmul.f32 %v805, %v784
        %v826 = vmul.f32 %v805, %v785
        %v827 = vmul.f32 %v805, %v786
        %v828 = vmul.f32 %v805, %v787
        %v829 = vmul.f32 %v805, %v788
        %v830 = vmul.f32 %v805, %v789
        %v831 = vmul.f32 %v805, %v790
        %v832 = vmul.f32 %v805, %v791
        %v833 = vmul.f32 %v805, %v792
        %v834 = vmul.f32 %v805, %v793
        %v835 = vmul.f32 %v805, %v794
        %v836 = vmul.f32 %v805, %v795
        %v837 = vmul.f32 %v805, %v796
        %v838 = vmul.f32 %v805, %v797
        %v839 = vadd.f32 %v734, %v807
        %v840 = vadd.f32 %v735, %v808
        %v841 = vadd.f32 %v736, %v809
        %v842 = vadd.f32 %v737, %v810
        %v843 = vadd.f32 %v738, %v811
        %v844 = vadd.f32 %v739, %v812
        %v845 = vadd.f32 %v740, %v813
        %v846 = vadd.f32 %v741, %v814
        %v847 = vadd.f32 %v742, %v815
        %v848 = vadd.f32 %v743, %v816
        %v849 = vadd.f32 %v744, %v817
        %v850 = vadd.f32 %v745, %v818
        %v851 = vadd.f32 %v746, %v819
        %v852 = vadd.f32 %v747, %v820
        %v853 = vadd.f32 %v748, %v821
        %v854 = vadd.f32 %v749, %v822
        %v855 = vadd.f32 %v750, %v823
        %v856 = vadd.f32 %v751, %v824
        %v857 = vadd.f32 %v752, %v825
        %v858 = vadd.f32 %v753, %v826
        %v859 = vadd.f32 %v754, %v827
        %v860 = vadd.f32 %v755, %v828
        %v861 = vadd.f32 %v756, %v829
        %v862 = vadd.f32 %v757, %v830
        %v863 = vadd.f32 %v758, %v831
        %v864 = vadd.f32 %v759, %v832
        %v865 = vadd.f32 %v760, %v833
        %v866 = vadd.f32 %v761, %v834
        %v867 = vadd.f32 %v762, %v835
        %v868 = vadd.f32 %v763, %v836
        %v869 = vadd.f32 %v764, %v837
        %v870 = vadd.f32 %v765, %v838
        %v871 = vpack.c.bf16 %v840, %v839
        %v872 = vpack.c.bf16 %v842, %v841
        %v873 = vpack.c.bf16 %v844, %v843
        %v874 = vpack.c.bf16 %v846, %v845
        %v875 = vpack.c.bf16 %v848, %v847
        %v876 = vpack.c.bf16 %v850, %v849
        %v877 = vpack.c.bf16 %v852, %v851
        %v878 = vpack.c.bf16 %v854, %v853
        %v879 = vpack.c.bf16 %v856, %v855
        %v880 = vpack.c.bf16 %v858, %v857
        %v881 = vpack.c.bf16 %v860, %v859
        %v882 = vpack.c.bf16 %v862, %v861
        %v883 = vpack.c.bf16 %v864, %v863
        %v884 = vpack.c.bf16 %v866, %v865
        %v885 = vpack.c.bf16 %v868, %v867
        %v886 = vpack.c.bf16 %v870, %v869
        %vm903 = vcmask 1043456
        %v904 = vrot.slane %v871, 4
        %v905 = vrot.slane %v872, 4
        %v906 = vsel %vm903, %v904, %v905
        %v907 = vrot.slane %v873, 4
        %v908 = vsel %vm903, %v905, %v907
        %v909 = vrot.slane %v874, 4
        %v910 = vsel %vm903, %v907, %v909
        %v911 = vrot.slane %v875, 4
        %v912 = vsel %vm903, %v909, %v911
        %v913 = vrot.slane %v876, 4
        %v914 = vsel %vm903, %v911, %v913
        %v915 = vrot.slane %v877, 4
        %v916 = vsel %vm903, %v913, %v915
        %v917 = vrot.slane %v878, 4
        %v918 = vsel %vm903, %v915, %v917
        %v919 = vrot.slane %v879, 4
        %v920 = vsel %vm903, %v917, %v919
        %v921 = vrot.slane %v880, 4
        %v922 = vsel %vm903, %v919, %v921
        %v923 = vrot.slane %v881, 4
        %v924 = vsel %vm903, %v921, %v923
        %v925 = vrot.slane %v882, 4
        %v926 = vsel %vm903, %v923, %v925
        %v927 = vrot.slane %v883, 4
        %v928 = vsel %vm903, %v925, %v927
        %v929 = vrot.slane %v884, 4
        %v930 = vsel %vm903, %v927, %v929
        %v931 = vrot.slane %v885, 4
        %v932 = vsel %vm903, %v929, %v931
        %v933 = vrot.slane %v886, 4
        %v934 = vsel %vm903, %v931, %v933
        %vm950 = vcmask 1043456
        %v953 = vsel %vm950, 0, %v904
        %v956 = vsel %vm950, %v933, 0
        %v958 = vlaneseq
        %v959 = vshrl.u32 %v958, 7
        %v960 = vadd.s32 %v959, 8
        %v961 = vadd.s32 %v959, 16
        %v962 = vadd.s32 %v959, 24
        %v963 = vadd.s32 %v959, 32
        %v964 = vadd.s32 %v959, 40
        %v965 = vadd.s32 %v959, 48
        %v966 = vadd.s32 %v959, 56
        %v967 = vadd.s32 %v959, 64
        %v968 = vadd.s32 %v959, 72
        %v969 = vadd.s32 %v959, 80
        %v970 = vadd.s32 %v959, 88
        %v971 = vadd.s32 %v959, 96
        %v972 = vadd.s32 %v959, 104
        %v973 = vadd.s32 %v959, 112
        %v974 = vadd.s32 %v959, 120
        %v975 = vadd.s32 %v959, 128
        %v976 = vadd.s32 %v959, 136
        %v977 = vadd.s32 %v959, 144
        %v978 = vadd.s32 %v959, 152
        %v979 = vadd.s32 %v959, 160
        %v980 = vadd.s32 %v959, 168
        %v981 = vadd.s32 %v959, 176
        %v982 = vadd.s32 %v959, 184
        %v983 = vadd.s32 %v959, 192
        %v984 = vadd.s32 %v959, 200
        %v985 = vadd.s32 %v959, 208
        %v986 = vadd.s32 %v959, 216
        %v987 = vadd.s32 %v959, 224
        %v988 = vadd.s32 %v959, 232
        %v989 = vadd.s32 %v959, 240
        %v990 = vadd.s32 %v959, 248
        %vm991 = vcmp.lt.s32.totalorder %v959, 0
        %v992 = vsub.s32 0, %v959
        %v993 = vsel %vm991, %v992, %v959
        %v994 = vshrl.u32 %v993, 4
        %v995 = vand.u32 %v993, 15
        %v996 = vsub.s32 0, %v995
        %v997 = vsel %vm991, %v996, %v995
        %vm998 = vcmp.lt.s32.totalorder %v960, 0
        %v999 = vsub.s32 0, %v960
        %v1000 = vsel %vm998, %v999, %v960
        %v1001 = vshrl.u32 %v1000, 4
        %v1002 = vand.u32 %v1000, 15
        %v1003 = vsub.s32 0, %v1002
        %v1004 = vsel %vm998, %v1003, %v1002
        %vm1005 = vcmp.lt.s32.totalorder %v961, 0
        %v1006 = vsub.s32 0, %v961
        %v1007 = vsel %vm1005, %v1006, %v961
        %v1008 = vshrl.u32 %v1007, 4
        %v1009 = vand.u32 %v1007, 15
        %v1010 = vsub.s32 0, %v1009
        %v1011 = vsel %vm1005, %v1010, %v1009
        %vm1012 = vcmp.lt.s32.totalorder %v962, 0
        %v1013 = vsub.s32 0, %v962
        %v1014 = vsel %vm1012, %v1013, %v962
        %v1015 = vshrl.u32 %v1014, 4
        %v1016 = vand.u32 %v1014, 15
        %v1017 = vsub.s32 0, %v1016
        %v1018 = vsel %vm1012, %v1017, %v1016
        %vm1019 = vcmp.lt.s32.totalorder %v963, 0
        %v1020 = vsub.s32 0, %v963
        %v1021 = vsel %vm1019, %v1020, %v963
        %v1022 = vshrl.u32 %v1021, 4
        %v1023 = vand.u32 %v1021, 15
        %v1024 = vsub.s32 0, %v1023
        %v1025 = vsel %vm1019, %v1024, %v1023
        %vm1026 = vcmp.lt.s32.totalorder %v964, 0
        %v1027 = vsub.s32 0, %v964
        %v1028 = vsel %vm1026, %v1027, %v964
        %v1029 = vshrl.u32 %v1028, 4
        %v1030 = vand.u32 %v1028, 15
        %v1031 = vsub.s32 0, %v1030
        %v1032 = vsel %vm1026, %v1031, %v1030
        %vm1033 = vcmp.lt.s32.totalorder %v965, 0
        %v1034 = vsub.s32 0, %v965
        %v1035 = vsel %vm1033, %v1034, %v965
        %v1036 = vshrl.u32 %v1035, 4
        %v1037 = vand.u32 %v1035, 15
        %v1038 = vsub.s32 0, %v1037
        %v1039 = vsel %vm1033, %v1038, %v1037
        %vm1040 = vcmp.lt.s32.totalorder %v966, 0
        %v1041 = vsub.s32 0, %v966
        %v1042 = vsel %vm1040, %v1041, %v966
        %v1043 = vshrl.u32 %v1042, 4
        %v1044 = vand.u32 %v1042, 15
        %v1045 = vsub.s32 0, %v1044
        %v1046 = vsel %vm1040, %v1045, %v1044
        %vm1047 = vcmp.lt.s32.totalorder %v967, 0
        %v1048 = vsub.s32 0, %v967
        %v1049 = vsel %vm1047, %v1048, %v967
        %v1050 = vshrl.u32 %v1049, 4
        %v1051 = vand.u32 %v1049, 15
        %v1052 = vsub.s32 0, %v1051
        %v1053 = vsel %vm1047, %v1052, %v1051
        %vm1054 = vcmp.lt.s32.totalorder %v968, 0
        %v1055 = vsub.s32 0, %v968
        %v1056 = vsel %vm1054, %v1055, %v968
        %v1057 = vshrl.u32 %v1056, 4
        %v1058 = vand.u32 %v1056, 15
        %v1059 = vsub.s32 0, %v1058
        %v1060 = vsel %vm1054, %v1059, %v1058
        %vm1061 = vcmp.lt.s32.totalorder %v969, 0
        %v1062 = vsub.s32 0, %v969
        %v1063 = vsel %vm1061, %v1062, %v969
        %v1064 = vshrl.u32 %v1063, 4
        %v1065 = vand.u32 %v1063, 15
        %v1066 = vsub.s32 0, %v1065
        %v1067 = vsel %vm1061, %v1066, %v1065
        %vm1068 = vcmp.lt.s32.totalorder %v970, 0
        %v1069 = vsub.s32 0, %v970
        %v1070 = vsel %vm1068, %v1069, %v970
        %v1071 = vshrl.u32 %v1070, 4
        %v1072 = vand.u32 %v1070, 15
        %v1073 = vsub.s32 0, %v1072
        %v1074 = vsel %vm1068, %v1073, %v1072
        %vm1075 = vcmp.lt.s32.totalorder %v971, 0
        %v1076 = vsub.s32 0, %v971
        %v1077 = vsel %vm1075, %v1076, %v971
        %v1078 = vshrl.u32 %v1077, 4
        %v1079 = vand.u32 %v1077, 15
        %v1080 = vsub.s32 0, %v1079
        %v1081 = vsel %vm1075, %v1080, %v1079
        %vm1082 = vcmp.lt.s32.totalorder %v972, 0
        %v1083 = vsub.s32 0, %v972
        %v1084 = vsel %vm1082, %v1083, %v972
        %v1085 = vshrl.u32 %v1084, 4
        %v1086 = vand.u32 %v1084, 15
        %v1087 = vsub.s32 0, %v1086
        %v1088 = vsel %vm1082, %v1087, %v1086
        %vm1089 = vcmp.lt.s32.totalorder %v973, 0
        %v1090 = vsub.s32 0, %v973
        %v1091 = vsel %vm1089, %v1090, %v973
        %v1092 = vshrl.u32 %v1091, 4
        %v1093 = vand.u32 %v1091, 15
        %v1094 = vsub.s32 0, %v1093
        %v1095 = vsel %vm1089, %v1094, %v1093
        %vm1096 = vcmp.lt.s32.totalorder %v974, 0
        %v1097 = vsub.s32 0, %v974
        %v1098 = vsel %vm1096, %v1097, %v974
        %v1099 = vshrl.u32 %v1098, 4
        %v1100 = vand.u32 %v1098, 15
        %v1101 = vsub.s32 0, %v1100
        %v1102 = vsel %vm1096, %v1101, %v1100
        %vm1103 = vcmp.lt.s32.totalorder %v975, 0
        %v1104 = vsub.s32 0, %v975
        %v1105 = vsel %vm1103, %v1104, %v975
        %v1106 = vshrl.u32 %v1105, 4
        %v1107 = vand.u32 %v1105, 15
        %v1108 = vsub.s32 0, %v1107
        %v1109 = vsel %vm1103, %v1108, %v1107
        %vm1110 = vcmp.lt.s32.totalorder %v976, 0
        %v1111 = vsub.s32 0, %v976
        %v1112 = vsel %vm1110, %v1111, %v976
        %v1113 = vshrl.u32 %v1112, 4
        %v1114 = vand.u32 %v1112, 15
        %v1115 = vsub.s32 0, %v1114
        %v1116 = vsel %vm1110, %v1115, %v1114
        %vm1117 = vcmp.lt.s32.totalorder %v977, 0
        %v1118 = vsub.s32 0, %v977
        %v1119 = vsel %vm1117, %v1118, %v977
        %v1120 = vshrl.u32 %v1119, 4
        %v1121 = vand.u32 %v1119, 15
        %v1122 = vsub.s32 0, %v1121
        %v1123 = vsel %vm1117, %v1122, %v1121
        %vm1124 = vcmp.lt.s32.totalorder %v978, 0
        %v1125 = vsub.s32 0, %v978
        %v1126 = vsel %vm1124, %v1125, %v978
        %v1127 = vshrl.u32 %v1126, 4
        %v1128 = vand.u32 %v1126, 15
        %v1129 = vsub.s32 0, %v1128
        %v1130 = vsel %vm1124, %v1129, %v1128
        %vm1131 = vcmp.lt.s32.totalorder %v979, 0
        %v1132 = vsub.s32 0, %v979
        %v1133 = vsel %vm1131, %v1132, %v979
        %v1134 = vshrl.u32 %v1133, 4
        %v1135 = vand.u32 %v1133, 15
        %v1136 = vsub.s32 0, %v1135
        %v1137 = vsel %vm1131, %v1136, %v1135
        %vm1138 = vcmp.lt.s32.totalorder %v980, 0
        %v1139 = vsub.s32 0, %v980
        %v1140 = vsel %vm1138, %v1139, %v980
        %v1141 = vshrl.u32 %v1140, 4
        %v1142 = vand.u32 %v1140, 15
        %v1143 = vsub.s32 0, %v1142
        %v1144 = vsel %vm1138, %v1143, %v1142
        %vm1145 = vcmp.lt.s32.totalorder %v981, 0
        %v1146 = vsub.s32 0, %v981
        %v1147 = vsel %vm1145, %v1146, %v981
        %v1148 = vshrl.u32 %v1147, 4
        %v1149 = vand.u32 %v1147, 15
        %v1150 = vsub.s32 0, %v1149
        %v1151 = vsel %vm1145, %v1150, %v1149
        %vm1152 = vcmp.lt.s32.totalorder %v982, 0
        %v1153 = vsub.s32 0, %v982
        %v1154 = vsel %vm1152, %v1153, %v982
        %v1155 = vshrl.u32 %v1154, 4
        %v1156 = vand.u32 %v1154, 15
        %v1157 = vsub.s32 0, %v1156
        %v1158 = vsel %vm1152, %v1157, %v1156
        %vm1159 = vcmp.lt.s32.totalorder %v983, 0
        %v1160 = vsub.s32 0, %v983
        %v1161 = vsel %vm1159, %v1160, %v983
        %v1162 = vshrl.u32 %v1161, 4
        %v1163 = vand.u32 %v1161, 15
        %v1164 = vsub.s32 0, %v1163
        %v1165 = vsel %vm1159, %v1164, %v1163
        %vm1166 = vcmp.lt.s32.totalorder %v984, 0
        %v1167 = vsub.s32 0, %v984
        %v1168 = vsel %vm1166, %v1167, %v984
        %v1169 = vshrl.u32 %v1168, 4
        %v1170 = vand.u32 %v1168, 15
        %v1171 = vsub.s32 0, %v1170
        %v1172 = vsel %vm1166, %v1171, %v1170
        %vm1173 = vcmp.lt.s32.totalorder %v985, 0
        %v1174 = vsub.s32 0, %v985
        %v1175 = vsel %vm1173, %v1174, %v985
        %v1176 = vshrl.u32 %v1175, 4
        %v1177 = vand.u32 %v1175, 15
        %v1178 = vsub.s32 0, %v1177
        %v1179 = vsel %vm1173, %v1178, %v1177
        %vm1180 = vcmp.lt.s32.totalorder %v986, 0
        %v1181 = vsub.s32 0, %v986
        %v1182 = vsel %vm1180, %v1181, %v986
        %v1183 = vshrl.u32 %v1182, 4
        %v1184 = vand.u32 %v1182, 15
        %v1185 = vsub.s32 0, %v1184
        %v1186 = vsel %vm1180, %v1185, %v1184
        %vm1187 = vcmp.lt.s32.totalorder %v987, 0
        %v1188 = vsub.s32 0, %v987
        %v1189 = vsel %vm1187, %v1188, %v987
        %v1190 = vshrl.u32 %v1189, 4
        %v1191 = vand.u32 %v1189, 15
        %v1192 = vsub.s32 0, %v1191
        %v1193 = vsel %vm1187, %v1192, %v1191
        %vm1194 = vcmp.lt.s32.totalorder %v988, 0
        %v1195 = vsub.s32 0, %v988
        %v1196 = vsel %vm1194, %v1195, %v988
        %v1197 = vshrl.u32 %v1196, 4
        %v1198 = vand.u32 %v1196, 15
        %v1199 = vsub.s32 0, %v1198
        %v1200 = vsel %vm1194, %v1199, %v1198
        %vm1201 = vcmp.lt.s32.totalorder %v989, 0
        %v1202 = vsub.s32 0, %v989
        %v1203 = vsel %vm1201, %v1202, %v989
        %v1204 = vshrl.u32 %v1203, 4
        %v1205 = vand.u32 %v1203, 15
        %v1206 = vsub.s32 0, %v1205
        %v1207 = vsel %vm1201, %v1206, %v1205
        %vm1208 = vcmp.lt.s32.totalorder %v990, 0
        %v1209 = vsub.s32 0, %v990
        %v1210 = vsel %vm1208, %v1209, %v990
        %v1211 = vshrl.u32 %v1210, 4
        %v1212 = vand.u32 %v1210, 15
        %v1213 = vsub.s32 0, %v1212
        %v1214 = vsel %vm1208, %v1213, %v1212
        %vm1215 = vcmp.ne.s32.totalorder %v997, 0
        %vm1216 = vcmp.ne.s32.totalorder %v1004, 0
        %vm1217 = vcmp.ne.s32.totalorder %v1011, 0
        %vm1218 = vcmp.ne.s32.totalorder %v1018, 0
        %vm1219 = vcmp.ne.s32.totalorder %v1025, 0
        %vm1220 = vcmp.ne.s32.totalorder %v1032, 0
        %vm1221 = vcmp.ne.s32.totalorder %v1039, 0
        %vm1222 = vcmp.ne.s32.totalorder %v1046, 0
        %vm1223 = vcmp.ne.s32.totalorder %v1053, 0
        %vm1224 = vcmp.ne.s32.totalorder %v1060, 0
        %vm1225 = vcmp.ne.s32.totalorder %v1067, 0
        %vm1226 = vcmp.ne.s32.totalorder %v1074, 0
        %vm1227 = vcmp.ne.s32.totalorder %v1081, 0
        %vm1228 = vcmp.ne.s32.totalorder %v1088, 0
        %vm1229 = vcmp.ne.s32.totalorder %v1095, 0
        %vm1230 = vcmp.ne.s32.totalorder %v1102, 0
        %vm1231 = vcmp.ne.s32.totalorder %v1109, 0
        %vm1232 = vcmp.ne.s32.totalorder %v1116, 0
        %vm1233 = vcmp.ne.s32.totalorder %v1123, 0
        %vm1234 = vcmp.ne.s32.totalorder %v1130, 0
        %vm1235 = vcmp.ne.s32.totalorder %v1137, 0
        %vm1236 = vcmp.ne.s32.totalorder %v1144, 0
        %vm1237 = vcmp.ne.s32.totalorder %v1151, 0
        %vm1238 = vcmp.ne.s32.totalorder %v1158, 0
        %vm1239 = vcmp.ne.s32.totalorder %v1165, 0
        %vm1240 = vcmp.ne.s32.totalorder %v1172, 0
        %vm1241 = vcmp.ne.s32.totalorder %v1179, 0
        %vm1242 = vcmp.ne.s32.totalorder %v1186, 0
        %vm1243 = vcmp.ne.s32.totalorder %v1193, 0
        %vm1244 = vcmp.ne.s32.totalorder %v1200, 0
        %vm1245 = vcmp.ne.s32.totalorder %v1207, 0
        %vm1246 = vcmp.ne.s32.totalorder %v1214, 0
        %vm1247 = vcmp.lt.s32.totalorder %v997, 0
        %vm1248 = vcmp.lt.s32.totalorder %v1004, 0
        %vm1249 = vcmp.lt.s32.totalorder %v1011, 0
        %vm1250 = vcmp.lt.s32.totalorder %v1018, 0
        %vm1251 = vcmp.lt.s32.totalorder %v1025, 0
        %vm1252 = vcmp.lt.s32.totalorder %v1032, 0
        %vm1253 = vcmp.lt.s32.totalorder %v1039, 0
        %vm1254 = vcmp.lt.s32.totalorder %v1046, 0
        %vm1255 = vcmp.lt.s32.totalorder %v1053, 0
        %vm1256 = vcmp.lt.s32.totalorder %v1060, 0
        %vm1257 = vcmp.lt.s32.totalorder %v1067, 0
        %vm1258 = vcmp.lt.s32.totalorder %v1074, 0
        %vm1259 = vcmp.lt.s32.totalorder %v1081, 0
        %vm1260 = vcmp.lt.s32.totalorder %v1088, 0
        %vm1261 = vcmp.lt.s32.totalorder %v1095, 0
        %vm1262 = vcmp.lt.s32.totalorder %v1102, 0
        %vm1263 = vcmp.lt.s32.totalorder %v1109, 0
        %vm1264 = vcmp.lt.s32.totalorder %v1116, 0
        %vm1265 = vcmp.lt.s32.totalorder %v1123, 0
        %vm1266 = vcmp.lt.s32.totalorder %v1130, 0
        %vm1267 = vcmp.lt.s32.totalorder %v1137, 0
        %vm1268 = vcmp.lt.s32.totalorder %v1144, 0
        %vm1269 = vcmp.lt.s32.totalorder %v1151, 0
        %vm1270 = vcmp.lt.s32.totalorder %v1158, 0
        %vm1271 = vcmp.lt.s32.totalorder %v1165, 0
        %vm1272 = vcmp.lt.s32.totalorder %v1172, 0
        %vm1273 = vcmp.lt.s32.totalorder %v1179, 0
        %vm1274 = vcmp.lt.s32.totalorder %v1186, 0
        %vm1275 = vcmp.lt.s32.totalorder %v1193, 0
        %vm1276 = vcmp.lt.s32.totalorder %v1200, 0
        %vm1277 = vcmp.lt.s32.totalorder %v1207, 0
        %vm1278 = vcmp.lt.s32.totalorder %v1214, 0
        %vm1279 = vmand %vm1247, %vm1215
        %vm1280 = vmand %vm1248, %vm1216
        %vm1281 = vmand %vm1249, %vm1217
        %vm1282 = vmand %vm1250, %vm1218
        %vm1283 = vmand %vm1251, %vm1219
        %vm1284 = vmand %vm1252, %vm1220
        %vm1285 = vmand %vm1253, %vm1221
        %vm1286 = vmand %vm1254, %vm1222
        %vm1287 = vmand %vm1255, %vm1223
        %vm1288 = vmand %vm1256, %vm1224
        %vm1289 = vmand %vm1257, %vm1225
        %vm1290 = vmand %vm1258, %vm1226
        %vm1291 = vmand %vm1259, %vm1227
        %vm1292 = vmand %vm1260, %vm1228
        %vm1293 = vmand %vm1261, %vm1229
        %vm1294 = vmand %vm1262, %vm1230
        %vm1295 = vmand %vm1263, %vm1231
        %vm1296 = vmand %vm1264, %vm1232
        %vm1297 = vmand %vm1265, %vm1233
        %vm1298 = vmand %vm1266, %vm1234
        %vm1299 = vmand %vm1267, %vm1235
        %vm1300 = vmand %vm1268, %vm1236
        %vm1301 = vmand %vm1269, %vm1237
        %vm1302 = vmand %vm1270, %vm1238
        %vm1303 = vmand %vm1271, %vm1239
        %vm1304 = vmand %vm1272, %vm1240
        %vm1305 = vmand %vm1273, %vm1241
        %vm1306 = vmand %vm1274, %vm1242
        %vm1307 = vmand %vm1275, %vm1243
        %vm1308 = vmand %vm1276, %vm1244
        %vm1309 = vmand %vm1277, %vm1245
        %vm1310 = vmand %vm1278, %vm1246
        %v1311 = vadd.s32 %v997, 16
        %v1312 = vadd.s32 %v1004, 16
        %v1313 = vadd.s32 %v1011, 16
        %v1314 = vadd.s32 %v1018, 16
        %v1315 = vadd.s32 %v1025, 16
        %v1316 = vadd.s32 %v1032, 16
        %v1317 = vadd.s32 %v1039, 16
        %v1318 = vadd.s32 %v1046, 16
        %v1319 = vadd.s32 %v1053, 16
        %v1320 = vadd.s32 %v1060, 16
        %v1321 = vadd.s32 %v1067, 16
        %v1322 = vadd.s32 %v1074, 16
        %v1323 = vadd.s32 %v1081, 16
        %v1324 = vadd.s32 %v1088, 16
        %v1325 = vadd.s32 %v1095, 16
        %v1326 = vadd.s32 %v1102, 16
        %v1327 = vadd.s32 %v1109, 16
        %v1328 = vadd.s32 %v1116, 16
        %v1329 = vadd.s32 %v1123, 16
        %v1330 = vadd.s32 %v1130, 16
        %v1331 = vadd.s32 %v1137, 16
        %v1332 = vadd.s32 %v1144, 16
        %v1333 = vadd.s32 %v1151, 16
        %v1334 = vadd.s32 %v1158, 16
        %v1335 = vadd.s32 %v1165, 16
        %v1336 = vadd.s32 %v1172, 16
        %v1337 = vadd.s32 %v1179, 16
        %v1338 = vadd.s32 %v1186, 16
        %v1339 = vadd.s32 %v1193, 16
        %v1340 = vadd.s32 %v1200, 16
        %v1341 = vadd.s32 %v1207, 16
        %v1342 = vadd.s32 %v1214, 16
        %v1343 = vsel %vm1279, %v1311, %v997
        %v1344 = vsel %vm1280, %v1312, %v1004
        %v1345 = vsel %vm1281, %v1313, %v1011
        %v1346 = vsel %vm1282, %v1314, %v1018
        %v1347 = vsel %vm1283, %v1315, %v1025
        %v1348 = vsel %vm1284, %v1316, %v1032
        %v1349 = vsel %vm1285, %v1317, %v1039
        %v1350 = vsel %vm1286, %v1318, %v1046
        %v1351 = vsel %vm1287, %v1319, %v1053
        %v1352 = vsel %vm1288, %v1320, %v1060
        %v1353 = vsel %vm1289, %v1321, %v1067
        %v1354 = vsel %vm1290, %v1322, %v1074
        %v1355 = vsel %vm1291, %v1323, %v1081
        %v1356 = vsel %vm1292, %v1324, %v1088
        %v1357 = vsel %vm1293, %v1325, %v1095
        %v1358 = vsel %vm1294, %v1326, %v1102
        %v1359 = vsel %vm1295, %v1327, %v1109
        %v1360 = vsel %vm1296, %v1328, %v1116
        %v1361 = vsel %vm1297, %v1329, %v1123
        %v1362 = vsel %vm1298, %v1330, %v1130
        %v1363 = vsel %vm1299, %v1331, %v1137
        %v1364 = vsel %vm1300, %v1332, %v1144
        %v1365 = vsel %vm1301, %v1333, %v1151
        %v1366 = vsel %vm1302, %v1334, %v1158
        %v1367 = vsel %vm1303, %v1335, %v1165
        %v1368 = vsel %vm1304, %v1336, %v1172
        %v1369 = vsel %vm1305, %v1337, %v1179
        %v1370 = vsel %vm1306, %v1338, %v1186
        %v1371 = vsel %vm1307, %v1339, %v1193
        %v1372 = vsel %vm1308, %v1340, %v1200
        %v1373 = vsel %vm1309, %v1341, %v1207
        %v1374 = vsel %vm1310, %v1342, %v1214
        %vm1375 = vcmp.eq.s32.totalorder %v1343, 0
        %vm1376 = vcmp.eq.s32.totalorder %v1344, 0
        %vm1377 = vcmp.eq.s32.totalorder %v1345, 0
        %vm1378 = vcmp.eq.s32.totalorder %v1346, 0
        %vm1379 = vcmp.eq.s32.totalorder %v1347, 0
        %vm1380 = vcmp.eq.s32.totalorder %v1348, 0
        %vm1381 = vcmp.eq.s32.totalorder %v1349, 0
        %vm1382 = vcmp.eq.s32.totalorder %v1350, 0
        %vm1383 = vcmp.eq.s32.totalorder %v1351, 0
        %vm1384 = vcmp.eq.s32.totalorder %v1352, 0
        %vm1385 = vcmp.eq.s32.totalorder %v1353, 0
        %vm1386 = vcmp.eq.s32.totalorder %v1354, 0
        %vm1387 = vcmp.eq.s32.totalorder %v1355, 0
        %vm1388 = vcmp.eq.s32.totalorder %v1356, 0
        %vm1389 = vcmp.eq.s32.totalorder %v1357, 0
        %vm1390 = vcmp.eq.s32.totalorder %v1358, 0
        %vm1391 = vcmp.eq.s32.totalorder %v1359, 0
        %vm1392 = vcmp.eq.s32.totalorder %v1360, 0
        %vm1393 = vcmp.eq.s32.totalorder %v1361, 0
        %vm1394 = vcmp.eq.s32.totalorder %v1362, 0
        %vm1395 = vcmp.eq.s32.totalorder %v1363, 0
        %vm1396 = vcmp.eq.s32.totalorder %v1364, 0
        %vm1397 = vcmp.eq.s32.totalorder %v1365, 0
        %vm1398 = vcmp.eq.s32.totalorder %v1366, 0
        %vm1399 = vcmp.eq.s32.totalorder %v1367, 0
        %vm1400 = vcmp.eq.s32.totalorder %v1368, 0
        %vm1401 = vcmp.eq.s32.totalorder %v1369, 0
        %vm1402 = vcmp.eq.s32.totalorder %v1370, 0
        %vm1403 = vcmp.eq.s32.totalorder %v1371, 0
        %vm1404 = vcmp.eq.s32.totalorder %v1372, 0
        %vm1405 = vcmp.eq.s32.totalorder %v1373, 0
        %vm1406 = vcmp.eq.s32.totalorder %v1374, 0
        %vm1407 = vmpackc.low %vm1375, %vm1375
        %vm1408 = vmpackc.low %vm1376, %vm1376
        %vm1409 = vmpackc.low %vm1377, %vm1377
        %vm1410 = vmpackc.low %vm1378, %vm1378
        %vm1411 = vmpackc.low %vm1379, %vm1379
        %vm1412 = vmpackc.low %vm1380, %vm1380
        %vm1413 = vmpackc.low %vm1381, %vm1381
        %vm1414 = vmpackc.low %vm1382, %vm1382
        %vm1415 = vmpackc.low %vm1383, %vm1383
        %vm1416 = vmpackc.low %vm1384, %vm1384
        %vm1417 = vmpackc.low %vm1385, %vm1385
        %vm1418 = vmpackc.low %vm1386, %vm1386
        %vm1419 = vmpackc.low %vm1387, %vm1387
        %vm1420 = vmpackc.low %vm1388, %vm1388
        %vm1421 = vmpackc.low %vm1389, %vm1389
        %vm1422 = vmpackc.low %vm1390, %vm1390
        %vm1423 = vmpackc.low %vm1391, %vm1391
        %vm1424 = vmpackc.low %vm1392, %vm1392
        %vm1425 = vmpackc.low %vm1393, %vm1393
        %vm1426 = vmpackc.low %vm1394, %vm1394
        %vm1427 = vmpackc.low %vm1395, %vm1395
        %vm1428 = vmpackc.low %vm1396, %vm1396
        %vm1429 = vmpackc.low %vm1397, %vm1397
        %vm1430 = vmpackc.low %vm1398, %vm1398
        %vm1431 = vmpackc.low %vm1399, %vm1399
        %vm1432 = vmpackc.low %vm1400, %vm1400
        %vm1433 = vmpackc.low %vm1401, %vm1401
        %vm1434 = vmpackc.low %vm1402, %vm1402
        %vm1435 = vmpackc.low %vm1403, %vm1403
        %vm1436 = vmpackc.low %vm1404, %vm1404
        %vm1437 = vmpackc.low %vm1405, %vm1405
        %vm1438 = vmpackc.low %vm1406, %vm1406
        %v1439 = vsel %vm1407, 65537, 0
        %v1440 = vsel %vm1408, 65537, 0
        %v1441 = vsel %vm1409, 65537, 0
        %v1442 = vsel %vm1410, 65537, 0
        %v1443 = vsel %vm1411, 65537, 0
        %v1444 = vsel %vm1412, 65537, 0
        %v1445 = vsel %vm1413, 65537, 0
        %v1446 = vsel %vm1414, 65537, 0
        %v1447 = vsel %vm1415, 65537, 0
        %v1448 = vsel %vm1416, 65537, 0
        %v1449 = vsel %vm1417, 65537, 0
        %v1450 = vsel %vm1418, 65537, 0
        %v1451 = vsel %vm1419, 65537, 0
        %v1452 = vsel %vm1420, 65537, 0
        %v1453 = vsel %vm1421, 65537, 0
        %v1454 = vsel %vm1422, 65537, 0
        %v1455 = vsel %vm1423, 65537, 0
        %v1456 = vsel %vm1424, 65537, 0
        %v1457 = vsel %vm1425, 65537, 0
        %v1458 = vsel %vm1426, 65537, 0
        %v1459 = vsel %vm1427, 65537, 0
        %v1460 = vsel %vm1428, 65537, 0
        %v1461 = vsel %vm1429, 65537, 0
        %v1462 = vsel %vm1430, 65537, 0
        %v1463 = vsel %vm1431, 65537, 0
        %v1464 = vsel %vm1432, 65537, 0
        %v1465 = vsel %vm1433, 65537, 0
        %v1466 = vsel %vm1434, 65537, 0
        %v1467 = vsel %vm1435, 65537, 0
        %v1468 = vsel %vm1436, 65537, 0
        %v1469 = vsel %vm1437, 65537, 0
        %v1470 = vsel %vm1438, 65537, 0
        %v1471 = vunpack.c.l.b16 %v1439
        %v1472 = vunpack.c.l.b16 %v1440
        %v1473 = vunpack.c.l.b16 %v1441
        %v1474 = vunpack.c.l.b16 %v1442
        %v1475 = vunpack.c.l.b16 %v1443
        %v1476 = vunpack.c.l.b16 %v1444
        %v1477 = vunpack.c.l.b16 %v1445
        %v1478 = vunpack.c.l.b16 %v1446
        %v1479 = vunpack.c.l.b16 %v1447
        %v1480 = vunpack.c.l.b16 %v1448
        %v1481 = vunpack.c.l.b16 %v1449
        %v1482 = vunpack.c.l.b16 %v1450
        %v1483 = vunpack.c.l.b16 %v1451
        %v1484 = vunpack.c.l.b16 %v1452
        %v1485 = vunpack.c.l.b16 %v1453
        %v1486 = vunpack.c.l.b16 %v1454
        %v1487 = vunpack.c.l.b16 %v1455
        %v1488 = vunpack.c.l.b16 %v1456
        %v1489 = vunpack.c.l.b16 %v1457
        %v1490 = vunpack.c.l.b16 %v1458
        %v1491 = vunpack.c.l.b16 %v1459
        %v1492 = vunpack.c.l.b16 %v1460
        %v1493 = vunpack.c.l.b16 %v1461
        %v1494 = vunpack.c.l.b16 %v1462
        %v1495 = vunpack.c.l.b16 %v1463
        %v1496 = vunpack.c.l.b16 %v1464
        %v1497 = vunpack.c.l.b16 %v1465
        %v1498 = vunpack.c.l.b16 %v1466
        %v1499 = vunpack.c.l.b16 %v1467
        %v1500 = vunpack.c.l.b16 %v1468
        %v1501 = vunpack.c.l.b16 %v1469
        %v1502 = vunpack.c.l.b16 %v1470
        %v1503 = vpack.c.b16 %v1472, %v1471
        %v1504 = vpack.c.b16 %v1474, %v1473
        %v1505 = vpack.c.b16 %v1476, %v1475
        %v1506 = vpack.c.b16 %v1478, %v1477
        %v1507 = vpack.c.b16 %v1480, %v1479
        %v1508 = vpack.c.b16 %v1482, %v1481
        %v1509 = vpack.c.b16 %v1484, %v1483
        %v1510 = vpack.c.b16 %v1486, %v1485
        %v1511 = vpack.c.b16 %v1488, %v1487
        %v1512 = vpack.c.b16 %v1490, %v1489
        %v1513 = vpack.c.b16 %v1492, %v1491
        %v1514 = vpack.c.b16 %v1494, %v1493
        %v1515 = vpack.c.b16 %v1496, %v1495
        %v1516 = vpack.c.b16 %v1498, %v1497
        %v1517 = vpack.c.b16 %v1500, %v1499
        %v1518 = vpack.c.b16 %v1502, %v1501
        %vm1519 = vsmask.f32 3328
        %v1521 = vshrl.u32 %v1503, 16
        %v1523 = vrot.slane %v1521, 4
        %v1524 = vshll.u32 %v1503, 16
        %v1526 = vrot.slane %v1524, 5
        %v1527 = vor.u32 %v1523, %v1526
        %v1529 = vshrl.u32 %v1504, 16
        %v1531 = vrot.slane %v1529, 4
        %v1532 = vshll.u32 %v1504, 16
        %v1534 = vrot.slane %v1532, 5
        %v1535 = vor.u32 %v1531, %v1534
        %v1536 = vsel %vm1519, %v1527, %v1535
        %v1538 = vshrl.u32 %v1505, 16
        %v1540 = vrot.slane %v1538, 4
        %v1541 = vshll.u32 %v1505, 16
        %v1543 = vrot.slane %v1541, 5
        %v1544 = vor.u32 %v1540, %v1543
        %v1545 = vsel %vm1519, %v1535, %v1544
        %v1547 = vshrl.u32 %v1506, 16
        %v1549 = vrot.slane %v1547, 4
        %v1550 = vshll.u32 %v1506, 16
        %v1552 = vrot.slane %v1550, 5
        %v1553 = vor.u32 %v1549, %v1552
        %v1554 = vsel %vm1519, %v1544, %v1553
        %v1556 = vshrl.u32 %v1507, 16
        %v1558 = vrot.slane %v1556, 4
        %v1559 = vshll.u32 %v1507, 16
        %v1561 = vrot.slane %v1559, 5
        %v1562 = vor.u32 %v1558, %v1561
        %v1563 = vsel %vm1519, %v1553, %v1562
        %v1565 = vshrl.u32 %v1508, 16
        %v1567 = vrot.slane %v1565, 4
        %v1568 = vshll.u32 %v1508, 16
        %v1570 = vrot.slane %v1568, 5
        %v1571 = vor.u32 %v1567, %v1570
        %v1572 = vsel %vm1519, %v1562, %v1571
        %v1574 = vshrl.u32 %v1509, 16
        %v1576 = vrot.slane %v1574, 4
        %v1577 = vshll.u32 %v1509, 16
        %v1579 = vrot.slane %v1577, 5
        %v1580 = vor.u32 %v1576, %v1579
        %v1581 = vsel %vm1519, %v1571, %v1580
        %v1583 = vshrl.u32 %v1510, 16
        %v1585 = vrot.slane %v1583, 4
        %v1586 = vshll.u32 %v1510, 16
        %v1588 = vrot.slane %v1586, 5
        %v1589 = vor.u32 %v1585, %v1588
        %v1590 = vsel %vm1519, %v1580, %v1589
        %v1592 = vshrl.u32 %v1511, 16
        %v1594 = vrot.slane %v1592, 4
        %v1595 = vshll.u32 %v1511, 16
        %v1597 = vrot.slane %v1595, 5
        %v1598 = vor.u32 %v1594, %v1597
        %v1599 = vsel %vm1519, %v1589, %v1598
        %v1601 = vshrl.u32 %v1512, 16
        %v1603 = vrot.slane %v1601, 4
        %v1604 = vshll.u32 %v1512, 16
        %v1606 = vrot.slane %v1604, 5
        %v1607 = vor.u32 %v1603, %v1606
        %v1608 = vsel %vm1519, %v1598, %v1607
        %v1610 = vshrl.u32 %v1513, 16
        %v1612 = vrot.slane %v1610, 4
        %v1613 = vshll.u32 %v1513, 16
        %v1615 = vrot.slane %v1613, 5
        %v1616 = vor.u32 %v1612, %v1615
        %v1617 = vsel %vm1519, %v1607, %v1616
        %v1619 = vshrl.u32 %v1514, 16
        %v1621 = vrot.slane %v1619, 4
        %v1622 = vshll.u32 %v1514, 16
        %v1624 = vrot.slane %v1622, 5
        %v1625 = vor.u32 %v1621, %v1624
        %v1626 = vsel %vm1519, %v1616, %v1625
        %v1628 = vshrl.u32 %v1515, 16
        %v1630 = vrot.slane %v1628, 4
        %v1631 = vshll.u32 %v1515, 16
        %v1633 = vrot.slane %v1631, 5
        %v1634 = vor.u32 %v1630, %v1633
        %v1635 = vsel %vm1519, %v1625, %v1634
        %v1637 = vshrl.u32 %v1516, 16
        %v1639 = vrot.slane %v1637, 4
        %v1640 = vshll.u32 %v1516, 16
        %v1642 = vrot.slane %v1640, 5
        %v1643 = vor.u32 %v1639, %v1642
        %v1644 = vsel %vm1519, %v1634, %v1643
        %v1646 = vshrl.u32 %v1517, 16
        %v1648 = vrot.slane %v1646, 4
        %v1649 = vshll.u32 %v1517, 16
        %v1651 = vrot.slane %v1649, 5
        %v1652 = vor.u32 %v1648, %v1651
        %v1653 = vsel %vm1519, %v1643, %v1652
        %v1655 = vshrl.u32 %v1518, 16
        %v1657 = vrot.slane %v1655, 4
        %v1658 = vshll.u32 %v1518, 16
        %v1660 = vrot.slane %v1658, 5
        %v1661 = vor.u32 %v1657, %v1660
        %v1662 = vsel %vm1519, %v1652, %v1661
        %vm1663 = vcmp.ne.s16.totalorder %v1536, 0
        %vm1664 = vcmp.ne.s16.totalorder %v1545, 0
        %vm1665 = vcmp.ne.s16.totalorder %v1554, 0
        %vm1666 = vcmp.ne.s16.totalorder %v1563, 0
        %vm1667 = vcmp.ne.s16.totalorder %v1572, 0
        %vm1668 = vcmp.ne.s16.totalorder %v1581, 0
        %vm1669 = vcmp.ne.s16.totalorder %v1590, 0
        %vm1670 = vcmp.ne.s16.totalorder %v1599, 0
        %vm1671 = vcmp.ne.s16.totalorder %v1608, 0
        %vm1672 = vcmp.ne.s16.totalorder %v1617, 0
        %vm1673 = vcmp.ne.s16.totalorder %v1626, 0
        %vm1674 = vcmp.ne.s16.totalorder %v1635, 0
        %vm1675 = vcmp.ne.s16.totalorder %v1644, 0
        %vm1676 = vcmp.ne.s16.totalorder %v1653, 0
        %vm1677 = vcmp.ne.s16.totalorder %v1662, 0
        %vm1678 = vcmp.ne.s16.totalorder %v1661, 0
        %v1679 = vsel %vm1663, 0, %v953
        %v1680 = vsel %vm1664, 0, %v906
        %v1681 = vsel %vm1665, 0, %v908
        %v1682 = vsel %vm1666, 0, %v910
        %v1683 = vsel %vm1667, 0, %v912
        %v1684 = vsel %vm1668, 0, %v914
        %v1685 = vsel %vm1669, 0, %v916
        %v1686 = vsel %vm1670, 0, %v918
        %v1687 = vsel %vm1671, 0, %v920
        %v1688 = vsel %vm1672, 0, %v922
        %v1689 = vsel %vm1673, 0, %v924
        %v1690 = vsel %vm1674, 0, %v926
        %v1691 = vsel %vm1675, 0, %v928
        %v1692 = vsel %vm1676, 0, %v930
        %v1693 = vsel %vm1677, 0, %v932
        %v1694 = vsel %vm1678, 0, %v934
        %v1695 = vld [vmem:[#allocation8] sm:$0xf]
        %v1696 = vld [vmem:[#allocation8 + $0x4] sm:$0xf]
        %v1697 = vld [vmem:[#allocation8 + $0x8] sm:$0xf]
        %v1698 = vld [vmem:[#allocation8 + $0xc] sm:$0xf]
        %v1699 = vld [vmem:[#allocation8 + $0x10] sm:$0xf]
        %v1700 = vld [vmem:[#allocation8 + $0x14] sm:$0xf]
        %v1701 = vld [vmem:[#allocation8 + $0x18] sm:$0xf]
        %v1702 = vld [vmem:[#allocation8 + $0x1c] sm:$0xf]
        %v1703 = vld [vmem:[#allocation8 + $0x20] sm:$0xf]
        %v1704 = vld [vmem:[#allocation8 + $0x24] sm:$0xf]
        %v1705 = vld [vmem:[#allocation8 + $0x28] sm:$0xf]
        %v1706 = vld [vmem:[#allocation8 + $0x2c] sm:$0xf]
        %v1707 = vld [vmem:[#allocation8 + $0x30] sm:$0xf]
        %v1708 = vld [vmem:[#allocation8 + $0x34] sm:$0xf]
        %v1709 = vld [vmem:[#allocation8 + $0x38] sm:$0xf]
        %v1710 = vld [vmem:[#allocation8 + $0x3c] sm:$0xf]
        %v1711 = vld [vmem:[#allocation8 + $0x40] sm:$0xf]
        %v1712 = vld [vmem:[#allocation8 + $0x44] sm:$0xf]
        %v1713 = vld [vmem:[#allocation8 + $0x48] sm:$0xf]
        %v1714 = vld [vmem:[#allocation8 + $0x4c] sm:$0xf]
        %v1715 = vld [vmem:[#allocation8 + $0x50] sm:$0xf]
        %v1716 = vld [vmem:[#allocation8 + $0x54] sm:$0xf]
        %v1717 = vld [vmem:[#allocation8 + $0x58] sm:$0xf]
        %v1718 = vld [vmem:[#allocation8 + $0x5c] sm:$0xf]
        %v1719 = vld [vmem:[#allocation8 + $0x60] sm:$0xf]
        %v1720 = vld [vmem:[#allocation8 + $0x64] sm:$0xf]
        %v1721 = vld [vmem:[#allocation8 + $0x68] sm:$0xf]
        %v1722 = vld [vmem:[#allocation8 + $0x6c] sm:$0xf]
        %v1723 = vld [vmem:[#allocation8 + $0x70] sm:$0xf]
        %v1724 = vld [vmem:[#allocation8 + $0x74] sm:$0xf]
        %v1725 = vld [vmem:[#allocation8 + $0x78] sm:$0xf]
        %v1726 = vld [vmem:[#allocation8 + $0x7c] sm:$0xf]
        %v1729 = vrot.slane 0, 4
        %v1730 = vrot.slane %v953, 4
        %v1731 = vsel %vm903, %v1729, %v1730
        %v1732 = vrot.slane %v906, 4
        %v1733 = vsel %vm903, %v1730, %v1732
        %v1734 = vrot.slane %v908, 4
        %v1735 = vsel %vm903, %v1732, %v1734
        %v1736 = vrot.slane %v910, 4
        %v1737 = vsel %vm903, %v1734, %v1736
        %v1738 = vrot.slane %v912, 4
        %v1739 = vsel %vm903, %v1736, %v1738
        %v1740 = vrot.slane %v914, 4
        %v1741 = vsel %vm903, %v1738, %v1740
        %v1742 = vrot.slane %v916, 4
        %v1743 = vsel %vm903, %v1740, %v1742
        %v1744 = vrot.slane %v918, 4
        %v1745 = vsel %vm903, %v1742, %v1744
        %v1746 = vrot.slane %v920, 4
        %v1747 = vsel %vm903, %v1744, %v1746
        %v1748 = vrot.slane %v922, 4
        %v1749 = vsel %vm903, %v1746, %v1748
        %v1750 = vrot.slane %v924, 4
        %v1751 = vsel %vm903, %v1748, %v1750
        %v1752 = vrot.slane %v926, 4
        %v1753 = vsel %vm903, %v1750, %v1752
        %v1754 = vrot.slane %v928, 4
        %v1755 = vsel %vm903, %v1752, %v1754
        %v1756 = vrot.slane %v930, 4
        %v1757 = vsel %vm903, %v1754, %v1756
        %v1758 = vrot.slane %v932, 4
        %v1759 = vsel %vm903, %v1756, %v1758
        %v1760 = vrot.slane %v934, 4
        %v1761 = vsel %vm903, %v1758, %v1760
        %v1794 = vunpack.c.l.b16 %v1711
        %v1795 = vunpack.c.l.b16 %v1712
        %v1796 = vunpack.c.l.b16 %v1713
        %v1797 = vunpack.c.l.b16 %v1714
        %v1798 = vunpack.c.l.b16 %v1715
        %v1799 = vunpack.c.l.b16 %v1716
        %v1800 = vunpack.c.l.b16 %v1717
        %v1801 = vunpack.c.l.b16 %v1718
        %v1802 = vunpack.c.l.b16 %v1719
        %v1803 = vunpack.c.l.b16 %v1720
        %v1804 = vunpack.c.l.b16 %v1721
        %v1805 = vunpack.c.l.b16 %v1722
        %v1806 = vunpack.c.l.b16 %v1723
        %v1807 = vunpack.c.l.b16 %v1724
        %v1808 = vunpack.c.l.b16 %v1725
        %v1809 = vunpack.c.l.b16 %v1726
        %v1810 = vpack.c.b16 %v1795, %v1794
        %v1811 = vpack.c.b16 %v1797, %v1796
        %v1812 = vpack.c.b16 %v1799, %v1798
        %v1813 = vpack.c.b16 %v1801, %v1800
        %v1814 = vpack.c.b16 %v1803, %v1802
        %v1815 = vpack.c.b16 %v1805, %v1804
        %v1816 = vpack.c.b16 %v1807, %v1806
        %v1817 = vpack.c.b16 %v1809, %v1808
        %1826 = vmatprep.subr.bf16.mxu0 0
        %1827 = vmatpush1.bf16.msra.mxu0 %v1817
        %1828 = vmatprep.subr.bf16.mxu0 0
        %1829 = vmatpush1.bf16.msra.mxu0 %v1816
        %1830 = vmatprep.subr.bf16.mxu0 0
        %1831 = vmatpush1.bf16.msra.mxu0 %v1815
        %1832 = vmatprep.subr.bf16.mxu0 0
        %1833 = vmatpush1.bf16.msra.mxu0 %v1814
        %1834 = vmatprep.subr.bf16.mxu0 0
        %1835 = vmatpush1.bf16.msra.mxu0 %v1813
        %1836 = vmatprep.subr.bf16.mxu0 0
        %1837 = vmatpush1.bf16.msra.mxu0 %v1812
        %1838 = vmatprep.subr.bf16.mxu0 0
        %1839 = vmatpush1.bf16.msra.mxu0 %v1811
        %1840 = vmatprep.subr.bf16.mxu0 0
        %1841 = vmatpush1.bf16.msra.mxu0 %v1810
        %1842 = vmatprep.subr.bf16.mxu0 0
        %1843 = vmatpush2.bf16.msra.mxu0 0
        %1844 = vmatprep.subr.bf16.mxu0 0
        %1845 = vmatpush2.bf16.msra.mxu0 0
        %1846 = vmatprep.subr.bf16.mxu0 0
        %1847 = vmatpush2.bf16.msra.mxu0 0
        %1848 = vmatprep.subr.bf16.mxu0 0
        %1849 = vmatpush2.bf16.msra.mxu0 0
        %1850 = vmatprep.subr.bf16.mxu0 0
        %1851 = vmatpush2.bf16.msra.mxu0 0
        %1852 = vmatprep.subr.bf16.mxu0 0
        %1853 = vmatpush2.bf16.msra.mxu0 0
        %1854 = vmatprep.subr.bf16.mxu0 0
        %1855 = vmatpush2.bf16.msra.mxu0 0
        %1856 = vmatprep.subr.bf16.mxu0 0
        %1857 = vmatpush2.bf16.msra.mxu0 0
        %1858 = vmatprep.mubr.bf16.mxu0 0
        %1859 = vmatmul.mubr.bf16.gmra.mxu0 %v1731
        %v1860 = vpop.f32.mrf.mxu0
        %v1861 = vadd.f32 0.0, %v1860
        %v1862 = vpop.f32.mrf.mxu0
        %v1863 = vpop.f32.mrf.mxu0
        %v1864 = vadd.f32 0.0, %v1863
        %v1865 = vpop.f32.mrf.mxu0
        %1866 = vmatprep.mubr.bf16.mxu0 0
        %1867 = vmatmul.mubr.bf16.gmra.mxu0 %v1733
        %v1868 = vpop.f32.mrf.mxu0
        %v1869 = vadd.f32 0.0, %v1868
        %v1870 = vpop.f32.mrf.mxu0
        %v1871 = vpop.f32.mrf.mxu0
        %v1872 = vadd.f32 0.0, %v1871
        %v1873 = vpop.f32.mrf.mxu0
        %1874 = vmatprep.mubr.bf16.mxu0 0
        %1875 = vmatmul.mubr.bf16.gmra.mxu0 %v1735
        %v1876 = vpop.f32.mrf.mxu0
        %v1877 = vadd.f32 0.0, %v1876
        %v1878 = vpop.f32.mrf.mxu0
        %v1879 = vpop.f32.mrf.mxu0
        %v1880 = vadd.f32 0.0, %v1879
        %v1881 = vpop.f32.mrf.mxu0
        %1882 = vmatprep.mubr.bf16.mxu0 0
        %1883 = vmatmul.mubr.bf16.gmra.mxu0 %v1737
        %v1884 = vpop.f32.mrf.mxu0
        %v1885 = vadd.f32 0.0, %v1884
        %v1886 = vpop.f32.mrf.mxu0
        %v1887 = vpop.f32.mrf.mxu0
        %v1888 = vadd.f32 0.0, %v1887
        %v1889 = vpop.f32.mrf.mxu0
        %1890 = vmatprep.mubr.bf16.mxu0 0
        %1891 = vmatmul.mubr.bf16.gmra.mxu0 %v1739
        %v1892 = vpop.f32.mrf.mxu0
        %v1893 = vadd.f32 0.0, %v1892
        %v1894 = vpop.f32.mrf.mxu0
        %v1895 = vpop.f32.mrf.mxu0
        %v1896 = vadd.f32 0.0, %v1895
        %v1897 = vpop.f32.mrf.mxu0
        %1898 = vmatprep.mubr.bf16.mxu0 0
        %1899 = vmatmul.mubr.bf16.gmra.mxu0 %v1741
        %v1900 = vpop.f32.mrf.mxu0
        %v1901 = vadd.f32 0.0, %v1900
        %v1902 = vpop.f32.mrf.mxu0
        %v1903 = vpop.f32.mrf.mxu0
        %v1904 = vadd.f32 0.0, %v1903
        %v1905 = vpop.f32.mrf.mxu0
        %1906 = vmatprep.mubr.bf16.mxu0 0
        %1907 = vmatmul.mubr.bf16.gmra.mxu0 %v1743
        %v1908 = vpop.f32.mrf.mxu0
        %v1909 = vadd.f32 0.0, %v1908
        %v1910 = vpop.f32.mrf.mxu0
        %v1911 = vpop.f32.mrf.mxu0
        %v1912 = vadd.f32 0.0, %v1911
        %v1913 = vpop.f32.mrf.mxu0
        %1914 = vmatprep.mubr.bf16.mxu0 0
        %1915 = vmatmul.mubr.bf16.gmra.mxu0 %v1745
        %v1916 = vpop.f32.mrf.mxu0
        %v1917 = vadd.f32 0.0, %v1916
        %v1918 = vpop.f32.mrf.mxu0
        %v1919 = vpop.f32.mrf.mxu0
        %v1920 = vadd.f32 0.0, %v1919
        %v1921 = vpop.f32.mrf.mxu0
        %1922 = vmatprep.mubr.bf16.mxu0 0
        %1923 = vmatmul.mubr.bf16.gmra.mxu0 %v1747
        %v1924 = vpop.f32.mrf.mxu0
        %v1925 = vadd.f32 0.0, %v1924
        %v1926 = vpop.f32.mrf.mxu0
        %v1927 = vpop.f32.mrf.mxu0
        %v1928 = vadd.f32 0.0, %v1927
        %v1929 = vpop.f32.mrf.mxu0
        %1930 = vmatprep.mubr.bf16.mxu0 0
        %1931 = vmatmul.mubr.bf16.gmra.mxu0 %v1749
        %v1932 = vpop.f32.mrf.mxu0
        %v1933 = vadd.f32 0.0, %v1932
        %v1934 = vpop.f32.mrf.mxu0
        %v1935 = vpop.f32.mrf.mxu0
        %v1936 = vadd.f32 0.0, %v1935
        %v1937 = vpop.f32.mrf.mxu0
        %1938 = vmatprep.mubr.bf16.mxu0 0
        %1939 = vmatmul.mubr.bf16.gmra.mxu0 %v1751
        %v1940 = vpop.f32.mrf.mxu0
        %v1941 = vadd.f32 0.0, %v1940
        %v1942 = vpop.f32.mrf.mxu0
        %v1943 = vpop.f32.mrf.mxu0
        %v1944 = vadd.f32 0.0, %v1943
        %v1945 = vpop.f32.mrf.mxu0
        %1946 = vmatprep.mubr.bf16.mxu0 0
        %1947 = vmatmul.mubr.bf16.gmra.mxu0 %v1753
        %v1948 = vpop.f32.mrf.mxu0
        %v1949 = vadd.f32 0.0, %v1948
        %v1950 = vpop.f32.mrf.mxu0
        %v1951 = vpop.f32.mrf.mxu0
        %v1952 = vadd.f32 0.0, %v1951
        %v1953 = vpop.f32.mrf.mxu0
        %1954 = vmatprep.mubr.bf16.mxu0 0
        %1955 = vmatmul.mubr.bf16.gmra.mxu0 %v1755
        %v1956 = vpop.f32.mrf.mxu0
        %v1957 = vadd.f32 0.0, %v1956
        %v1958 = vpop.f32.mrf.mxu0
        %v1959 = vpop.f32.mrf.mxu0
        %v1960 = vadd.f32 0.0, %v1959
        %v1961 = vpop.f32.mrf.mxu0
        %1962 = vmatprep.mubr.bf16.mxu0 0
        %1963 = vmatmul.mubr.bf16.gmra.mxu0 %v1757
        %v1964 = vpop.f32.mrf.mxu0
        %v1965 = vadd.f32 0.0, %v1964
        %v1966 = vpop.f32.mrf.mxu0
        %v1967 = vpop.f32.mrf.mxu0
        %v1968 = vadd.f32 0.0, %v1967
        %v1969 = vpop.f32.mrf.mxu0
        %1970 = vmatprep.mubr.bf16.mxu0 0
        %1971 = vmatmul.mubr.bf16.gmra.mxu0 %v1759
        %v1972 = vpop.f32.mrf.mxu0
        %v1973 = vadd.f32 0.0, %v1972
        %v1974 = vpop.f32.mrf.mxu0
        %v1975 = vpop.f32.mrf.mxu0
        %v1976 = vadd.f32 0.0, %v1975
        %v1977 = vpop.f32.mrf.mxu0
        %1978 = vmatprep.mubr.bf16.mxu0 0
        %1979 = vmatmul.mubr.bf16.gmra.mxu0 %v1761
        %v1980 = vpop.f32.mrf.mxu0
        %v1981 = vadd.f32 0.0, %v1980
        %v1982 = vpop.f32.mrf.mxu0
        %v1983 = vpop.f32.mrf.mxu0
        %v1984 = vadd.f32 0.0, %v1983
        %v1985 = vpop.f32.mrf.mxu0
        %1986 = vdwg.mxu0
        %vm1987 = vsmask.f32 4352
        %v1988 = vshrl.u32 0, 16
        %v1990 = vrot.slane %v1988, 3
        %v1991 = vshll.u32 0, 16
        %v1993 = vrot.slane %v1991, 4
        %v1994 = vor.u32 %v1990, %v1993
        %v1996 = vshrl.u32 %v1679, 16
        %v1998 = vrot.slane %v1996, 3
        %v1999 = vshll.u32 %v1679, 16
        %v2001 = vrot.slane %v1999, 4
        %v2002 = vor.u32 %v1998, %v2001
        %v2003 = vsel %vm1987, %v1994, %v2002
        %v2005 = vshrl.u32 %v1680, 16
        %v2007 = vrot.slane %v2005, 3
        %v2008 = vshll.u32 %v1680, 16
        %v2010 = vrot.slane %v2008, 4
        %v2011 = vor.u32 %v2007, %v2010
        %v2012 = vsel %vm1987, %v2002, %v2011
        %v2014 = vshrl.u32 %v1681, 16
        %v2016 = vrot.slane %v2014, 3
        %v2017 = vshll.u32 %v1681, 16
        %v2019 = vrot.slane %v2017, 4
        %v2020 = vor.u32 %v2016, %v2019
        %v2021 = vsel %vm1987, %v2011, %v2020
        %v2023 = vshrl.u32 %v1682, 16
        %v2025 = vrot.slane %v2023, 3
        %v2026 = vshll.u32 %v1682, 16
        %v2028 = vrot.slane %v2026, 4
        %v2029 = vor.u32 %v2025, %v2028
        %v2030 = vsel %vm1987, %v2020, %v2029
        %v2032 = vshrl.u32 %v1683, 16
        %v2034 = vrot.slane %v2032, 3
        %v2035 = vshll.u32 %v1683, 16
        %v2037 = vrot.slane %v2035, 4
        %v2038 = vor.u32 %v2034, %v2037
        %v2039 = vsel %vm1987, %v2029, %v2038
        %v2041 = vshrl.u32 %v1684, 16
        %v2043 = vrot.slane %v2041, 3
        %v2044 = vshll.u32 %v1684, 16
        %v2046 = vrot.slane %v2044, 4
        %v2047 = vor.u32 %v2043, %v2046
        %v2048 = vsel %vm1987, %v2038, %v2047
        %v2050 = vshrl.u32 %v1685, 16
        %v2052 = vrot.slane %v2050, 3
        %v2053 = vshll.u32 %v1685, 16
        %v2055 = vrot.slane %v2053, 4
        %v2056 = vor.u32 %v2052, %v2055
        %v2057 = vsel %vm1987, %v2047, %v2056
        %v2059 = vshrl.u32 %v1686, 16
        %v2061 = vrot.slane %v2059, 3
        %v2062 = vshll.u32 %v1686, 16
        %v2064 = vrot.slane %v2062, 4
        %v2065 = vor.u32 %v2061, %v2064
        %v2066 = vsel %vm1987, %v2056, %v2065
        %v2068 = vshrl.u32 %v1687, 16
        %v2070 = vrot.slane %v2068, 3
        %v2071 = vshll.u32 %v1687, 16
        %v2073 = vrot.slane %v2071, 4
        %v2074 = vor.u32 %v2070, %v2073
        %v2075 = vsel %vm1987, %v2065, %v2074
        %v2077 = vshrl.u32 %v1688, 16
        %v2079 = vrot.slane %v2077, 3
        %v2080 = vshll.u32 %v1688, 16
        %v2082 = vrot.slane %v2080, 4
        %v2083 = vor.u32 %v2079, %v2082
        %v2084 = vsel %vm1987, %v2074, %v2083
        %v2086 = vshrl.u32 %v1689, 16
        %v2088 = vrot.slane %v2086, 3
        %v2089 = vshll.u32 %v1689, 16
        %v2091 = vrot.slane %v2089, 4
        %v2092 = vor.u32 %v2088, %v2091
        %v2093 = vsel %vm1987, %v2083, %v2092
        %v2095 = vshrl.u32 %v1690, 16
        %v2097 = vrot.slane %v2095, 3
        %v2098 = vshll.u32 %v1690, 16
        %v2100 = vrot.slane %v2098, 4
        %v2101 = vor.u32 %v2097, %v2100
        %v2102 = vsel %vm1987, %v2092, %v2101
        %v2104 = vshrl.u32 %v1691, 16
        %v2106 = vrot.slane %v2104, 3
        %v2107 = vshll.u32 %v1691, 16
        %v2109 = vrot.slane %v2107, 4
        %v2110 = vor.u32 %v2106, %v2109
        %v2111 = vsel %vm1987, %v2101, %v2110
        %v2113 = vshrl.u32 %v1692, 16
        %v2115 = vrot.slane %v2113, 3
        %v2116 = vshll.u32 %v1692, 16
        %v2118 = vrot.slane %v2116, 4
        %v2119 = vor.u32 %v2115, %v2118
        %v2120 = vsel %vm1987, %v2110, %v2119
        %v2122 = vshrl.u32 %v1693, 16
        %v2124 = vrot.slane %v2122, 3
        %v2125 = vshll.u32 %v1693, 16
        %v2127 = vrot.slane %v2125, 4
        %v2128 = vor.u32 %v2124, %v2127
        %v2129 = vsel %vm1987, %v2119, %v2128
        %v2131 = vshrl.u32 %v1694, 16
        %v2133 = vrot.slane %v2131, 3
        %v2134 = vshll.u32 %v1694, 16
        %v2136 = vrot.slane %v2134, 4
        %v2137 = vor.u32 %v2133, %v2136
        %v2138 = vsel %vm1987, %v2128, %v2137
        %v2171 = vunpack.c.l.b16 %v1695
        %v2172 = vunpack.c.l.b16 %v1696
        %v2173 = vunpack.c.l.b16 %v1697
        %v2174 = vunpack.c.l.b16 %v1698
        %v2175 = vunpack.c.l.b16 %v1699
        %v2176 = vunpack.c.l.b16 %v1700
        %v2177 = vunpack.c.l.b16 %v1701
        %v2178 = vunpack.c.l.b16 %v1702
        %v2179 = vunpack.c.l.b16 %v1703
        %v2180 = vunpack.c.l.b16 %v1704
        %v2181 = vunpack.c.l.b16 %v1705
        %v2182 = vunpack.c.l.b16 %v1706
        %v2183 = vunpack.c.l.b16 %v1707
        %v2184 = vunpack.c.l.b16 %v1708
        %v2185 = vunpack.c.l.b16 %v1709
        %v2186 = vunpack.c.l.b16 %v1710
        %v2187 = vpack.c.b16 %v2172, %v2171
        %v2188 = vpack.c.b16 %v2174, %v2173
        %v2189 = vpack.c.b16 %v2176, %v2175
        %v2190 = vpack.c.b16 %v2178, %v2177
        %v2191 = vpack.c.b16 %v2180, %v2179
        %v2192 = vpack.c.b16 %v2182, %v2181
        %v2193 = vpack.c.b16 %v2184, %v2183
        %v2194 = vpack.c.b16 %v2186, %v2185
        %2203 = vmatprep.subr.bf16.mxu0 0
        %2204 = vmatpush1.bf16.msra.mxu0 %v2194
        %2205 = vmatprep.subr.bf16.mxu0 0
        %2206 = vmatpush1.bf16.msra.mxu0 %v2193
        %2207 = vmatprep.subr.bf16.mxu0 0
        %2208 = vmatpush1.bf16.msra.mxu0 %v2192
        %2209 = vmatprep.subr.bf16.mxu0 0
        %2210 = vmatpush1.bf16.msra.mxu0 %v2191
        %2211 = vmatprep.subr.bf16.mxu0 0
        %2212 = vmatpush1.bf16.msra.mxu0 %v2190
        %2213 = vmatprep.subr.bf16.mxu0 0
        %2214 = vmatpush1.bf16.msra.mxu0 %v2189
        %2215 = vmatprep.subr.bf16.mxu0 0
        %2216 = vmatpush1.bf16.msra.mxu0 %v2188
        %2217 = vmatprep.subr.bf16.mxu0 0
        %2218 = vmatpush1.bf16.msra.mxu0 %v2187
        %2219 = vmatprep.subr.bf16.mxu0 0
        %2220 = vmatpush2.bf16.msra.mxu0 0
        %2221 = vmatprep.subr.bf16.mxu0 0
        %2222 = vmatpush2.bf16.msra.mxu0 0
        %2223 = vmatprep.subr.bf16.mxu0 0
        %2224 = vmatpush2.bf16.msra.mxu0 0
        %2225 = vmatprep.subr.bf16.mxu0 0
        %2226 = vmatpush2.bf16.msra.mxu0 0
        %2227 = vmatprep.subr.bf16.mxu0 0
        %2228 = vmatpush2.bf16.msra.mxu0 0
        %2229 = vmatprep.subr.bf16.mxu0 0
        %2230 = vmatpush2.bf16.msra.mxu0 0
        %2231 = vmatprep.subr.bf16.mxu0 0
        %2232 = vmatpush2.bf16.msra.mxu0 0
        %2233 = vmatprep.subr.bf16.mxu0 0
        %2234 = vmatpush2.bf16.msra.mxu0 0
        %2235 = vmatprep.mubr.bf16.mxu0 0
        %2236 = vmatmul.mubr.bf16.gmra.mxu0 %v2003
        %v2237 = vpop.f32.mrf.mxu0
        %v2238 = vadd.f32 %v1861, %v2237
        %v2239 = vpop.f32.mrf.mxu0
        %v2240 = vpop.f32.mrf.mxu0
        %v2241 = vadd.f32 %v1864, %v2240
        %v2242 = vpop.f32.mrf.mxu0
        %2243 = vmatprep.mubr.bf16.mxu0 0
        %2244 = vmatmul.mubr.bf16.gmra.mxu0 %v2012
        %v2245 = vpop.f32.mrf.mxu0
        %v2246 = vadd.f32 %v1869, %v2245
        %v2247 = vpop.f32.mrf.mxu0
        %v2248 = vpop.f32.mrf.mxu0
        %v2249 = vadd.f32 %v1872, %v2248
        %v2250 = vpop.f32.mrf.mxu0
        %2251 = vmatprep.mubr.bf16.mxu0 0
        %2252 = vmatmul.mubr.bf16.gmra.mxu0 %v2021
        %v2253 = vpop.f32.mrf.mxu0
        %v2254 = vadd.f32 %v1877, %v2253
        %v2255 = vpop.f32.mrf.mxu0
        %v2256 = vpop.f32.mrf.mxu0
        %v2257 = vadd.f32 %v1880, %v2256
        %v2258 = vpop.f32.mrf.mxu0
        %2259 = vmatprep.mubr.bf16.mxu0 0
        %2260 = vmatmul.mubr.bf16.gmra.mxu0 %v2030
        %v2261 = vpop.f32.mrf.mxu0
        %v2262 = vadd.f32 %v1885, %v2261
        %v2263 = vpop.f32.mrf.mxu0
        %v2264 = vpop.f32.mrf.mxu0
        %v2265 = vadd.f32 %v1888, %v2264
        %v2266 = vpop.f32.mrf.mxu0
        %2267 = vmatprep.mubr.bf16.mxu0 0
        %2268 = vmatmul.mubr.bf16.gmra.mxu0 %v2039
        %v2269 = vpop.f32.mrf.mxu0
        %v2270 = vadd.f32 %v1893, %v2269
        %v2271 = vpop.f32.mrf.mxu0
        %v2272 = vpop.f32.mrf.mxu0
        %v2273 = vadd.f32 %v1896, %v2272
        %v2274 = vpop.f32.mrf.mxu0
        %2275 = vmatprep.mubr.bf16.mxu0 0
        %2276 = vmatmul.mubr.bf16.gmra.mxu0 %v2048
        %v2277 = vpop.f32.mrf.mxu0
        %v2278 = vadd.f32 %v1901, %v2277
        %v2279 = vpop.f32.mrf.mxu0
        %v2280 = vpop.f32.mrf.mxu0
        %v2281 = vadd.f32 %v1904, %v2280
        %v2282 = vpop.f32.mrf.mxu0
        %2283 = vmatprep.mubr.bf16.mxu0 0
        %2284 = vmatmul.mubr.bf16.gmra.mxu0 %v2057
        %v2285 = vpop.f32.mrf.mxu0
        %v2286 = vadd.f32 %v1909, %v2285
        %v2287 = vpop.f32.mrf.mxu0
        %v2288 = vpop.f32.mrf.mxu0
        %v2289 = vadd.f32 %v1912, %v2288
        %v2290 = vpop.f32.mrf.mxu0
        %2291 = vmatprep.mubr.bf16.mxu0 0
        %2292 = vmatmul.mubr.bf16.gmra.mxu0 %v2066
        %v2293 = vpop.f32.mrf.mxu0
        %v2294 = vadd.f32 %v1917, %v2293
        %v2295 = vpop.f32.mrf.mxu0
        %v2296 = vpop.f32.mrf.mxu0
        %v2297 = vadd.f32 %v1920, %v2296
        %v2298 = vpop.f32.mrf.mxu0
        %2299 = vmatprep.mubr.bf16.mxu0 0
        %2300 = vmatmul.mubr.bf16.gmra.mxu0 %v2075
        %v2301 = vpop.f32.mrf.mxu0
        %v2302 = vadd.f32 %v1925, %v2301
        %v2303 = vpop.f32.mrf.mxu0
        %v2304 = vpop.f32.mrf.mxu0
        %v2305 = vadd.f32 %v1928, %v2304
        %v2306 = vpop.f32.mrf.mxu0
        %2307 = vmatprep.mubr.bf16.mxu0 0
        %2308 = vmatmul.mubr.bf16.gmra.mxu0 %v2084
        %v2309 = vpop.f32.mrf.mxu0
        %v2310 = vadd.f32 %v1933, %v2309
        %v2311 = vpop.f32.mrf.mxu0
        %v2312 = vpop.f32.mrf.mxu0
        %v2313 = vadd.f32 %v1936, %v2312
        %v2314 = vpop.f32.mrf.mxu0
        %2315 = vmatprep.mubr.bf16.mxu0 0
        %2316 = vmatmul.mubr.bf16.gmra.mxu0 %v2093
        %v2317 = vpop.f32.mrf.mxu0
        %v2318 = vadd.f32 %v1941, %v2317
        %v2319 = vpop.f32.mrf.mxu0
        %v2320 = vpop.f32.mrf.mxu0
        %v2321 = vadd.f32 %v1944, %v2320
        %v2322 = vpop.f32.mrf.mxu0
        %2323 = vmatprep.mubr.bf16.mxu0 0
        %2324 = vmatmul.mubr.bf16.gmra.mxu0 %v2102
        %v2325 = vpop.f32.mrf.mxu0
        %v2326 = vadd.f32 %v1949, %v2325
        %v2327 = vpop.f32.mrf.mxu0
        %v2328 = vpop.f32.mrf.mxu0
        %v2329 = vadd.f32 %v1952, %v2328
        %v2330 = vpop.f32.mrf.mxu0
        %2331 = vmatprep.mubr.bf16.mxu0 0
        %2332 = vmatmul.mubr.bf16.gmra.mxu0 %v2111
        %v2333 = vpop.f32.mrf.mxu0
        %v2334 = vadd.f32 %v1957, %v2333
        %v2335 = vpop.f32.mrf.mxu0
        %v2336 = vpop.f32.mrf.mxu0
        %v2337 = vadd.f32 %v1960, %v2336
        %v2338 = vpop.f32.mrf.mxu0
        %2339 = vmatprep.mubr.bf16.mxu0 0
        %2340 = vmatmul.mubr.bf16.gmra.mxu0 %v2120
        %v2341 = vpop.f32.mrf.mxu0
        %v2342 = vadd.f32 %v1965, %v2341
        %v2343 = vpop.f32.mrf.mxu0
        %v2344 = vpop.f32.mrf.mxu0
        %v2345 = vadd.f32 %v1968, %v2344
        %v2346 = vpop.f32.mrf.mxu0
        %2347 = vmatprep.mubr.bf16.mxu0 0
        %2348 = vmatmul.mubr.bf16.gmra.mxu0 %v2129
        %v2349 = vpop.f32.mrf.mxu0
        %v2350 = vadd.f32 %v1973, %v2349
        %v2351 = vpop.f32.mrf.mxu0
        %v2352 = vpop.f32.mrf.mxu0
        %v2353 = vadd.f32 %v1976, %v2352
        %v2354 = vpop.f32.mrf.mxu0
        %2355 = vmatprep.mubr.bf16.mxu0 0
        %2356 = vmatmul.mubr.bf16.gmra.mxu0 %v2138
        %v2357 = vpop.f32.mrf.mxu0
        %v2358 = vadd.f32 %v1981, %v2357
        %v2359 = vpop.f32.mrf.mxu0
        %v2360 = vpop.f32.mrf.mxu0
        %v2361 = vadd.f32 %v1984, %v2360
        %v2362 = vpop.f32.mrf.mxu0
        %2363 = vdwg.mxu0
        %vm2364 = vcmp.eq.s32.totalorder %v1343, 15
        %vm2365 = vcmp.eq.s32.totalorder %v1344, 15
        %vm2366 = vcmp.eq.s32.totalorder %v1345, 15
        %vm2367 = vcmp.eq.s32.totalorder %v1346, 15
        %vm2368 = vcmp.eq.s32.totalorder %v1347, 15
        %vm2369 = vcmp.eq.s32.totalorder %v1348, 15
        %vm2370 = vcmp.eq.s32.totalorder %v1349, 15
        %vm2371 = vcmp.eq.s32.totalorder %v1350, 15
        %vm2372 = vcmp.eq.s32.totalorder %v1351, 15
        %vm2373 = vcmp.eq.s32.totalorder %v1352, 15
        %vm2374 = vcmp.eq.s32.totalorder %v1353, 15
        %vm2375 = vcmp.eq.s32.totalorder %v1354, 15
        %vm2376 = vcmp.eq.s32.totalorder %v1355, 15
        %vm2377 = vcmp.eq.s32.totalorder %v1356, 15
        %vm2378 = vcmp.eq.s32.totalorder %v1357, 15
        %vm2379 = vcmp.eq.s32.totalorder %v1358, 15
        %vm2380 = vcmp.eq.s32.totalorder %v1359, 15
        %vm2381 = vcmp.eq.s32.totalorder %v1360, 15
        %vm2382 = vcmp.eq.s32.totalorder %v1361, 15
        %vm2383 = vcmp.eq.s32.totalorder %v1362, 15
        %vm2384 = vcmp.eq.s32.totalorder %v1363, 15
        %vm2385 = vcmp.eq.s32.totalorder %v1364, 15
        %vm2386 = vcmp.eq.s32.totalorder %v1365, 15
        %vm2387 = vcmp.eq.s32.totalorder %v1366, 15
        %vm2388 = vcmp.eq.s32.totalorder %v1367, 15
        %vm2389 = vcmp.eq.s32.totalorder %v1368, 15
        %vm2390 = vcmp.eq.s32.totalorder %v1369, 15
        %vm2391 = vcmp.eq.s32.totalorder %v1370, 15
        %vm2392 = vcmp.eq.s32.totalorder %v1371, 15
        %vm2393 = vcmp.eq.s32.totalorder %v1372, 15
        %vm2394 = vcmp.eq.s32.totalorder %v1373, 15
        %vm2395 = vcmp.eq.s32.totalorder %v1374, 15
        %vm2396 = vmpackc.low %vm2364, %vm2364
        %vm2397 = vmpackc.low %vm2365, %vm2365
        %vm2398 = vmpackc.low %vm2366, %vm2366
        %vm2399 = vmpackc.low %vm2367, %vm2367
        %vm2400 = vmpackc.low %vm2368, %vm2368
        %vm2401 = vmpackc.low %vm2369, %vm2369
        %vm2402 = vmpackc.low %vm2370, %vm2370
        %vm2403 = vmpackc.low %vm2371, %vm2371
        %vm2404 = vmpackc.low %vm2372, %vm2372
        %vm2405 = vmpackc.low %vm2373, %vm2373
        %vm2406 = vmpackc.low %vm2374, %vm2374
        %vm2407 = vmpackc.low %vm2375, %vm2375
        %vm2408 = vmpackc.low %vm2376, %vm2376
        %vm2409 = vmpackc.low %vm2377, %vm2377
        %vm2410 = vmpackc.low %vm2378, %vm2378
        %vm2411 = vmpackc.low %vm2379, %vm2379
        %vm2412 = vmpackc.low %vm2380, %vm2380
        %vm2413 = vmpackc.low %vm2381, %vm2381
        %vm2414 = vmpackc.low %vm2382, %vm2382
        %vm2415 = vmpackc.low %vm2383, %vm2383
        %vm2416 = vmpackc.low %vm2384, %vm2384
        %vm2417 = vmpackc.low %vm2385, %vm2385
        %vm2418 = vmpackc.low %vm2386, %vm2386
        %vm2419 = vmpackc.low %vm2387, %vm2387
        %vm2420 = vmpackc.low %vm2388, %vm2388
        %vm2421 = vmpackc.low %vm2389, %vm2389
        %vm2422 = vmpackc.low %vm2390, %vm2390
        %vm2423 = vmpackc.low %vm2391, %vm2391
        %vm2424 = vmpackc.low %vm2392, %vm2392
        %vm2425 = vmpackc.low %vm2393, %vm2393
        %vm2426 = vmpackc.low %vm2394, %vm2394
        %vm2427 = vmpackc.low %vm2395, %vm2395
        %v2428 = vsel %vm2396, 65537, 0
        %v2429 = vsel %vm2397, 65537, 0
        %v2430 = vsel %vm2398, 65537, 0
        %v2431 = vsel %vm2399, 65537, 0
        %v2432 = vsel %vm2400, 65537, 0
        %v2433 = vsel %vm2401, 65537, 0
        %v2434 = vsel %vm2402, 65537, 0
        %v2435 = vsel %vm2403, 65537, 0
        %v2436 = vsel %vm2404, 65537, 0
        %v2437 = vsel %vm2405, 65537, 0
        %v2438 = vsel %vm2406, 65537, 0
        %v2439 = vsel %vm2407, 65537, 0
        %v2440 = vsel %vm2408, 65537, 0
        %v2441 = vsel %vm2409, 65537, 0
        %v2442 = vsel %vm2410, 65537, 0
        %v2443 = vsel %vm2411, 65537, 0
        %v2444 = vsel %vm2412, 65537, 0
        %v2445 = vsel %vm2413, 65537, 0
        %v2446 = vsel %vm2414, 65537, 0
        %v2447 = vsel %vm2415, 65537, 0
        %v2448 = vsel %vm2416, 65537, 0
        %v2449 = vsel %vm2417, 65537, 0
        %v2450 = vsel %vm2418, 65537, 0
        %v2451 = vsel %vm2419, 65537, 0
        %v2452 = vsel %vm2420, 65537, 0
        %v2453 = vsel %vm2421, 65537, 0
        %v2454 = vsel %vm2422, 65537, 0
        %v2455 = vsel %vm2423, 65537, 0
        %v2456 = vsel %vm2424, 65537, 0
        %v2457 = vsel %vm2425, 65537, 0
        %v2458 = vsel %vm2426, 65537, 0
        %v2459 = vsel %vm2427, 65537, 0
        %v2460 = vunpack.c.l.b16 %v2428
        %v2461 = vunpack.c.l.b16 %v2429
        %v2462 = vunpack.c.l.b16 %v2430
        %v2463 = vunpack.c.l.b16 %v2431
        %v2464 = vunpack.c.l.b16 %v2432
        %v2465 = vunpack.c.l.b16 %v2433
        %v2466 = vunpack.c.l.b16 %v2434
        %v2467 = vunpack.c.l.b16 %v2435
        %v2468 = vunpack.c.l.b16 %v2436
        %v2469 = vunpack.c.l.b16 %v2437
        %v2470 = vunpack.c.l.b16 %v2438
        %v2471 = vunpack.c.l.b16 %v2439
        %v2472 = vunpack.c.l.b16 %v2440
        %v2473 = vunpack.c.l.b16 %v2441
        %v2474 = vunpack.c.l.b16 %v2442
        %v2475 = vunpack.c.l.b16 %v2443
        %v2476 = vunpack.c.l.b16 %v2444
        %v2477 = vunpack.c.l.b16 %v2445
        %v2478 = vunpack.c.l.b16 %v2446
        %v2479 = vunpack.c.l.b16 %v2447
        %v2480 = vunpack.c.l.b16 %v2448
        %v2481 = vunpack.c.l.b16 %v2449
        %v2482 = vunpack.c.l.b16 %v2450
        %v2483 = vunpack.c.l.b16 %v2451
        %v2484 = vunpack.c.l.b16 %v2452
        %v2485 = vunpack.c.l.b16 %v2453
        %v2486 = vunpack.c.l.b16 %v2454
        %v2487 = vunpack.c.l.b16 %v2455
        %v2488 = vunpack.c.l.b16 %v2456
        %v2489 = vunpack.c.l.b16 %v2457
        %v2490 = vunpack.c.l.b16 %v2458
        %v2491 = vunpack.c.l.b16 %v2459
        %v2492 = vpack.c.b16 %v2461, %v2460
        %v2493 = vpack.c.b16 %v2463, %v2462
        %v2494 = vpack.c.b16 %v2465, %v2464
        %v2495 = vpack.c.b16 %v2467, %v2466
        %v2496 = vpack.c.b16 %v2469, %v2468
        %v2497 = vpack.c.b16 %v2471, %v2470
        %v2498 = vpack.c.b16 %v2473, %v2472
        %v2499 = vpack.c.b16 %v2475, %v2474
        %v2500 = vpack.c.b16 %v2477, %v2476
        %v2501 = vpack.c.b16 %v2479, %v2478
        %v2502 = vpack.c.b16 %v2481, %v2480
        %v2503 = vpack.c.b16 %v2483, %v2482
        %v2504 = vpack.c.b16 %v2485, %v2484
        %v2505 = vpack.c.b16 %v2487, %v2486
        %v2506 = vpack.c.b16 %v2489, %v2488
        %v2507 = vpack.c.b16 %v2491, %v2490
        %v2509 = vshrl.u32 %v2492, 16
        %v2511 = vrot.slane %v2509, 3
        %v2512 = vshll.u32 %v2492, 16
        %v2514 = vrot.slane %v2512, 4
        %v2515 = vor.u32 %v2511, %v2514
        %v2517 = vshrl.u32 %v2493, 16
        %v2519 = vrot.slane %v2517, 3
        %v2520 = vshll.u32 %v2493, 16
        %v2522 = vrot.slane %v2520, 4
        %v2523 = vor.u32 %v2519, %v2522
        %v2524 = vsel %vm1987, %v2515, %v2523
        %v2526 = vshrl.u32 %v2494, 16
        %v2528 = vrot.slane %v2526, 3
        %v2529 = vshll.u32 %v2494, 16
        %v2531 = vrot.slane %v2529, 4
        %v2532 = vor.u32 %v2528, %v2531
        %v2533 = vsel %vm1987, %v2523, %v2532
        %v2535 = vshrl.u32 %v2495, 16
        %v2537 = vrot.slane %v2535, 3
        %v2538 = vshll.u32 %v2495, 16
        %v2540 = vrot.slane %v2538, 4
        %v2541 = vor.u32 %v2537, %v2540
        %v2542 = vsel %vm1987, %v2532, %v2541
        %v2544 = vshrl.u32 %v2496, 16
        %v2546 = vrot.slane %v2544, 3
        %v2547 = vshll.u32 %v2496, 16
        %v2549 = vrot.slane %v2547, 4
        %v2550 = vor.u32 %v2546, %v2549
        %v2551 = vsel %vm1987, %v2541, %v2550
        %v2553 = vshrl.u32 %v2497, 16
        %v2555 = vrot.slane %v2553, 3
        %v2556 = vshll.u32 %v2497, 16
        %v2558 = vrot.slane %v2556, 4
        %v2559 = vor.u32 %v2555, %v2558
        %v2560 = vsel %vm1987, %v2550, %v2559
        %v2562 = vshrl.u32 %v2498, 16
        %v2564 = vrot.slane %v2562, 3
        %v2565 = vshll.u32 %v2498, 16
        %v2567 = vrot.slane %v2565, 4
        %v2568 = vor.u32 %v2564, %v2567
        %v2569 = vsel %vm1987, %v2559, %v2568
        %v2571 = vshrl.u32 %v2499, 16
        %v2573 = vrot.slane %v2571, 3
        %v2574 = vshll.u32 %v2499, 16
        %v2576 = vrot.slane %v2574, 4
        %v2577 = vor.u32 %v2573, %v2576
        %v2578 = vsel %vm1987, %v2568, %v2577
        %v2580 = vshrl.u32 %v2500, 16
        %v2582 = vrot.slane %v2580, 3
        %v2583 = vshll.u32 %v2500, 16
        %v2585 = vrot.slane %v2583, 4
        %v2586 = vor.u32 %v2582, %v2585
        %v2587 = vsel %vm1987, %v2577, %v2586
        %v2589 = vshrl.u32 %v2501, 16
        %v2591 = vrot.slane %v2589, 3
        %v2592 = vshll.u32 %v2501, 16
        %v2594 = vrot.slane %v2592, 4
        %v2595 = vor.u32 %v2591, %v2594
        %v2596 = vsel %vm1987, %v2586, %v2595
        %v2598 = vshrl.u32 %v2502, 16
        %v2600 = vrot.slane %v2598, 3
        %v2601 = vshll.u32 %v2502, 16
        %v2603 = vrot.slane %v2601, 4
        %v2604 = vor.u32 %v2600, %v2603
        %v2605 = vsel %vm1987, %v2595, %v2604
        %v2607 = vshrl.u32 %v2503, 16
        %v2609 = vrot.slane %v2607, 3
        %v2610 = vshll.u32 %v2503, 16
        %v2612 = vrot.slane %v2610, 4
        %v2613 = vor.u32 %v2609, %v2612
        %v2614 = vsel %vm1987, %v2604, %v2613
        %v2616 = vshrl.u32 %v2504, 16
        %v2618 = vrot.slane %v2616, 3
        %v2619 = vshll.u32 %v2504, 16
        %v2621 = vrot.slane %v2619, 4
        %v2622 = vor.u32 %v2618, %v2621
        %v2623 = vsel %vm1987, %v2613, %v2622
        %v2625 = vshrl.u32 %v2505, 16
        %v2627 = vrot.slane %v2625, 3
        %v2628 = vshll.u32 %v2505, 16
        %v2630 = vrot.slane %v2628, 4
        %v2631 = vor.u32 %v2627, %v2630
        %v2632 = vsel %vm1987, %v2622, %v2631
        %v2634 = vshrl.u32 %v2506, 16
        %v2636 = vrot.slane %v2634, 3
        %v2637 = vshll.u32 %v2506, 16
        %v2639 = vrot.slane %v2637, 4
        %v2640 = vor.u32 %v2636, %v2639
        %v2641 = vsel %vm1987, %v2631, %v2640
        %v2643 = vshrl.u32 %v2507, 16
        %v2645 = vrot.slane %v2643, 3
        %v2646 = vshll.u32 %v2507, 16
        %v2648 = vrot.slane %v2646, 4
        %v2649 = vor.u32 %v2645, %v2648
        %v2650 = vsel %vm1987, %v2640, %v2649
        %vm2651 = vcmp.ne.s16.totalorder %v2524, 0
        %vm2652 = vcmp.ne.s16.totalorder %v2533, 0
        %vm2653 = vcmp.ne.s16.totalorder %v2542, 0
        %vm2654 = vcmp.ne.s16.totalorder %v2551, 0
        %vm2655 = vcmp.ne.s16.totalorder %v2560, 0
        %vm2656 = vcmp.ne.s16.totalorder %v2569, 0
        %vm2657 = vcmp.ne.s16.totalorder %v2578, 0
        %vm2658 = vcmp.ne.s16.totalorder %v2587, 0
        %vm2659 = vcmp.ne.s16.totalorder %v2596, 0
        %vm2660 = vcmp.ne.s16.totalorder %v2605, 0
        %vm2661 = vcmp.ne.s16.totalorder %v2614, 0
        %vm2662 = vcmp.ne.s16.totalorder %v2623, 0
        %vm2663 = vcmp.ne.s16.totalorder %v2632, 0
        %vm2664 = vcmp.ne.s16.totalorder %v2641, 0
        %vm2665 = vcmp.ne.s16.totalorder %v2650, 0
        %vm2666 = vcmp.ne.s16.totalorder %v2649, 0
        %v2667 = vsel %vm2651, 0, %v953
        %v2668 = vsel %vm2652, 0, %v906
        %v2669 = vsel %vm2653, 0, %v908
        %v2670 = vsel %vm2654, 0, %v910
        %v2671 = vsel %vm2655, 0, %v912
        %v2672 = vsel %vm2656, 0, %v914
        %v2673 = vsel %vm2657, 0, %v916
        %v2674 = vsel %vm2658, 0, %v918
        %v2675 = vsel %vm2659, 0, %v920
        %v2676 = vsel %vm2660, 0, %v922
        %v2677 = vsel %vm2661, 0, %v924
        %v2678 = vsel %vm2662, 0, %v926
        %v2679 = vsel %vm2663, 0, %v928
        %v2680 = vsel %vm2664, 0, %v930
        %v2681 = vsel %vm2665, 0, %v932
        %v2682 = vsel %vm2666, 0, %v934
        %v2683 = vld [vmem:[#allocation8 + $0x80] sm:$0xf]
        %v2684 = vld [vmem:[#allocation8 + $0x84] sm:$0xf]
        %v2685 = vld [vmem:[#allocation8 + $0x88] sm:$0xf]
        %v2686 = vld [vmem:[#allocation8 + $0x8c] sm:$0xf]
        %v2687 = vld [vmem:[#allocation8 + $0x90] sm:$0xf]
        %v2688 = vld [vmem:[#allocation8 + $0x94] sm:$0xf]
        %v2689 = vld [vmem:[#allocation8 + $0x98] sm:$0xf]
        %v2690 = vld [vmem:[#allocation8 + $0x9c] sm:$0xf]
        %v2691 = vld [vmem:[#allocation8 + $0xa0] sm:$0xf]
        %v2692 = vld [vmem:[#allocation8 + $0xa4] sm:$0xf]
        %v2693 = vld [vmem:[#allocation8 + $0xa8] sm:$0xf]
        %v2694 = vld [vmem:[#allocation8 + $0xac] sm:$0xf]
        %v2695 = vld [vmem:[#allocation8 + $0xb0] sm:$0xf]
        %v2696 = vld [vmem:[#allocation8 + $0xb4] sm:$0xf]
        %v2697 = vld [vmem:[#allocation8 + $0xb8] sm:$0xf]
        %v2698 = vld [vmem:[#allocation8 + $0xbc] sm:$0xf]
        %v2699 = vrot.slane %v1988, 4
        %v2700 = vrot.slane %v1991, 5
        %v2701 = vor.u32 %v2699, %v2700
        %v2703 = vshrl.u32 %v2667, 16
        %v2705 = vrot.slane %v2703, 4
        %v2706 = vshll.u32 %v2667, 16
        %v2708 = vrot.slane %v2706, 5
        %v2709 = vor.u32 %v2705, %v2708
        %v2710 = vsel %vm1519, %v2701, %v2709
        %v2712 = vshrl.u32 %v2668, 16
        %v2714 = vrot.slane %v2712, 4
        %v2715 = vshll.u32 %v2668, 16
        %v2717 = vrot.slane %v2715, 5
        %v2718 = vor.u32 %v2714, %v2717
        %v2719 = vsel %vm1519, %v2709, %v2718
        %v2721 = vshrl.u32 %v2669, 16
        %v2723 = vrot.slane %v2721, 4
        %v2724 = vshll.u32 %v2669, 16
        %v2726 = vrot.slane %v2724, 5
        %v2727 = vor.u32 %v2723, %v2726
        %v2728 = vsel %vm1519, %v2718, %v2727
        %v2730 = vshrl.u32 %v2670, 16
        %v2732 = vrot.slane %v2730, 4
        %v2733 = vshll.u32 %v2670, 16
        %v2735 = vrot.slane %v2733, 5
        %v2736 = vor.u32 %v2732, %v2735
        %v2737 = vsel %vm1519, %v2727, %v2736
        %v2739 = vshrl.u32 %v2671, 16
        %v2741 = vrot.slane %v2739, 4
        %v2742 = vshll.u32 %v2671, 16
        %v2744 = vrot.slane %v2742, 5
        %v2745 = vor.u32 %v2741, %v2744
        %v2746 = vsel %vm1519, %v2736, %v2745
        %v2748 = vshrl.u32 %v2672, 16
        %v2750 = vrot.slane %v2748, 4
        %v2751 = vshll.u32 %v2672, 16
        %v2753 = vrot.slane %v2751, 5
        %v2754 = vor.u32 %v2750, %v2753
        %v2755 = vsel %vm1519, %v2745, %v2754
        %v2757 = vshrl.u32 %v2673, 16
        %v2759 = vrot.slane %v2757, 4
        %v2760 = vshll.u32 %v2673, 16
        %v2762 = vrot.slane %v2760, 5
        %v2763 = vor.u32 %v2759, %v2762
        %v2764 = vsel %vm1519, %v2754, %v2763
        %v2766 = vshrl.u32 %v2674, 16
        %v2768 = vrot.slane %v2766, 4
        %v2769 = vshll.u32 %v2674, 16
        %v2771 = vrot.slane %v2769, 5
        %v2772 = vor.u32 %v2768, %v2771
        %v2773 = vsel %vm1519, %v2763, %v2772
        %v2775 = vshrl.u32 %v2675, 16
        %v2777 = vrot.slane %v2775, 4
        %v2778 = vshll.u32 %v2675, 16
        %v2780 = vrot.slane %v2778, 5
        %v2781 = vor.u32 %v2777, %v2780
        %v2782 = vsel %vm1519, %v2772, %v2781
        %v2784 = vshrl.u32 %v2676, 16
        %v2786 = vrot.slane %v2784, 4
        %v2787 = vshll.u32 %v2676, 16
        %v2789 = vrot.slane %v2787, 5
        %v2790 = vor.u32 %v2786, %v2789
        %v2791 = vsel %vm1519, %v2781, %v2790
        %v2793 = vshrl.u32 %v2677, 16
        %v2795 = vrot.slane %v2793, 4
        %v2796 = vshll.u32 %v2677, 16
        %v2798 = vrot.slane %v2796, 5
        %v2799 = vor.u32 %v2795, %v2798
        %v2800 = vsel %vm1519, %v2790, %v2799
        %v2802 = vshrl.u32 %v2678, 16
        %v2804 = vrot.slane %v2802, 4
        %v2805 = vshll.u32 %v2678, 16
        %v2807 = vrot.slane %v2805, 5
        %v2808 = vor.u32 %v2804, %v2807
        %v2809 = vsel %vm1519, %v2799, %v2808
        %v2811 = vshrl.u32 %v2679, 16
        %v2813 = vrot.slane %v2811, 4
        %v2814 = vshll.u32 %v2679, 16
        %v2816 = vrot.slane %v2814, 5
        %v2817 = vor.u32 %v2813, %v2816
        %v2818 = vsel %vm1519, %v2808, %v2817
        %v2820 = vshrl.u32 %v2680, 16
        %v2822 = vrot.slane %v2820, 4
        %v2823 = vshll.u32 %v2680, 16
        %v2825 = vrot.slane %v2823, 5
        %v2826 = vor.u32 %v2822, %v2825
        %v2827 = vsel %vm1519, %v2817, %v2826
        %v2829 = vshrl.u32 %v2681, 16
        %v2831 = vrot.slane %v2829, 4
        %v2832 = vshll.u32 %v2681, 16
        %v2834 = vrot.slane %v2832, 5
        %v2835 = vor.u32 %v2831, %v2834
        %v2836 = vsel %vm1519, %v2826, %v2835
        %v2838 = vshrl.u32 %v2682, 16
        %v2840 = vrot.slane %v2838, 4
        %v2841 = vshll.u32 %v2682, 16
        %v2843 = vrot.slane %v2841, 5
        %v2844 = vor.u32 %v2840, %v2843
        %v2845 = vsel %vm1519, %v2835, %v2844
        %v2878 = vunpack.c.l.b16 %v2683
        %v2879 = vunpack.c.l.b16 %v2684
        %v2880 = vunpack.c.l.b16 %v2685
        %v2881 = vunpack.c.l.b16 %v2686
        %v2882 = vunpack.c.l.b16 %v2687
        %v2883 = vunpack.c.l.b16 %v2688
        %v2884 = vunpack.c.l.b16 %v2689
        %v2885 = vunpack.c.l.b16 %v2690
        %v2886 = vunpack.c.l.b16 %v2691
        %v2887 = vunpack.c.l.b16 %v2692
        %v2888 = vunpack.c.l.b16 %v2693
        %v2889 = vunpack.c.l.b16 %v2694
        %v2890 = vunpack.c.l.b16 %v2695
        %v2891 = vunpack.c.l.b16 %v2696
        %v2892 = vunpack.c.l.b16 %v2697
        %v2893 = vunpack.c.l.b16 %v2698
        %v2894 = vpack.c.b16 %v2879, %v2878
        %v2895 = vpack.c.b16 %v2881, %v2880
        %v2896 = vpack.c.b16 %v2883, %v2882
        %v2897 = vpack.c.b16 %v2885, %v2884
        %v2898 = vpack.c.b16 %v2887, %v2886
        %v2899 = vpack.c.b16 %v2889, %v2888
        %v2900 = vpack.c.b16 %v2891, %v2890
        %v2901 = vpack.c.b16 %v2893, %v2892
        %2910 = vmatprep.subr.bf16.mxu0 0
        %2911 = vmatpush1.bf16.msra.mxu0 %v2901
        %2912 = vmatprep.subr.bf16.mxu0 0
        %2913 = vmatpush1.bf16.msra.mxu0 %v2900
        %2914 = vmatprep.subr.bf16.mxu0 0
        %2915 = vmatpush1.bf16.msra.mxu0 %v2899
        %2916 = vmatprep.subr.bf16.mxu0 0
        %2917 = vmatpush1.bf16.msra.mxu0 %v2898
        %2918 = vmatprep.subr.bf16.mxu0 0
        %2919 = vmatpush1.bf16.msra.mxu0 %v2897
        %2920 = vmatprep.subr.bf16.mxu0 0
        %2921 = vmatpush1.bf16.msra.mxu0 %v2896
        %2922 = vmatprep.subr.bf16.mxu0 0
        %2923 = vmatpush1.bf16.msra.mxu0 %v2895
        %2924 = vmatprep.subr.bf16.mxu0 0
        %2925 = vmatpush1.bf16.msra.mxu0 %v2894
        %2926 = vmatprep.subr.bf16.mxu0 0
        %2927 = vmatpush2.bf16.msra.mxu0 0
        %2928 = vmatprep.subr.bf16.mxu0 0
        %2929 = vmatpush2.bf16.msra.mxu0 0
        %2930 = vmatprep.subr.bf16.mxu0 0
        %2931 = vmatpush2.bf16.msra.mxu0 0
        %2932 = vmatprep.subr.bf16.mxu0 0
        %2933 = vmatpush2.bf16.msra.mxu0 0
        %2934 = vmatprep.subr.bf16.mxu0 0
        %2935 = vmatpush2.bf16.msra.mxu0 0
        %2936 = vmatprep.subr.bf16.mxu0 0
        %2937 = vmatpush2.bf16.msra.mxu0 0
        %2938 = vmatprep.subr.bf16.mxu0 0
        %2939 = vmatpush2.bf16.msra.mxu0 0
        %2940 = vmatprep.subr.bf16.mxu0 0
        %2941 = vmatpush2.bf16.msra.mxu0 0
        %2942 = vmatprep.mubr.bf16.mxu0 0
        %2943 = vmatmul.mubr.bf16.gmra.mxu0 %v2710
        %v2944 = vpop.f32.mrf.mxu0
        %v2945 = vadd.f32 0.0, %v2944
        %v2946 = vpop.f32.mrf.mxu0
        %v2947 = vpop.f32.mrf.mxu0
        %v2948 = vadd.f32 0.0, %v2947
        %v2949 = vpop.f32.mrf.mxu0
        %2950 = vmatprep.mubr.bf16.mxu0 0
        %2951 = vmatmul.mubr.bf16.gmra.mxu0 %v2719
        %v2952 = vpop.f32.mrf.mxu0
        %v2953 = vadd.f32 0.0, %v2952
        %v2954 = vpop.f32.mrf.mxu0
        %v2955 = vpop.f32.mrf.mxu0
        %v2956 = vadd.f32 0.0, %v2955
        %v2957 = vpop.f32.mrf.mxu0
        %2958 = vmatprep.mubr.bf16.mxu0 0
        %2959 = vmatmul.mubr.bf16.gmra.mxu0 %v2728
        %v2960 = vpop.f32.mrf.mxu0
        %v2961 = vadd.f32 0.0, %v2960
        %v2962 = vpop.f32.mrf.mxu0
        %v2963 = vpop.f32.mrf.mxu0
        %v2964 = vadd.f32 0.0, %v2963
        %v2965 = vpop.f32.mrf.mxu0
        %2966 = vmatprep.mubr.bf16.mxu0 0
        %2967 = vmatmul.mubr.bf16.gmra.mxu0 %v2737
        %v2968 = vpop.f32.mrf.mxu0
        %v2969 = vadd.f32 0.0, %v2968
        %v2970 = vpop.f32.mrf.mxu0
        %v2971 = vpop.f32.mrf.mxu0
        %v2972 = vadd.f32 0.0, %v2971
        %v2973 = vpop.f32.mrf.mxu0
        %2974 = vmatprep.mubr.bf16.mxu0 0
        %2975 = vmatmul.mubr.bf16.gmra.mxu0 %v2746
        %v2976 = vpop.f32.mrf.mxu0
        %v2977 = vadd.f32 0.0, %v2976
        %v2978 = vpop.f32.mrf.mxu0
        %v2979 = vpop.f32.mrf.mxu0
        %v2980 = vadd.f32 0.0, %v2979
        %v2981 = vpop.f32.mrf.mxu0
        %2982 = vmatprep.mubr.bf16.mxu0 0
        %2983 = vmatmul.mubr.bf16.gmra.mxu0 %v2755
        %v2984 = vpop.f32.mrf.mxu0
        %v2985 = vadd.f32 0.0, %v2984
        %v2986 = vpop.f32.mrf.mxu0
        %v2987 = vpop.f32.mrf.mxu0
        %v2988 = vadd.f32 0.0, %v2987
        %v2989 = vpop.f32.mrf.mxu0
        %2990 = vmatprep.mubr.bf16.mxu0 0
        %2991 = vmatmul.mubr.bf16.gmra.mxu0 %v2764
        %v2992 = vpop.f32.mrf.mxu0
        %v2993 = vadd.f32 0.0, %v2992
        %v2994 = vpop.f32.mrf.mxu0
        %v2995 = vpop.f32.mrf.mxu0
        %v2996 = vadd.f32 0.0, %v2995
        %v2997 = vpop.f32.mrf.mxu0
        %2998 = vmatprep.mubr.bf16.mxu0 0
        %2999 = vmatmul.mubr.bf16.gmra.mxu0 %v2773
        %v3000 = vpop.f32.mrf.mxu0
        %v3001 = vadd.f32 0.0, %v3000
        %v3002 = vpop.f32.mrf.mxu0
        %v3003 = vpop.f32.mrf.mxu0
        %v3004 = vadd.f32 0.0, %v3003
        %v3005 = vpop.f32.mrf.mxu0
        %3006 = vmatprep.mubr.bf16.mxu0 0
        %3007 = vmatmul.mubr.bf16.gmra.mxu0 %v2782
        %v3008 = vpop.f32.mrf.mxu0
        %v3009 = vadd.f32 0.0, %v3008
        %v3010 = vpop.f32.mrf.mxu0
        %v3011 = vpop.f32.mrf.mxu0
        %v3012 = vadd.f32 0.0, %v3011
        %v3013 = vpop.f32.mrf.mxu0
        %3014 = vmatprep.mubr.bf16.mxu0 0
        %3015 = vmatmul.mubr.bf16.gmra.mxu0 %v2791
        %v3016 = vpop.f32.mrf.mxu0
        %v3017 = vadd.f32 0.0, %v3016
        %v3018 = vpop.f32.mrf.mxu0
        %v3019 = vpop.f32.mrf.mxu0
        %v3020 = vadd.f32 0.0, %v3019
        %v3021 = vpop.f32.mrf.mxu0
        %3022 = vmatprep.mubr.bf16.mxu0 0
        %3023 = vmatmul.mubr.bf16.gmra.mxu0 %v2800
        %v3024 = vpop.f32.mrf.mxu0
        %v3025 = vadd.f32 0.0, %v3024
        %v3026 = vpop.f32.mrf.mxu0
        %v3027 = vpop.f32.mrf.mxu0
        %v3028 = vadd.f32 0.0, %v3027
        %v3029 = vpop.f32.mrf.mxu0
        %3030 = vmatprep.mubr.bf16.mxu0 0
        %3031 = vmatmul.mubr.bf16.gmra.mxu0 %v2809
        %v3032 = vpop.f32.mrf.mxu0
        %v3033 = vadd.f32 0.0, %v3032
        %v3034 = vpop.f32.mrf.mxu0
        %v3035 = vpop.f32.mrf.mxu0
        %v3036 = vadd.f32 0.0, %v3035
        %v3037 = vpop.f32.mrf.mxu0
        %3038 = vmatprep.mubr.bf16.mxu0 0
        %3039 = vmatmul.mubr.bf16.gmra.mxu0 %v2818
        %v3040 = vpop.f32.mrf.mxu0
        %v3041 = vadd.f32 0.0, %v3040
        %v3042 = vpop.f32.mrf.mxu0
        %v3043 = vpop.f32.mrf.mxu0
        %v3044 = vadd.f32 0.0, %v3043
        %v3045 = vpop.f32.mrf.mxu0
        %3046 = vmatprep.mubr.bf16.mxu0 0
        %3047 = vmatmul.mubr.bf16.gmra.mxu0 %v2827
        %v3048 = vpop.f32.mrf.mxu0
        %v3049 = vadd.f32 0.0, %v3048
        %v3050 = vpop.f32.mrf.mxu0
        %v3051 = vpop.f32.mrf.mxu0
        %v3052 = vadd.f32 0.0, %v3051
        %v3053 = vpop.f32.mrf.mxu0
        %3054 = vmatprep.mubr.bf16.mxu0 0
        %3055 = vmatmul.mubr.bf16.gmra.mxu0 %v2836
        %v3056 = vpop.f32.mrf.mxu0
        %v3057 = vadd.f32 0.0, %v3056
        %v3058 = vpop.f32.mrf.mxu0
        %v3059 = vpop.f32.mrf.mxu0
        %v3060 = vadd.f32 0.0, %v3059
        %v3061 = vpop.f32.mrf.mxu0
        %3062 = vmatprep.mubr.bf16.mxu0 0
        %3063 = vmatmul.mubr.bf16.gmra.mxu0 %v2845
        %v3064 = vpop.f32.mrf.mxu0
        %v3065 = vadd.f32 0.0, %v3064
        %v3066 = vpop.f32.mrf.mxu0
        %v3067 = vpop.f32.mrf.mxu0
        %v3068 = vadd.f32 0.0, %v3067
        %v3069 = vpop.f32.mrf.mxu0
        %3070 = vdwg.mxu0
        %v3071 = vadd.f32 %v2238, %v2945
        %v3072 = vadd.f32 %v2241, %v2948
        %v3073 = vadd.f32 %v2246, %v2953
        %v3074 = vadd.f32 %v2249, %v2956
        %v3075 = vadd.f32 %v2254, %v2961
        %v3076 = vadd.f32 %v2257, %v2964
        %v3077 = vadd.f32 %v2262, %v2969
        %v3078 = vadd.f32 %v2265, %v2972
        %v3079 = vadd.f32 %v2270, %v2977
        %v3080 = vadd.f32 %v2273, %v2980
        %v3081 = vadd.f32 %v2278, %v2985
        %v3082 = vadd.f32 %v2281, %v2988
        %v3083 = vadd.f32 %v2286, %v2993
        %v3084 = vadd.f32 %v2289, %v2996
        %v3085 = vadd.f32 %v2294, %v3001
        %v3086 = vadd.f32 %v2297, %v3004
        %v3087 = vadd.f32 %v2302, %v3009
        %v3088 = vadd.f32 %v2305, %v3012
        %v3089 = vadd.f32 %v2310, %v3017
        %v3090 = vadd.f32 %v2313, %v3020
        %v3091 = vadd.f32 %v2318, %v3025
        %v3092 = vadd.f32 %v2321, %v3028
        %v3093 = vadd.f32 %v2326, %v3033
        %v3094 = vadd.f32 %v2329, %v3036
        %v3095 = vadd.f32 %v2334, %v3041
        %v3096 = vadd.f32 %v2337, %v3044
        %v3097 = vadd.f32 %v2342, %v3049
        %v3098 = vadd.f32 %v2345, %v3052
        %v3099 = vadd.f32 %v2350, %v3057
        %v3100 = vadd.f32 %v2353, %v3060
        %v3101 = vadd.f32 %v2358, %v3065
        %v3102 = vadd.f32 %v2361, %v3068
        %vm3103 = vcmp.ne.s16.totalorder %v1527, 0
        %v3104 = vsel %vm3103, 0, %v953
        %v3105 = vsel %vm1663, 0, %v906
        %v3106 = vsel %vm1664, 0, %v908
        %v3107 = vsel %vm1665, 0, %v910
        %v3108 = vsel %vm1666, 0, %v912
        %v3109 = vsel %vm1667, 0, %v914
        %v3110 = vsel %vm1668, 0, %v916
        %v3111 = vsel %vm1669, 0, %v918
        %v3112 = vsel %vm1670, 0, %v920
        %v3113 = vsel %vm1671, 0, %v922
        %v3114 = vsel %vm1672, 0, %v924
        %v3115 = vsel %vm1673, 0, %v926
        %v3116 = vsel %vm1674, 0, %v928
        %v3117 = vsel %vm1675, 0, %v930
        %v3118 = vsel %vm1676, 0, %v932
        %v3119 = vsel %vm1677, 0, %v934
        %v3120 = vsel %vm1678, 0, %v956
        %v3121 = vld [vmem:[#allocation8 + $0xc0] sm:$0xf]
        %v3122 = vld [vmem:[#allocation8 + $0xc4] sm:$0xf]
        %v3123 = vld [vmem:[#allocation8 + $0xc8] sm:$0xf]
        %v3124 = vld [vmem:[#allocation8 + $0xcc] sm:$0xf]
        %v3125 = vld [vmem:[#allocation8 + $0xd0] sm:$0xf]
        %v3126 = vld [vmem:[#allocation8 + $0xd4] sm:$0xf]
        %v3127 = vld [vmem:[#allocation8 + $0xd8] sm:$0xf]
        %v3128 = vld [vmem:[#allocation8 + $0xdc] sm:$0xf]
        %v3129 = vld [vmem:[#allocation8 + $0xe0] sm:$0xf]
        %v3130 = vld [vmem:[#allocation8 + $0xe4] sm:$0xf]
        %v3131 = vld [vmem:[#allocation8 + $0xe8] sm:$0xf]
        %v3132 = vld [vmem:[#allocation8 + $0xec] sm:$0xf]
        %v3133 = vld [vmem:[#allocation8 + $0xf0] sm:$0xf]
        %v3134 = vld [vmem:[#allocation8 + $0xf4] sm:$0xf]
        %v3135 = vld [vmem:[#allocation8 + $0xf8] sm:$0xf]
        %v3136 = vld [vmem:[#allocation8 + $0xfc] sm:$0xf]
        %v3138 = vshrl.u32 %v3104, 16
        %v3140 = vrot.slane %v3138, 3
        %v3141 = vshll.u32 %v3104, 16
        %v3143 = vrot.slane %v3141, 4
        %v3144 = vor.u32 %v3140, %v3143
        %v3146 = vshrl.u32 %v3105, 16
        %v3148 = vrot.slane %v3146, 3
        %v3149 = vshll.u32 %v3105, 16
        %v3151 = vrot.slane %v3149, 4
        %v3152 = vor.u32 %v3148, %v3151
        %v3153 = vsel %vm1987, %v3144, %v3152
        %v3155 = vshrl.u32 %v3106, 16
        %v3157 = vrot.slane %v3155, 3
        %v3158 = vshll.u32 %v3106, 16
        %v3160 = vrot.slane %v3158, 4
        %v3161 = vor.u32 %v3157, %v3160
        %v3162 = vsel %vm1987, %v3152, %v3161
        %v3164 = vshrl.u32 %v3107, 16
        %v3166 = vrot.slane %v3164, 3
        %v3167 = vshll.u32 %v3107, 16
        %v3169 = vrot.slane %v3167, 4
        %v3170 = vor.u32 %v3166, %v3169
        %v3171 = vsel %vm1987, %v3161, %v3170
        %v3173 = vshrl.u32 %v3108, 16
        %v3175 = vrot.slane %v3173, 3
        %v3176 = vshll.u32 %v3108, 16
        %v3178 = vrot.slane %v3176, 4
        %v3179 = vor.u32 %v3175, %v3178
        %v3180 = vsel %vm1987, %v3170, %v3179
        %v3182 = vshrl.u32 %v3109, 16
        %v3184 = vrot.slane %v3182, 3
        %v3185 = vshll.u32 %v3109, 16
        %v3187 = vrot.slane %v3185, 4
        %v3188 = vor.u32 %v3184, %v3187
        %v3189 = vsel %vm1987, %v3179, %v3188
        %v3191 = vshrl.u32 %v3110, 16
        %v3193 = vrot.slane %v3191, 3
        %v3194 = vshll.u32 %v3110, 16
        %v3196 = vrot.slane %v3194, 4
        %v3197 = vor.u32 %v3193, %v3196
        %v3198 = vsel %vm1987, %v3188, %v3197
        %v3200 = vshrl.u32 %v3111, 16
        %v3202 = vrot.slane %v3200, 3
        %v3203 = vshll.u32 %v3111, 16
        %v3205 = vrot.slane %v3203, 4
        %v3206 = vor.u32 %v3202, %v3205
        %v3207 = vsel %vm1987, %v3197, %v3206
        %v3209 = vshrl.u32 %v3112, 16
        %v3211 = vrot.slane %v3209, 3
        %v3212 = vshll.u32 %v3112, 16
        %v3214 = vrot.slane %v3212, 4
        %v3215 = vor.u32 %v3211, %v3214
        %v3216 = vsel %vm1987, %v3206, %v3215
        %v3218 = vshrl.u32 %v3113, 16
        %v3220 = vrot.slane %v3218, 3
        %v3221 = vshll.u32 %v3113, 16
        %v3223 = vrot.slane %v3221, 4
        %v3224 = vor.u32 %v3220, %v3223
        %v3225 = vsel %vm1987, %v3215, %v3224
        %v3227 = vshrl.u32 %v3114, 16
        %v3229 = vrot.slane %v3227, 3
        %v3230 = vshll.u32 %v3114, 16
        %v3232 = vrot.slane %v3230, 4
        %v3233 = vor.u32 %v3229, %v3232
        %v3234 = vsel %vm1987, %v3224, %v3233
        %v3236 = vshrl.u32 %v3115, 16
        %v3238 = vrot.slane %v3236, 3
        %v3239 = vshll.u32 %v3115, 16
        %v3241 = vrot.slane %v3239, 4
        %v3242 = vor.u32 %v3238, %v3241
        %v3243 = vsel %vm1987, %v3233, %v3242
        %v3245 = vshrl.u32 %v3116, 16
        %v3247 = vrot.slane %v3245, 3
        %v3248 = vshll.u32 %v3116, 16
        %v3250 = vrot.slane %v3248, 4
        %v3251 = vor.u32 %v3247, %v3250
        %v3252 = vsel %vm1987, %v3242, %v3251
        %v3254 = vshrl.u32 %v3117, 16
        %v3256 = vrot.slane %v3254, 3
        %v3257 = vshll.u32 %v3117, 16
        %v3259 = vrot.slane %v3257, 4
        %v3260 = vor.u32 %v3256, %v3259
        %v3261 = vsel %vm1987, %v3251, %v3260
        %v3263 = vshrl.u32 %v3118, 16
        %v3265 = vrot.slane %v3263, 3
        %v3266 = vshll.u32 %v3118, 16
        %v3268 = vrot.slane %v3266, 4
        %v3269 = vor.u32 %v3265, %v3268
        %v3270 = vsel %vm1987, %v3260, %v3269
        %v3272 = vshrl.u32 %v3119, 16
        %v3274 = vrot.slane %v3272, 3
        %v3275 = vshll.u32 %v3119, 16
        %v3277 = vrot.slane %v3275, 4
        %v3278 = vor.u32 %v3274, %v3277
        %v3279 = vsel %vm1987, %v3269, %v3278
        %v3281 = vshrl.u32 %v3120, 16
        %v3283 = vrot.slane %v3281, 3
        %v3284 = vshll.u32 %v3120, 16
        %v3286 = vrot.slane %v3284, 4
        %v3287 = vor.u32 %v3283, %v3286
        %v3288 = vsel %vm1987, %v3278, %v3287
        %v3321 = vunpack.c.l.b16 %v3121
        %v3322 = vunpack.c.l.b16 %v3122
        %v3323 = vunpack.c.l.b16 %v3123
        %v3324 = vunpack.c.l.b16 %v3124
        %v3325 = vunpack.c.l.b16 %v3125
        %v3326 = vunpack.c.l.b16 %v3126
        %v3327 = vunpack.c.l.b16 %v3127
        %v3328 = vunpack.c.l.b16 %v3128
        %v3329 = vunpack.c.l.b16 %v3129
        %v3330 = vunpack.c.l.b16 %v3130
        %v3331 = vunpack.c.l.b16 %v3131
        %v3332 = vunpack.c.l.b16 %v3132
        %v3333 = vunpack.c.l.b16 %v3133
        %v3334 = vunpack.c.l.b16 %v3134
        %v3335 = vunpack.c.l.b16 %v3135
        %v3336 = vunpack.c.l.b16 %v3136
        %v3337 = vpack.c.b16 %v3322, %v3321
        %v3338 = vpack.c.b16 %v3324, %v3323
        %v3339 = vpack.c.b16 %v3326, %v3325
        %v3340 = vpack.c.b16 %v3328, %v3327
        %v3341 = vpack.c.b16 %v3330, %v3329
        %v3342 = vpack.c.b16 %v3332, %v3331
        %v3343 = vpack.c.b16 %v3334, %v3333
        %v3344 = vpack.c.b16 %v3336, %v3335
        %3353 = vmatprep.subr.bf16.mxu0 0
        %3354 = vmatpush1.bf16.msra.mxu0 %v3344
        %3355 = vmatprep.subr.bf16.mxu0 0
        %3356 = vmatpush1.bf16.msra.mxu0 %v3343
        %3357 = vmatprep.subr.bf16.mxu0 0
        %3358 = vmatpush1.bf16.msra.mxu0 %v3342
        %3359 = vmatprep.subr.bf16.mxu0 0
        %3360 = vmatpush1.bf16.msra.mxu0 %v3341
        %3361 = vmatprep.subr.bf16.mxu0 0
        %3362 = vmatpush1.bf16.msra.mxu0 %v3340
        %3363 = vmatprep.subr.bf16.mxu0 0
        %3364 = vmatpush1.bf16.msra.mxu0 %v3339
        %3365 = vmatprep.subr.bf16.mxu0 0
        %3366 = vmatpush1.bf16.msra.mxu0 %v3338
        %3367 = vmatprep.subr.bf16.mxu0 0
        %3368 = vmatpush1.bf16.msra.mxu0 %v3337
        %3369 = vmatprep.subr.bf16.mxu0 0
        %3370 = vmatpush2.bf16.msra.mxu0 0
        %3371 = vmatprep.subr.bf16.mxu0 0
        %3372 = vmatpush2.bf16.msra.mxu0 0
        %3373 = vmatprep.subr.bf16.mxu0 0
        %3374 = vmatpush2.bf16.msra.mxu0 0
        %3375 = vmatprep.subr.bf16.mxu0 0
        %3376 = vmatpush2.bf16.msra.mxu0 0
        %3377 = vmatprep.subr.bf16.mxu0 0
        %3378 = vmatpush2.bf16.msra.mxu0 0
        %3379 = vmatprep.subr.bf16.mxu0 0
        %3380 = vmatpush2.bf16.msra.mxu0 0
        %3381 = vmatprep.subr.bf16.mxu0 0
        %3382 = vmatpush2.bf16.msra.mxu0 0
        %3383 = vmatprep.subr.bf16.mxu0 0
        %3384 = vmatpush2.bf16.msra.mxu0 0
        %3385 = vmatprep.mubr.bf16.mxu0 0
        %3386 = vmatmul.mubr.bf16.gmra.mxu0 %v3153
        %v3387 = vpop.f32.mrf.mxu0
        %v3388 = vadd.f32 0.0, %v3387
        %v3389 = vpop.f32.mrf.mxu0
        %v3390 = vpop.f32.mrf.mxu0
        %v3391 = vadd.f32 0.0, %v3390
        %v3392 = vpop.f32.mrf.mxu0
        %3393 = vmatprep.mubr.bf16.mxu0 0
        %3394 = vmatmul.mubr.bf16.gmra.mxu0 %v3162
        %v3395 = vpop.f32.mrf.mxu0
        %v3396 = vadd.f32 0.0, %v3395
        %v3397 = vpop.f32.mrf.mxu0
        %v3398 = vpop.f32.mrf.mxu0
        %v3399 = vadd.f32 0.0, %v3398
        %v3400 = vpop.f32.mrf.mxu0
        %3401 = vmatprep.mubr.bf16.mxu0 0
        %3402 = vmatmul.mubr.bf16.gmra.mxu0 %v3171
        %v3403 = vpop.f32.mrf.mxu0
        %v3404 = vadd.f32 0.0, %v3403
        %v3405 = vpop.f32.mrf.mxu0
        %v3406 = vpop.f32.mrf.mxu0
        %v3407 = vadd.f32 0.0, %v3406
        %v3408 = vpop.f32.mrf.mxu0
        %3409 = vmatprep.mubr.bf16.mxu0 0
        %3410 = vmatmul.mubr.bf16.gmra.mxu0 %v3180
        %v3411 = vpop.f32.mrf.mxu0
        %v3412 = vadd.f32 0.0, %v3411
        %v3413 = vpop.f32.mrf.mxu0
        %v3414 = vpop.f32.mrf.mxu0
        %v3415 = vadd.f32 0.0, %v3414
        %v3416 = vpop.f32.mrf.mxu0
        %3417 = vmatprep.mubr.bf16.mxu0 0
        %3418 = vmatmul.mubr.bf16.gmra.mxu0 %v3189
        %v3419 = vpop.f32.mrf.mxu0
        %v3420 = vadd.f32 0.0, %v3419
        %v3421 = vpop.f32.mrf.mxu0
        %v3422 = vpop.f32.mrf.mxu0
        %v3423 = vadd.f32 0.0, %v3422
        %v3424 = vpop.f32.mrf.mxu0
        %3425 = vmatprep.mubr.bf16.mxu0 0
        %3426 = vmatmul.mubr.bf16.gmra.mxu0 %v3198
        %v3427 = vpop.f32.mrf.mxu0
        %v3428 = vadd.f32 0.0, %v3427
        %v3429 = vpop.f32.mrf.mxu0
        %v3430 = vpop.f32.mrf.mxu0
        %v3431 = vadd.f32 0.0, %v3430
        %v3432 = vpop.f32.mrf.mxu0
        %3433 = vmatprep.mubr.bf16.mxu0 0
        %3434 = vmatmul.mubr.bf16.gmra.mxu0 %v3207
        %v3435 = vpop.f32.mrf.mxu0
        %v3436 = vadd.f32 0.0, %v3435
        %v3437 = vpop.f32.mrf.mxu0
        %v3438 = vpop.f32.mrf.mxu0
        %v3439 = vadd.f32 0.0, %v3438
        %v3440 = vpop.f32.mrf.mxu0
        %3441 = vmatprep.mubr.bf16.mxu0 0
        %3442 = vmatmul.mubr.bf16.gmra.mxu0 %v3216
        %v3443 = vpop.f32.mrf.mxu0
        %v3444 = vadd.f32 0.0, %v3443
        %v3445 = vpop.f32.mrf.mxu0
        %v3446 = vpop.f32.mrf.mxu0
        %v3447 = vadd.f32 0.0, %v3446
        %v3448 = vpop.f32.mrf.mxu0
        %3449 = vmatprep.mubr.bf16.mxu0 0
        %3450 = vmatmul.mubr.bf16.gmra.mxu0 %v3225
        %v3451 = vpop.f32.mrf.mxu0
        %v3452 = vadd.f32 0.0, %v3451
        %v3453 = vpop.f32.mrf.mxu0
        %v3454 = vpop.f32.mrf.mxu0
        %v3455 = vadd.f32 0.0, %v3454
        %v3456 = vpop.f32.mrf.mxu0
        %3457 = vmatprep.mubr.bf16.mxu0 0
        %3458 = vmatmul.mubr.bf16.gmra.mxu0 %v3234
        %v3459 = vpop.f32.mrf.mxu0
        %v3460 = vadd.f32 0.0, %v3459
        %v3461 = vpop.f32.mrf.mxu0
        %v3462 = vpop.f32.mrf.mxu0
        %v3463 = vadd.f32 0.0, %v3462
        %v3464 = vpop.f32.mrf.mxu0
        %3465 = vmatprep.mubr.bf16.mxu0 0
        %3466 = vmatmul.mubr.bf16.gmra.mxu0 %v3243
        %v3467 = vpop.f32.mrf.mxu0
        %v3468 = vadd.f32 0.0, %v3467
        %v3469 = vpop.f32.mrf.mxu0
        %v3470 = vpop.f32.mrf.mxu0
        %v3471 = vadd.f32 0.0, %v3470
        %v3472 = vpop.f32.mrf.mxu0
        %3473 = vmatprep.mubr.bf16.mxu0 0
        %3474 = vmatmul.mubr.bf16.gmra.mxu0 %v3252
        %v3475 = vpop.f32.mrf.mxu0
        %v3476 = vadd.f32 0.0, %v3475
        %v3477 = vpop.f32.mrf.mxu0
        %v3478 = vpop.f32.mrf.mxu0
        %v3479 = vadd.f32 0.0, %v3478
        %v3480 = vpop.f32.mrf.mxu0
        %3481 = vmatprep.mubr.bf16.mxu0 0
        %3482 = vmatmul.mubr.bf16.gmra.mxu0 %v3261
        %v3483 = vpop.f32.mrf.mxu0
        %v3484 = vadd.f32 0.0, %v3483
        %v3485 = vpop.f32.mrf.mxu0
        %v3486 = vpop.f32.mrf.mxu0
        %v3487 = vadd.f32 0.0, %v3486
        %v3488 = vpop.f32.mrf.mxu0
        %3489 = vmatprep.mubr.bf16.mxu0 0
        %3490 = vmatmul.mubr.bf16.gmra.mxu0 %v3270
        %v3491 = vpop.f32.mrf.mxu0
        %v3492 = vadd.f32 0.0, %v3491
        %v3493 = vpop.f32.mrf.mxu0
        %v3494 = vpop.f32.mrf.mxu0
        %v3495 = vadd.f32 0.0, %v3494
        %v3496 = vpop.f32.mrf.mxu0
        %3497 = vmatprep.mubr.bf16.mxu0 0
        %3498 = vmatmul.mubr.bf16.gmra.mxu0 %v3279
        %v3499 = vpop.f32.mrf.mxu0
        %v3500 = vadd.f32 0.0, %v3499
        %v3501 = vpop.f32.mrf.mxu0
        %v3502 = vpop.f32.mrf.mxu0
        %v3503 = vadd.f32 0.0, %v3502
        %v3504 = vpop.f32.mrf.mxu0
        %3505 = vmatprep.mubr.bf16.mxu0 0
        %3506 = vmatmul.mubr.bf16.gmra.mxu0 %v3288
        %v3507 = vpop.f32.mrf.mxu0
        %v3508 = vadd.f32 0.0, %v3507
        %v3509 = vpop.f32.mrf.mxu0
        %v3510 = vpop.f32.mrf.mxu0
        %v3511 = vadd.f32 0.0, %v3510
        %v3512 = vpop.f32.mrf.mxu0
        %3513 = vdwg.mxu0
        %v3514 = vadd.f32 %v3071, %v3388
        %v3515 = vadd.f32 %v3072, %v3391
        %v3516 = vadd.f32 %v3073, %v3396
        %v3517 = vadd.f32 %v3074, %v3399
        %v3518 = vadd.f32 %v3075, %v3404
        %v3519 = vadd.f32 %v3076, %v3407
        %v3520 = vadd.f32 %v3077, %v3412
        %v3521 = vadd.f32 %v3078, %v3415
        %v3522 = vadd.f32 %v3079, %v3420
        %v3523 = vadd.f32 %v3080, %v3423
        %v3524 = vadd.f32 %v3081, %v3428
        %v3525 = vadd.f32 %v3082, %v3431
        %v3526 = vadd.f32 %v3083, %v3436
        %v3527 = vadd.f32 %v3084, %v3439
        %v3528 = vadd.f32 %v3085, %v3444
        %v3529 = vadd.f32 %v3086, %v3447
        %v3530 = vadd.f32 %v3087, %v3452
        %v3531 = vadd.f32 %v3088, %v3455
        %v3532 = vadd.f32 %v3089, %v3460
        %v3533 = vadd.f32 %v3090, %v3463
        %v3534 = vadd.f32 %v3091, %v3468
        %v3535 = vadd.f32 %v3092, %v3471
        %v3536 = vadd.f32 %v3093, %v3476
        %v3537 = vadd.f32 %v3094, %v3479
        %v3538 = vadd.f32 %v3095, %v3484
        %v3539 = vadd.f32 %v3096, %v3487
        %v3540 = vadd.f32 %v3097, %v3492
        %v3541 = vadd.f32 %v3098, %v3495
        %v3542 = vadd.f32 %v3099, %v3500
        %v3543 = vadd.f32 %v3100, %v3503
        %v3544 = vadd.f32 %v3101, %v3508
        %v3545 = vadd.f32 %v3102, %v3511
        %v3546 = vld [vmem:[#allocation8 + $0x100] sm:$0xf]
        %v3547 = vld [vmem:[#allocation8 + $0x104] sm:$0xf]
        %v3548 = vld [vmem:[#allocation8 + $0x108] sm:$0xf]
        %v3549 = vld [vmem:[#allocation8 + $0x10c] sm:$0xf]
        %v3550 = vld [vmem:[#allocation8 + $0x110] sm:$0xf]
        %v3551 = vld [vmem:[#allocation8 + $0x114] sm:$0xf]
        %v3552 = vld [vmem:[#allocation8 + $0x118] sm:$0xf]
        %v3553 = vld [vmem:[#allocation8 + $0x11c] sm:$0xf]
        %v3554 = vld [vmem:[#allocation8 + $0x120] sm:$0xf]
        %v3555 = vld [vmem:[#allocation8 + $0x124] sm:$0xf]
        %v3556 = vld [vmem:[#allocation8 + $0x128] sm:$0xf]
        %v3557 = vld [vmem:[#allocation8 + $0x12c] sm:$0xf]
        %v3558 = vld [vmem:[#allocation8 + $0x130] sm:$0xf]
        %v3559 = vld [vmem:[#allocation8 + $0x134] sm:$0xf]
        %v3560 = vld [vmem:[#allocation8 + $0x138] sm:$0xf]
        %v3561 = vld [vmem:[#allocation8 + $0x13c] sm:$0xf]
        %v3563 = vrot.slane %v956, 4
        %v3564 = vsel %vm903, %v1760, %v3563
        %v3582 = vunpack.c.l.b16 %v3546
        %v3583 = vunpack.c.l.b16 %v3547
        %v3584 = vunpack.c.l.b16 %v3548
        %v3585 = vunpack.c.l.b16 %v3549
        %v3586 = vunpack.c.l.b16 %v3550
        %v3587 = vunpack.c.l.b16 %v3551
        %v3588 = vunpack.c.l.b16 %v3552
        %v3589 = vunpack.c.l.b16 %v3553
        %v3590 = vunpack.c.l.b16 %v3554
        %v3591 = vunpack.c.l.b16 %v3555
        %v3592 = vunpack.c.l.b16 %v3556
        %v3593 = vunpack.c.l.b16 %v3557
        %v3594 = vunpack.c.l.b16 %v3558
        %v3595 = vunpack.c.l.b16 %v3559
        %v3596 = vunpack.c.l.b16 %v3560
        %v3597 = vunpack.c.l.b16 %v3561
        %v3598 = vpack.c.b16 %v3583, %v3582
        %v3599 = vpack.c.b16 %v3585, %v3584
        %v3600 = vpack.c.b16 %v3587, %v3586
        %v3601 = vpack.c.b16 %v3589, %v3588
        %v3602 = vpack.c.b16 %v3591, %v3590
        %v3603 = vpack.c.b16 %v3593, %v3592
        %v3604 = vpack.c.b16 %v3595, %v3594
        %v3605 = vpack.c.b16 %v3597, %v3596
        %3614 = vmatprep.subr.bf16.mxu0 0
        %3615 = vmatpush1.bf16.msra.mxu0 %v3605
        %3616 = vmatprep.subr.bf16.mxu0 0
        %3617 = vmatpush1.bf16.msra.mxu0 %v3604
        %3618 = vmatprep.subr.bf16.mxu0 0
        %3619 = vmatpush1.bf16.msra.mxu0 %v3603
        %3620 = vmatprep.subr.bf16.mxu0 0
        %3621 = vmatpush1.bf16.msra.mxu0 %v3602
        %3622 = vmatprep.subr.bf16.mxu0 0
        %3623 = vmatpush1.bf16.msra.mxu0 %v3601
        %3624 = vmatprep.subr.bf16.mxu0 0
        %3625 = vmatpush1.bf16.msra.mxu0 %v3600
        %3626 = vmatprep.subr.bf16.mxu0 0
        %3627 = vmatpush1.bf16.msra.mxu0 %v3599
        %3628 = vmatprep.subr.bf16.mxu0 0
        %3629 = vmatpush1.bf16.msra.mxu0 %v3598
        %3630 = vmatprep.subr.bf16.mxu0 0
        %3631 = vmatpush2.bf16.msra.mxu0 0
        %3632 = vmatprep.subr.bf16.mxu0 0
        %3633 = vmatpush2.bf16.msra.mxu0 0
        %3634 = vmatprep.subr.bf16.mxu0 0
        %3635 = vmatpush2.bf16.msra.mxu0 0
        %3636 = vmatprep.subr.bf16.mxu0 0
        %3637 = vmatpush2.bf16.msra.mxu0 0
        %3638 = vmatprep.subr.bf16.mxu0 0
        %3639 = vmatpush2.bf16.msra.mxu0 0
        %3640 = vmatprep.subr.bf16.mxu0 0
        %3641 = vmatpush2.bf16.msra.mxu0 0
        %3642 = vmatprep.subr.bf16.mxu0 0
        %3643 = vmatpush2.bf16.msra.mxu0 0
        %3644 = vmatprep.subr.bf16.mxu0 0
        %3645 = vmatpush2.bf16.msra.mxu0 0
        %3646 = vmatprep.mubr.bf16.mxu0 0
        %3647 = vmatmul.mubr.bf16.gmra.mxu0 %v1733
        %v3648 = vpop.f32.mrf.mxu0
        %v3649 = vadd.f32 0.0, %v3648
        %v3650 = vpop.f32.mrf.mxu0
        %v3651 = vpop.f32.mrf.mxu0
        %v3652 = vadd.f32 0.0, %v3651
        %v3653 = vpop.f32.mrf.mxu0
        %3654 = vmatprep.mubr.bf16.mxu0 0
        %3655 = vmatmul.mubr.bf16.gmra.mxu0 %v1735
        %v3656 = vpop.f32.mrf.mxu0
        %v3657 = vadd.f32 0.0, %v3656
        %v3658 = vpop.f32.mrf.mxu0
        %v3659 = vpop.f32.mrf.mxu0
        %v3660 = vadd.f32 0.0, %v3659
        %v3661 = vpop.f32.mrf.mxu0
        %3662 = vmatprep.mubr.bf16.mxu0 0
        %3663 = vmatmul.mubr.bf16.gmra.mxu0 %v1737
        %v3664 = vpop.f32.mrf.mxu0
        %v3665 = vadd.f32 0.0, %v3664
        %v3666 = vpop.f32.mrf.mxu0
        %v3667 = vpop.f32.mrf.mxu0
        %v3668 = vadd.f32 0.0, %v3667
        %v3669 = vpop.f32.mrf.mxu0
        %3670 = vmatprep.mubr.bf16.mxu0 0
        %3671 = vmatmul.mubr.bf16.gmra.mxu0 %v1739
        %v3672 = vpop.f32.mrf.mxu0
        %v3673 = vadd.f32 0.0, %v3672
        %v3674 = vpop.f32.mrf.mxu0
        %v3675 = vpop.f32.mrf.mxu0
        %v3676 = vadd.f32 0.0, %v3675
        %v3677 = vpop.f32.mrf.mxu0
        %3678 = vmatprep.mubr.bf16.mxu0 0
        %3679 = vmatmul.mubr.bf16.gmra.mxu0 %v1741
        %v3680 = vpop.f32.mrf.mxu0
        %v3681 = vadd.f32 0.0, %v3680
        %v3682 = vpop.f32.mrf.mxu0
        %v3683 = vpop.f32.mrf.mxu0
        %v3684 = vadd.f32 0.0, %v3683
        %v3685 = vpop.f32.mrf.mxu0
        %3686 = vmatprep.mubr.bf16.mxu0 0
        %3687 = vmatmul.mubr.bf16.gmra.mxu0 %v1743
        %v3688 = vpop.f32.mrf.mxu0
        %v3689 = vadd.f32 0.0, %v3688
        %v3690 = vpop.f32.mrf.mxu0
        %v3691 = vpop.f32.mrf.mxu0
        %v3692 = vadd.f32 0.0, %v3691
        %v3693 = vpop.f32.mrf.mxu0
        %3694 = vmatprep.mubr.bf16.mxu0 0
        %3695 = vmatmul.mubr.bf16.gmra.mxu0 %v1745
        %v3696 = vpop.f32.mrf.mxu0
        %v3697 = vadd.f32 0.0, %v3696
        %v3698 = vpop.f32.mrf.mxu0
        %v3699 = vpop.f32.mrf.mxu0
        %v3700 = vadd.f32 0.0, %v3699
        %v3701 = vpop.f32.mrf.mxu0
        %3702 = vmatprep.mubr.bf16.mxu0 0
        %3703 = vmatmul.mubr.bf16.gmra.mxu0 %v1747
        %v3704 = vpop.f32.mrf.mxu0
        %v3705 = vadd.f32 0.0, %v3704
        %v3706 = vpop.f32.mrf.mxu0
        %v3707 = vpop.f32.mrf.mxu0
        %v3708 = vadd.f32 0.0, %v3707
        %v3709 = vpop.f32.mrf.mxu0
        %3710 = vmatprep.mubr.bf16.mxu0 0
        %3711 = vmatmul.mubr.bf16.gmra.mxu0 %v1749
        %v3712 = vpop.f32.mrf.mxu0
        %v3713 = vadd.f32 0.0, %v3712
        %v3714 = vpop.f32.mrf.mxu0
        %v3715 = vpop.f32.mrf.mxu0
        %v3716 = vadd.f32 0.0, %v3715
        %v3717 = vpop.f32.mrf.mxu0
        %3718 = vmatprep.mubr.bf16.mxu0 0
        %3719 = vmatmul.mubr.bf16.gmra.mxu0 %v1751
        %v3720 = vpop.f32.mrf.mxu0
        %v3721 = vadd.f32 0.0, %v3720
        %v3722 = vpop.f32.mrf.mxu0
        %v3723 = vpop.f32.mrf.mxu0
        %v3724 = vadd.f32 0.0, %v3723
        %v3725 = vpop.f32.mrf.mxu0
        %3726 = vmatprep.mubr.bf16.mxu0 0
        %3727 = vmatmul.mubr.bf16.gmra.mxu0 %v1753
        %v3728 = vpop.f32.mrf.mxu0
        %v3729 = vadd.f32 0.0, %v3728
        %v3730 = vpop.f32.mrf.mxu0
        %v3731 = vpop.f32.mrf.mxu0
        %v3732 = vadd.f32 0.0, %v3731
        %v3733 = vpop.f32.mrf.mxu0
        %3734 = vmatprep.mubr.bf16.mxu0 0
        %3735 = vmatmul.mubr.bf16.gmra.mxu0 %v1755
        %v3736 = vpop.f32.mrf.mxu0
        %v3737 = vadd.f32 0.0, %v3736
        %v3738 = vpop.f32.mrf.mxu0
        %v3739 = vpop.f32.mrf.mxu0
        %v3740 = vadd.f32 0.0, %v3739
        %v3741 = vpop.f32.mrf.mxu0
        %3742 = vmatprep.mubr.bf16.mxu0 0
        %3743 = vmatmul.mubr.bf16.gmra.mxu0 %v1757
        %v3744 = vpop.f32.mrf.mxu0
        %v3745 = vadd.f32 0.0, %v3744
        %v3746 = vpop.f32.mrf.mxu0
        %v3747 = vpop.f32.mrf.mxu0
        %v3748 = vadd.f32 0.0, %v3747
        %v3749 = vpop.f32.mrf.mxu0
        %3750 = vmatprep.mubr.bf16.mxu0 0
        %3751 = vmatmul.mubr.bf16.gmra.mxu0 %v1759
        %v3752 = vpop.f32.mrf.mxu0
        %v3753 = vadd.f32 0.0, %v3752
        %v3754 = vpop.f32.mrf.mxu0
        %v3755 = vpop.f32.mrf.mxu0
        %v3756 = vadd.f32 0.0, %v3755
        %v3757 = vpop.f32.mrf.mxu0
        %3758 = vmatprep.mubr.bf16.mxu0 0
        %3759 = vmatmul.mubr.bf16.gmra.mxu0 %v1761
        %v3760 = vpop.f32.mrf.mxu0
        %v3761 = vadd.f32 0.0, %v3760
        %v3762 = vpop.f32.mrf.mxu0
        %v3763 = vpop.f32.mrf.mxu0
        %v3764 = vadd.f32 0.0, %v3763
        %v3765 = vpop.f32.mrf.mxu0
        %3766 = vmatprep.mubr.bf16.mxu0 0
        %3767 = vmatmul.mubr.bf16.gmra.mxu0 %v3564
        %v3768 = vpop.f32.mrf.mxu0
        %v3769 = vadd.f32 0.0, %v3768
        %v3770 = vpop.f32.mrf.mxu0
        %v3771 = vpop.f32.mrf.mxu0
        %v3772 = vadd.f32 0.0, %v3771
        %v3773 = vpop.f32.mrf.mxu0
        %3774 = vdwg.mxu0
        %v3775 = vadd.f32 %v3514, %v3649
        %v3776 = vadd.f32 %v3515, %v3652
        %v3777 = vadd.f32 %v3516, %v3657
        %v3778 = vadd.f32 %v3517, %v3660
        %v3779 = vadd.f32 %v3518, %v3665
        %v3780 = vadd.f32 %v3519, %v3668
        %v3781 = vadd.f32 %v3520, %v3673
        %v3782 = vadd.f32 %v3521, %v3676
        %v3783 = vadd.f32 %v3522, %v3681
        %v3784 = vadd.f32 %v3523, %v3684
        %v3785 = vadd.f32 %v3524, %v3689
        %v3786 = vadd.f32 %v3525, %v3692
        %v3787 = vadd.f32 %v3526, %v3697
        %v3788 = vadd.f32 %v3527, %v3700
        %v3789 = vadd.f32 %v3528, %v3705
        %v3790 = vadd.f32 %v3529, %v3708
        %v3791 = vadd.f32 %v3530, %v3713
        %v3792 = vadd.f32 %v3531, %v3716
        %v3793 = vadd.f32 %v3532, %v3721
        %v3794 = vadd.f32 %v3533, %v3724
        %v3795 = vadd.f32 %v3534, %v3729
        %v3796 = vadd.f32 %v3535, %v3732
        %v3797 = vadd.f32 %v3536, %v3737
        %v3798 = vadd.f32 %v3537, %v3740
        %v3799 = vadd.f32 %v3538, %v3745
        %v3800 = vadd.f32 %v3539, %v3748
        %v3801 = vadd.f32 %v3540, %v3753
        %v3802 = vadd.f32 %v3541, %v3756
        %v3803 = vadd.f32 %v3542, %v3761
        %v3804 = vadd.f32 %v3543, %v3764
        %v3805 = vadd.f32 %v3544, %v3769
        %v3806 = vadd.f32 %v3545, %v3772
        %vm3807 = vcmp.ne.s16.totalorder %v2515, 0
        %v3808 = vsel %vm3807, 0, %v953
        %v3809 = vsel %vm2651, 0, %v906
        %v3810 = vsel %vm2652, 0, %v908
        %v3811 = vsel %vm2653, 0, %v910
        %v3812 = vsel %vm2654, 0, %v912
        %v3813 = vsel %vm2655, 0, %v914
        %v3814 = vsel %vm2656, 0, %v916
        %v3815 = vsel %vm2657, 0, %v918
        %v3816 = vsel %vm2658, 0, %v920
        %v3817 = vsel %vm2659, 0, %v922
        %v3818 = vsel %vm2660, 0, %v924
        %v3819 = vsel %vm2661, 0, %v926
        %v3820 = vsel %vm2662, 0, %v928
        %v3821 = vsel %vm2663, 0, %v930
        %v3822 = vsel %vm2664, 0, %v932
        %v3823 = vsel %vm2665, 0, %v934
        %v3824 = vsel %vm2666, 0, %v956
        %v3825 = vld [vmem:[#allocation8 + $0x140] sm:$0xf]
        %v3826 = vld [vmem:[#allocation8 + $0x144] sm:$0xf]
        %v3827 = vld [vmem:[#allocation8 + $0x148] sm:$0xf]
        %v3828 = vld [vmem:[#allocation8 + $0x14c] sm:$0xf]
        %v3829 = vld [vmem:[#allocation8 + $0x150] sm:$0xf]
        %v3830 = vld [vmem:[#allocation8 + $0x154] sm:$0xf]
        %v3831 = vld [vmem:[#allocation8 + $0x158] sm:$0xf]
        %v3832 = vld [vmem:[#allocation8 + $0x15c] sm:$0xf]
        %v3833 = vld [vmem:[#allocation8 + $0x160] sm:$0xf]
        %v3834 = vld [vmem:[#allocation8 + $0x164] sm:$0xf]
        %v3835 = vld [vmem:[#allocation8 + $0x168] sm:$0xf]
        %v3836 = vld [vmem:[#allocation8 + $0x16c] sm:$0xf]
        %v3837 = vld [vmem:[#allocation8 + $0x170] sm:$0xf]
        %v3838 = vld [vmem:[#allocation8 + $0x174] sm:$0xf]
        %v3839 = vld [vmem:[#allocation8 + $0x178] sm:$0xf]
        %v3840 = vld [vmem:[#allocation8 + $0x17c] sm:$0xf]
        %v3842 = vshrl.u32 %v3808, 16
        %v3844 = vrot.slane %v3842, 4
        %v3845 = vshll.u32 %v3808, 16
        %v3847 = vrot.slane %v3845, 5
        %v3848 = vor.u32 %v3844, %v3847
        %v3850 = vshrl.u32 %v3809, 16
        %v3852 = vrot.slane %v3850, 4
        %v3853 = vshll.u32 %v3809, 16
        %v3855 = vrot.slane %v3853, 5
        %v3856 = vor.u32 %v3852, %v3855
        %v3857 = vsel %vm1519, %v3848, %v3856
        %v3859 = vshrl.u32 %v3810, 16
        %v3861 = vrot.slane %v3859, 4
        %v3862 = vshll.u32 %v3810, 16
        %v3864 = vrot.slane %v3862, 5
        %v3865 = vor.u32 %v3861, %v3864
        %v3866 = vsel %vm1519, %v3856, %v3865
        %v3868 = vshrl.u32 %v3811, 16
        %v3870 = vrot.slane %v3868, 4
        %v3871 = vshll.u32 %v3811, 16
        %v3873 = vrot.slane %v3871, 5
        %v3874 = vor.u32 %v3870, %v3873
        %v3875 = vsel %vm1519, %v3865, %v3874
        %v3877 = vshrl.u32 %v3812, 16
        %v3879 = vrot.slane %v3877, 4
        %v3880 = vshll.u32 %v3812, 16
        %v3882 = vrot.slane %v3880, 5
        %v3883 = vor.u32 %v3879, %v3882
        %v3884 = vsel %vm1519, %v3874, %v3883
        %v3886 = vshrl.u32 %v3813, 16
        %v3888 = vrot.slane %v3886, 4
        %v3889 = vshll.u32 %v3813, 16
        %v3891 = vrot.slane %v3889, 5
        %v3892 = vor.u32 %v3888, %v3891
        %v3893 = vsel %vm1519, %v3883, %v3892
        %v3895 = vshrl.u32 %v3814, 16
        %v3897 = vrot.slane %v3895, 4
        %v3898 = vshll.u32 %v3814, 16
        %v3900 = vrot.slane %v3898, 5
        %v3901 = vor.u32 %v3897, %v3900
        %v3902 = vsel %vm1519, %v3892, %v3901
        %v3904 = vshrl.u32 %v3815, 16
        %v3906 = vrot.slane %v3904, 4
        %v3907 = vshll.u32 %v3815, 16
        %v3909 = vrot.slane %v3907, 5
        %v3910 = vor.u32 %v3906, %v3909
        %v3911 = vsel %vm1519, %v3901, %v3910
        %v3913 = vshrl.u32 %v3816, 16
        %v3915 = vrot.slane %v3913, 4
        %v3916 = vshll.u32 %v3816, 16
        %v3918 = vrot.slane %v3916, 5
        %v3919 = vor.u32 %v3915, %v3918
        %v3920 = vsel %vm1519, %v3910, %v3919
        %v3922 = vshrl.u32 %v3817, 16
        %v3924 = vrot.slane %v3922, 4
        %v3925 = vshll.u32 %v3817, 16
        %v3927 = vrot.slane %v3925, 5
        %v3928 = vor.u32 %v3924, %v3927
        %v3929 = vsel %vm1519, %v3919, %v3928
        %v3931 = vshrl.u32 %v3818, 16
        %v3933 = vrot.slane %v3931, 4
        %v3934 = vshll.u32 %v3818, 16
        %v3936 = vrot.slane %v3934, 5
        %v3937 = vor.u32 %v3933, %v3936
        %v3938 = vsel %vm1519, %v3928, %v3937
        %v3940 = vshrl.u32 %v3819, 16
        %v3942 = vrot.slane %v3940, 4
        %v3943 = vshll.u32 %v3819, 16
        %v3945 = vrot.slane %v3943, 5
        %v3946 = vor.u32 %v3942, %v3945
        %v3947 = vsel %vm1519, %v3937, %v3946
        %v3949 = vshrl.u32 %v3820, 16
        %v3951 = vrot.slane %v3949, 4
        %v3952 = vshll.u32 %v3820, 16
        %v3954 = vrot.slane %v3952, 5
        %v3955 = vor.u32 %v3951, %v3954
        %v3956 = vsel %vm1519, %v3946, %v3955
        %v3958 = vshrl.u32 %v3821, 16
        %v3960 = vrot.slane %v3958, 4
        %v3961 = vshll.u32 %v3821, 16
        %v3963 = vrot.slane %v3961, 5
        %v3964 = vor.u32 %v3960, %v3963
        %v3965 = vsel %vm1519, %v3955, %v3964
        %v3967 = vshrl.u32 %v3822, 16
        %v3969 = vrot.slane %v3967, 4
        %v3970 = vshll.u32 %v3822, 16
        %v3972 = vrot.slane %v3970, 5
        %v3973 = vor.u32 %v3969, %v3972
        %v3974 = vsel %vm1519, %v3964, %v3973
        %v3976 = vshrl.u32 %v3823, 16
        %v3978 = vrot.slane %v3976, 4
        %v3979 = vshll.u32 %v3823, 16
        %v3981 = vrot.slane %v3979, 5
        %v3982 = vor.u32 %v3978, %v3981
        %v3983 = vsel %vm1519, %v3973, %v3982
        %v3985 = vshrl.u32 %v3824, 16
        %v3987 = vrot.slane %v3985, 4
        %v3988 = vshll.u32 %v3824, 16
        %v3990 = vrot.slane %v3988, 5
        %v3991 = vor.u32 %v3987, %v3990
        %v3992 = vsel %vm1519, %v3982, %v3991
        %v4025 = vunpack.c.l.b16 %v3825
        %v4026 = vunpack.c.l.b16 %v3826
        %v4027 = vunpack.c.l.b16 %v3827
        %v4028 = vunpack.c.l.b16 %v3828
        %v4029 = vunpack.c.l.b16 %v3829
        %v4030 = vunpack.c.l.b16 %v3830
        %v4031 = vunpack.c.l.b16 %v3831
        %v4032 = vunpack.c.l.b16 %v3832
        %v4033 = vunpack.c.l.b16 %v3833
        %v4034 = vunpack.c.l.b16 %v3834
        %v4035 = vunpack.c.l.b16 %v3835
        %v4036 = vunpack.c.l.b16 %v3836
        %v4037 = vunpack.c.l.b16 %v3837
        %v4038 = vunpack.c.l.b16 %v3838
        %v4039 = vunpack.c.l.b16 %v3839
        %v4040 = vunpack.c.l.b16 %v3840
        %v4041 = vpack.c.b16 %v4026, %v4025
        %v4042 = vpack.c.b16 %v4028, %v4027
        %v4043 = vpack.c.b16 %v4030, %v4029
        %v4044 = vpack.c.b16 %v4032, %v4031
        %v4045 = vpack.c.b16 %v4034, %v4033
        %v4046 = vpack.c.b16 %v4036, %v4035
        %v4047 = vpack.c.b16 %v4038, %v4037
        %v4048 = vpack.c.b16 %v4040, %v4039
        %4057 = vmatprep.subr.bf16.mxu0 0
        %4058 = vmatpush1.bf16.msra.mxu0 %v4048
        %4059 = vmatprep.subr.bf16.mxu0 0
        %4060 = vmatpush1.bf16.msra.mxu0 %v4047
        %4061 = vmatprep.subr.bf16.mxu0 0
        %4062 = vmatpush1.bf16.msra.mxu0 %v4046
        %4063 = vmatprep.subr.bf16.mxu0 0
        %4064 = vmatpush1.bf16.msra.mxu0 %v4045
        %4065 = vmatprep.subr.bf16.mxu0 0
        %4066 = vmatpush1.bf16.msra.mxu0 %v4044
        %4067 = vmatprep.subr.bf16.mxu0 0
        %4068 = vmatpush1.bf16.msra.mxu0 %v4043
        %4069 = vmatprep.subr.bf16.mxu0 0
        %4070 = vmatpush1.bf16.msra.mxu0 %v4042
        %4071 = vmatprep.subr.bf16.mxu0 0
        %4072 = vmatpush1.bf16.msra.mxu0 %v4041
        %4073 = vmatprep.subr.bf16.mxu0 0
        %4074 = vmatpush2.bf16.msra.mxu0 0
        %4075 = vmatprep.subr.bf16.mxu0 0
        %4076 = vmatpush2.bf16.msra.mxu0 0
        %4077 = vmatprep.subr.bf16.mxu0 0
        %4078 = vmatpush2.bf16.msra.mxu0 0
        %4079 = vmatprep.subr.bf16.mxu0 0
        %4080 = vmatpush2.bf16.msra.mxu0 0
        %4081 = vmatprep.subr.bf16.mxu0 0
        %4082 = vmatpush2.bf16.msra.mxu0 0
        %4083 = vmatprep.subr.bf16.mxu0 0
        %4084 = vmatpush2.bf16.msra.mxu0 0
        %4085 = vmatprep.subr.bf16.mxu0 0
        %4086 = vmatpush2.bf16.msra.mxu0 0
        %4087 = vmatprep.subr.bf16.mxu0 0
        %4088 = vmatpush2.bf16.msra.mxu0 0
        %4089 = vmatprep.mubr.bf16.mxu0 0
        %4090 = vmatmul.mubr.bf16.gmra.mxu0 %v3857
        %v4091 = vpop.f32.mrf.mxu0
        %v4092 = vadd.f32 0.0, %v4091
        %v4093 = vpop.f32.mrf.mxu0
        %v4094 = vpop.f32.mrf.mxu0
        %v4095 = vadd.f32 0.0, %v4094
        %v4096 = vpop.f32.mrf.mxu0
        %4097 = vmatprep.mubr.bf16.mxu0 0
        %4098 = vmatmul.mubr.bf16.gmra.mxu0 %v3866
        %v4099 = vpop.f32.mrf.mxu0
        %v4100 = vadd.f32 0.0, %v4099
        %v4101 = vpop.f32.mrf.mxu0
        %v4102 = vpop.f32.mrf.mxu0
        %v4103 = vadd.f32 0.0, %v4102
        %v4104 = vpop.f32.mrf.mxu0
        %4105 = vmatprep.mubr.bf16.mxu0 0
        %4106 = vmatmul.mubr.bf16.gmra.mxu0 %v3875
        %v4107 = vpop.f32.mrf.mxu0
        %v4108 = vadd.f32 0.0, %v4107
        %v4109 = vpop.f32.mrf.mxu0
        %v4110 = vpop.f32.mrf.mxu0
        %v4111 = vadd.f32 0.0, %v4110
        %v4112 = vpop.f32.mrf.mxu0
        %4113 = vmatprep.mubr.bf16.mxu0 0
        %4114 = vmatmul.mubr.bf16.gmra.mxu0 %v3884
        %v4115 = vpop.f32.mrf.mxu0
        %v4116 = vadd.f32 0.0, %v4115
        %v4117 = vpop.f32.mrf.mxu0
        %v4118 = vpop.f32.mrf.mxu0
        %v4119 = vadd.f32 0.0, %v4118
        %v4120 = vpop.f32.mrf.mxu0
        %4121 = vmatprep.mubr.bf16.mxu0 0
        %4122 = vmatmul.mubr.bf16.gmra.mxu0 %v3893
        %v4123 = vpop.f32.mrf.mxu0
        %v4124 = vadd.f32 0.0, %v4123
        %v4125 = vpop.f32.mrf.mxu0
        %v4126 = vpop.f32.mrf.mxu0
        %v4127 = vadd.f32 0.0, %v4126
        %v4128 = vpop.f32.mrf.mxu0
        %4129 = vmatprep.mubr.bf16.mxu0 0
        %4130 = vmatmul.mubr.bf16.gmra.mxu0 %v3902
        %v4131 = vpop.f32.mrf.mxu0
        %v4132 = vadd.f32 0.0, %v4131
        %v4133 = vpop.f32.mrf.mxu0
        %v4134 = vpop.f32.mrf.mxu0
        %v4135 = vadd.f32 0.0, %v4134
        %v4136 = vpop.f32.mrf.mxu0
        %4137 = vmatprep.mubr.bf16.mxu0 0
        %4138 = vmatmul.mubr.bf16.gmra.mxu0 %v3911
        %v4139 = vpop.f32.mrf.mxu0
        %v4140 = vadd.f32 0.0, %v4139
        %v4141 = vpop.f32.mrf.mxu0
        %v4142 = vpop.f32.mrf.mxu0
        %v4143 = vadd.f32 0.0, %v4142
        %v4144 = vpop.f32.mrf.mxu0
        %4145 = vmatprep.mubr.bf16.mxu0 0
        %4146 = vmatmul.mubr.bf16.gmra.mxu0 %v3920
        %v4147 = vpop.f32.mrf.mxu0
        %v4148 = vadd.f32 0.0, %v4147
        %v4149 = vpop.f32.mrf.mxu0
        %v4150 = vpop.f32.mrf.mxu0
        %v4151 = vadd.f32 0.0, %v4150
        %v4152 = vpop.f32.mrf.mxu0
        %4153 = vmatprep.mubr.bf16.mxu0 0
        %4154 = vmatmul.mubr.bf16.gmra.mxu0 %v3929
        %v4155 = vpop.f32.mrf.mxu0
        %v4156 = vadd.f32 0.0, %v4155
        %v4157 = vpop.f32.mrf.mxu0
        %v4158 = vpop.f32.mrf.mxu0
        %v4159 = vadd.f32 0.0, %v4158
        %v4160 = vpop.f32.mrf.mxu0
        %4161 = vmatprep.mubr.bf16.mxu0 0
        %4162 = vmatmul.mubr.bf16.gmra.mxu0 %v3938
        %v4163 = vpop.f32.mrf.mxu0
        %v4164 = vadd.f32 0.0, %v4163
        %v4165 = vpop.f32.mrf.mxu0
        %v4166 = vpop.f32.mrf.mxu0
        %v4167 = vadd.f32 0.0, %v4166
        %v4168 = vpop.f32.mrf.mxu0
        %4169 = vmatprep.mubr.bf16.mxu0 0
        %4170 = vmatmul.mubr.bf16.gmra.mxu0 %v3947
        %v4171 = vpop.f32.mrf.mxu0
        %v4172 = vadd.f32 0.0, %v4171
        %v4173 = vpop.f32.mrf.mxu0
        %v4174 = vpop.f32.mrf.mxu0
        %v4175 = vadd.f32 0.0, %v4174
        %v4176 = vpop.f32.mrf.mxu0
        %4177 = vmatprep.mubr.bf16.mxu0 0
        %4178 = vmatmul.mubr.bf16.gmra.mxu0 %v3956
        %v4179 = vpop.f32.mrf.mxu0
        %v4180 = vadd.f32 0.0, %v4179
        %v4181 = vpop.f32.mrf.mxu0
        %v4182 = vpop.f32.mrf.mxu0
        %v4183 = vadd.f32 0.0, %v4182
        %v4184 = vpop.f32.mrf.mxu0
        %4185 = vmatprep.mubr.bf16.mxu0 0
        %4186 = vmatmul.mubr.bf16.gmra.mxu0 %v3965
        %v4187 = vpop.f32.mrf.mxu0
        %v4188 = vadd.f32 0.0, %v4187
        %v4189 = vpop.f32.mrf.mxu0
        %v4190 = vpop.f32.mrf.mxu0
        %v4191 = vadd.f32 0.0, %v4190
        %v4192 = vpop.f32.mrf.mxu0
        %4193 = vmatprep.mubr.bf16.mxu0 0
        %4194 = vmatmul.mubr.bf16.gmra.mxu0 %v3974
        %v4195 = vpop.f32.mrf.mxu0
        %v4196 = vadd.f32 0.0, %v4195
        %v4197 = vpop.f32.mrf.mxu0
        %v4198 = vpop.f32.mrf.mxu0
        %v4199 = vadd.f32 0.0, %v4198
        %v4200 = vpop.f32.mrf.mxu0
        %4201 = vmatprep.mubr.bf16.mxu0 0
        %4202 = vmatmul.mubr.bf16.gmra.mxu0 %v3983
        %v4203 = vpop.f32.mrf.mxu0
        %v4204 = vadd.f32 0.0, %v4203
        %v4205 = vpop.f32.mrf.mxu0
        %v4206 = vpop.f32.mrf.mxu0
        %v4207 = vadd.f32 0.0, %v4206
        %v4208 = vpop.f32.mrf.mxu0
        %4209 = vmatprep.mubr.bf16.mxu0 0
        %4210 = vmatmul.mubr.bf16.gmra.mxu0 %v3992
        %v4211 = vpop.f32.mrf.mxu0
        %v4212 = vadd.f32 0.0, %v4211
        %v4213 = vpop.f32.mrf.mxu0
        %v4214 = vpop.f32.mrf.mxu0
        %v4215 = vadd.f32 0.0, %v4214
        %v4216 = vpop.f32.mrf.mxu0
        %4217 = vdwg.mxu0
        %v4218 = vadd.f32 %v3775, %v4092
        %v4219 = vadd.f32 %v3776, %v4095
        %v4220 = vadd.f32 %v3777, %v4100
        %v4221 = vadd.f32 %v3778, %v4103
        %v4222 = vadd.f32 %v3779, %v4108
        %v4223 = vadd.f32 %v3780, %v4111
        %v4224 = vadd.f32 %v3781, %v4116
        %v4225 = vadd.f32 %v3782, %v4119
        %v4226 = vadd.f32 %v3783, %v4124
        %v4227 = vadd.f32 %v3784, %v4127
        %v4228 = vadd.f32 %v3785, %v4132
        %v4229 = vadd.f32 %v3786, %v4135
        %v4230 = vadd.f32 %v3787, %v4140
        %v4231 = vadd.f32 %v3788, %v4143
        %v4232 = vadd.f32 %v3789, %v4148
        %v4233 = vadd.f32 %v3790, %v4151
        %v4234 = vadd.f32 %v3791, %v4156
        %v4235 = vadd.f32 %v3792, %v4159
        %v4236 = vadd.f32 %v3793, %v4164
        %v4237 = vadd.f32 %v3794, %v4167
        %v4238 = vadd.f32 %v3795, %v4172
        %v4239 = vadd.f32 %v3796, %v4175
        %v4240 = vadd.f32 %v3797, %v4180
        %v4241 = vadd.f32 %v3798, %v4183
        %v4242 = vadd.f32 %v3799, %v4188
        %v4243 = vadd.f32 %v3800, %v4191
        %v4244 = vadd.f32 %v3801, %v4196
        %v4245 = vadd.f32 %v3802, %v4199
        %v4246 = vadd.f32 %v3803, %v4204
        %v4247 = vadd.f32 %v3804, %v4207
        %v4248 = vadd.f32 %v3805, %v4212
        %v4249 = vadd.f32 %v3806, %v4215
        %v4250 = vsel %vm3103, 0, %v906
        %v4251 = vsel %vm1663, 0, %v908
        %v4252 = vsel %vm1664, 0, %v910
        %v4253 = vsel %vm1665, 0, %v912
        %v4254 = vsel %vm1666, 0, %v914
        %v4255 = vsel %vm1667, 0, %v916
        %v4256 = vsel %vm1668, 0, %v918
        %v4257 = vsel %vm1669, 0, %v920
        %v4258 = vsel %vm1670, 0, %v922
        %v4259 = vsel %vm1671, 0, %v924
        %v4260 = vsel %vm1672, 0, %v926
        %v4261 = vsel %vm1673, 0, %v928
        %v4262 = vsel %vm1674, 0, %v930
        %v4263 = vsel %vm1675, 0, %v932
        %v4264 = vsel %vm1676, 0, %v934
        %v4265 = vsel %vm1677, 0, %v956
        %v4266 = vld [vmem:[#allocation8 + $0x180] sm:$0xf]
        %v4267 = vld [vmem:[#allocation8 + $0x184] sm:$0xf]
        %v4268 = vld [vmem:[#allocation8 + $0x188] sm:$0xf]
        %v4269 = vld [vmem:[#allocation8 + $0x18c] sm:$0xf]
        %v4270 = vld [vmem:[#allocation8 + $0x190] sm:$0xf]
        %v4271 = vld [vmem:[#allocation8 + $0x194] sm:$0xf]
        %v4272 = vld [vmem:[#allocation8 + $0x198] sm:$0xf]
        %v4273 = vld [vmem:[#allocation8 + $0x19c] sm:$0xf]
        %v4274 = vld [vmem:[#allocation8 + $0x1a0] sm:$0xf]
        %v4275 = vld [vmem:[#allocation8 + $0x1a4] sm:$0xf]
        %v4276 = vld [vmem:[#allocation8 + $0x1a8] sm:$0xf]
        %v4277 = vld [vmem:[#allocation8 + $0x1ac] sm:$0xf]
        %v4278 = vld [vmem:[#allocation8 + $0x1b0] sm:$0xf]
        %v4279 = vld [vmem:[#allocation8 + $0x1b4] sm:$0xf]
        %v4280 = vld [vmem:[#allocation8 + $0x1b8] sm:$0xf]
        %v4281 = vld [vmem:[#allocation8 + $0x1bc] sm:$0xf]
        %v4283 = vshrl.u32 %v4250, 16
        %v4285 = vrot.slane %v4283, 3
        %v4286 = vshll.u32 %v4250, 16
        %v4288 = vrot.slane %v4286, 4
        %v4289 = vor.u32 %v4285, %v4288
        %v4291 = vshrl.u32 %v4251, 16
        %v4293 = vrot.slane %v4291, 3
        %v4294 = vshll.u32 %v4251, 16
        %v4296 = vrot.slane %v4294, 4
        %v4297 = vor.u32 %v4293, %v4296
        %v4298 = vsel %vm1987, %v4289, %v4297
        %v4300 = vshrl.u32 %v4252, 16
        %v4302 = vrot.slane %v4300, 3
        %v4303 = vshll.u32 %v4252, 16
        %v4305 = vrot.slane %v4303, 4
        %v4306 = vor.u32 %v4302, %v4305
        %v4307 = vsel %vm1987, %v4297, %v4306
        %v4309 = vshrl.u32 %v4253, 16
        %v4311 = vrot.slane %v4309, 3
        %v4312 = vshll.u32 %v4253, 16
        %v4314 = vrot.slane %v4312, 4
        %v4315 = vor.u32 %v4311, %v4314
        %v4316 = vsel %vm1987, %v4306, %v4315
        %v4318 = vshrl.u32 %v4254, 16
        %v4320 = vrot.slane %v4318, 3
        %v4321 = vshll.u32 %v4254, 16
        %v4323 = vrot.slane %v4321, 4
        %v4324 = vor.u32 %v4320, %v4323
        %v4325 = vsel %vm1987, %v4315, %v4324
        %v4327 = vshrl.u32 %v4255, 16
        %v4329 = vrot.slane %v4327, 3
        %v4330 = vshll.u32 %v4255, 16
        %v4332 = vrot.slane %v4330, 4
        %v4333 = vor.u32 %v4329, %v4332
        %v4334 = vsel %vm1987, %v4324, %v4333
        %v4336 = vshrl.u32 %v4256, 16
        %v4338 = vrot.slane %v4336, 3
        %v4339 = vshll.u32 %v4256, 16
        %v4341 = vrot.slane %v4339, 4
        %v4342 = vor.u32 %v4338, %v4341
        %v4343 = vsel %vm1987, %v4333, %v4342
        %v4345 = vshrl.u32 %v4257, 16
        %v4347 = vrot.slane %v4345, 3
        %v4348 = vshll.u32 %v4257, 16
        %v4350 = vrot.slane %v4348, 4
        %v4351 = vor.u32 %v4347, %v4350
        %v4352 = vsel %vm1987, %v4342, %v4351
        %v4354 = vshrl.u32 %v4258, 16
        %v4356 = vrot.slane %v4354, 3
        %v4357 = vshll.u32 %v4258, 16
        %v4359 = vrot.slane %v4357, 4
        %v4360 = vor.u32 %v4356, %v4359
        %v4361 = vsel %vm1987, %v4351, %v4360
        %v4363 = vshrl.u32 %v4259, 16
        %v4365 = vrot.slane %v4363, 3
        %v4366 = vshll.u32 %v4259, 16
        %v4368 = vrot.slane %v4366, 4
        %v4369 = vor.u32 %v4365, %v4368
        %v4370 = vsel %vm1987, %v4360, %v4369
        %v4372 = vshrl.u32 %v4260, 16
        %v4374 = vrot.slane %v4372, 3
        %v4375 = vshll.u32 %v4260, 16
        %v4377 = vrot.slane %v4375, 4
        %v4378 = vor.u32 %v4374, %v4377
        %v4379 = vsel %vm1987, %v4369, %v4378
        %v4381 = vshrl.u32 %v4261, 16
        %v4383 = vrot.slane %v4381, 3
        %v4384 = vshll.u32 %v4261, 16
        %v4386 = vrot.slane %v4384, 4
        %v4387 = vor.u32 %v4383, %v4386
        %v4388 = vsel %vm1987, %v4378, %v4387
        %v4390 = vshrl.u32 %v4262, 16
        %v4392 = vrot.slane %v4390, 3
        %v4393 = vshll.u32 %v4262, 16
        %v4395 = vrot.slane %v4393, 4
        %v4396 = vor.u32 %v4392, %v4395
        %v4397 = vsel %vm1987, %v4387, %v4396
        %v4399 = vshrl.u32 %v4263, 16
        %v4401 = vrot.slane %v4399, 3
        %v4402 = vshll.u32 %v4263, 16
        %v4404 = vrot.slane %v4402, 4
        %v4405 = vor.u32 %v4401, %v4404
        %v4406 = vsel %vm1987, %v4396, %v4405
        %v4408 = vshrl.u32 %v4264, 16
        %v4410 = vrot.slane %v4408, 3
        %v4411 = vshll.u32 %v4264, 16
        %v4413 = vrot.slane %v4411, 4
        %v4414 = vor.u32 %v4410, %v4413
        %v4415 = vsel %vm1987, %v4405, %v4414
        %v4417 = vshrl.u32 %v4265, 16
        %v4419 = vrot.slane %v4417, 3
        %v4420 = vshll.u32 %v4265, 16
        %v4422 = vrot.slane %v4420, 4
        %v4423 = vor.u32 %v4419, %v4422
        %v4424 = vsel %vm1987, %v4414, %v4423
        %v4425 = vsel %vm1987, %v4423, %v1994
        %v4458 = vunpack.c.l.b16 %v4266
        %v4459 = vunpack.c.l.b16 %v4267
        %v4460 = vunpack.c.l.b16 %v4268
        %v4461 = vunpack.c.l.b16 %v4269
        %v4462 = vunpack.c.l.b16 %v4270
        %v4463 = vunpack.c.l.b16 %v4271
        %v4464 = vunpack.c.l.b16 %v4272
        %v4465 = vunpack.c.l.b16 %v4273
        %v4466 = vunpack.c.l.b16 %v4274
        %v4467 = vunpack.c.l.b16 %v4275
        %v4468 = vunpack.c.l.b16 %v4276
        %v4469 = vunpack.c.l.b16 %v4277
        %v4470 = vunpack.c.l.b16 %v4278
        %v4471 = vunpack.c.l.b16 %v4279
        %v4472 = vunpack.c.l.b16 %v4280
        %v4473 = vunpack.c.l.b16 %v4281
        %v4474 = vpack.c.b16 %v4459, %v4458
        %v4475 = vpack.c.b16 %v4461, %v4460
        %v4476 = vpack.c.b16 %v4463, %v4462
        %v4477 = vpack.c.b16 %v4465, %v4464
        %v4478 = vpack.c.b16 %v4467, %v4466
        %v4479 = vpack.c.b16 %v4469, %v4468
        %v4480 = vpack.c.b16 %v4471, %v4470
        %v4481 = vpack.c.b16 %v4473, %v4472
        %4490 = vmatprep.subr.bf16.mxu0 0
        %4491 = vmatpush1.bf16.msra.mxu0 %v4481
        %4492 = vmatprep.subr.bf16.mxu0 0
        %4493 = vmatpush1.bf16.msra.mxu0 %v4480
        %4494 = vmatprep.subr.bf16.mxu0 0
        %4495 = vmatpush1.bf16.msra.mxu0 %v4479
        %4496 = vmatprep.subr.bf16.mxu0 0
        %4497 = vmatpush1.bf16.msra.mxu0 %v4478
        %4498 = vmatprep.subr.bf16.mxu0 0
        %4499 = vmatpush1.bf16.msra.mxu0 %v4477
        %4500 = vmatprep.subr.bf16.mxu0 0
        %4501 = vmatpush1.bf16.msra.mxu0 %v4476
        %4502 = vmatprep.subr.bf16.mxu0 0
        %4503 = vmatpush1.bf16.msra.mxu0 %v4475
        %4504 = vmatprep.subr.bf16.mxu0 0
        %4505 = vmatpush1.bf16.msra.mxu0 %v4474
        %4506 = vmatprep.subr.bf16.mxu0 0
        %4507 = vmatpush2.bf16.msra.mxu0 0
        %4508 = vmatprep.subr.bf16.mxu0 0
        %4509 = vmatpush2.bf16.msra.mxu0 0
        %4510 = vmatprep.subr.bf16.mxu0 0
        %4511 = vmatpush2.bf16.msra.mxu0 0
        %4512 = vmatprep.subr.bf16.mxu0 0
        %4513 = vmatpush2.bf16.msra.mxu0 0
        %4514 = vmatprep.subr.bf16.mxu0 0
        %4515 = vmatpush2.bf16.msra.mxu0 0
        %4516 = vmatprep.subr.bf16.mxu0 0
        %4517 = vmatpush2.bf16.msra.mxu0 0
        %4518 = vmatprep.subr.bf16.mxu0 0
        %4519 = vmatpush2.bf16.msra.mxu0 0
        %4520 = vmatprep.subr.bf16.mxu0 0
        %4521 = vmatpush2.bf16.msra.mxu0 0
        %4522 = vmatprep.mubr.bf16.mxu0 0
        %4523 = vmatmul.mubr.bf16.gmra.mxu0 %v4298
        %v4524 = vpop.f32.mrf.mxu0
        %v4525 = vadd.f32 0.0, %v4524
        %v4526 = vpop.f32.mrf.mxu0
        %v4527 = vpop.f32.mrf.mxu0
        %v4528 = vadd.f32 0.0, %v4527
        %v4529 = vpop.f32.mrf.mxu0
        %4530 = vmatprep.mubr.bf16.mxu0 0
        %4531 = vmatmul.mubr.bf16.gmra.mxu0 %v4307
        %v4532 = vpop.f32.mrf.mxu0
        %v4533 = vadd.f32 0.0, %v4532
        %v4534 = vpop.f32.mrf.mxu0
        %v4535 = vpop.f32.mrf.mxu0
        %v4536 = vadd.f32 0.0, %v4535
        %v4537 = vpop.f32.mrf.mxu0
        %4538 = vmatprep.mubr.bf16.mxu0 0
        %4539 = vmatmul.mubr.bf16.gmra.mxu0 %v4316
        %v4540 = vpop.f32.mrf.mxu0
        %v4541 = vadd.f32 0.0, %v4540
        %v4542 = vpop.f32.mrf.mxu0
        %v4543 = vpop.f32.mrf.mxu0
        %v4544 = vadd.f32 0.0, %v4543
        %v4545 = vpop.f32.mrf.mxu0
        %4546 = vmatprep.mubr.bf16.mxu0 0
        %4547 = vmatmul.mubr.bf16.gmra.mxu0 %v4325
        %v4548 = vpop.f32.mrf.mxu0
        %v4549 = vadd.f32 0.0, %v4548
        %v4550 = vpop.f32.mrf.mxu0
        %v4551 = vpop.f32.mrf.mxu0
        %v4552 = vadd.f32 0.0, %v4551
        %v4553 = vpop.f32.mrf.mxu0
        %4554 = vmatprep.mubr.bf16.mxu0 0
        %4555 = vmatmul.mubr.bf16.gmra.mxu0 %v4334
        %v4556 = vpop.f32.mrf.mxu0
        %v4557 = vadd.f32 0.0, %v4556
        %v4558 = vpop.f32.mrf.mxu0
        %v4559 = vpop.f32.mrf.mxu0
        %v4560 = vadd.f32 0.0, %v4559
        %v4561 = vpop.f32.mrf.mxu0
        %4562 = vmatprep.mubr.bf16.mxu0 0
        %4563 = vmatmul.mubr.bf16.gmra.mxu0 %v4343
        %v4564 = vpop.f32.mrf.mxu0
        %v4565 = vadd.f32 0.0, %v4564
        %v4566 = vpop.f32.mrf.mxu0
        %v4567 = vpop.f32.mrf.mxu0
        %v4568 = vadd.f32 0.0, %v4567
        %v4569 = vpop.f32.mrf.mxu0
        %4570 = vmatprep.mubr.bf16.mxu0 0
        %4571 = vmatmul.mubr.bf16.gmra.mxu0 %v4352
        %v4572 = vpop.f32.mrf.mxu0
        %v4573 = vadd.f32 0.0, %v4572
        %v4574 = vpop.f32.mrf.mxu0
        %v4575 = vpop.f32.mrf.mxu0
        %v4576 = vadd.f32 0.0, %v4575
        %v4577 = vpop.f32.mrf.mxu0
        %4578 = vmatprep.mubr.bf16.mxu0 0
        %4579 = vmatmul.mubr.bf16.gmra.mxu0 %v4361
        %v4580 = vpop.f32.mrf.mxu0
        %v4581 = vadd.f32 0.0, %v4580
        %v4582 = vpop.f32.mrf.mxu0
        %v4583 = vpop.f32.mrf.mxu0
        %v4584 = vadd.f32 0.0, %v4583
        %v4585 = vpop.f32.mrf.mxu0
        %4586 = vmatprep.mubr.bf16.mxu0 0
        %4587 = vmatmul.mubr.bf16.gmra.mxu0 %v4370
        %v4588 = vpop.f32.mrf.mxu0
        %v4589 = vadd.f32 0.0, %v4588
        %v4590 = vpop.f32.mrf.mxu0
        %v4591 = vpop.f32.mrf.mxu0
        %v4592 = vadd.f32 0.0, %v4591
        %v4593 = vpop.f32.mrf.mxu0
        %4594 = vmatprep.mubr.bf16.mxu0 0
        %4595 = vmatmul.mubr.bf16.gmra.mxu0 %v4379
        %v4596 = vpop.f32.mrf.mxu0
        %v4597 = vadd.f32 0.0, %v4596
        %v4598 = vpop.f32.mrf.mxu0
        %v4599 = vpop.f32.mrf.mxu0
        %v4600 = vadd.f32 0.0, %v4599
        %v4601 = vpop.f32.mrf.mxu0
        %4602 = vmatprep.mubr.bf16.mxu0 0
        %4603 = vmatmul.mubr.bf16.gmra.mxu0 %v4388
        %v4604 = vpop.f32.mrf.mxu0
        %v4605 = vadd.f32 0.0, %v4604
        %v4606 = vpop.f32.mrf.mxu0
        %v4607 = vpop.f32.mrf.mxu0
        %v4608 = vadd.f32 0.0, %v4607
        %v4609 = vpop.f32.mrf.mxu0
        %4610 = vmatprep.mubr.bf16.mxu0 0
        %4611 = vmatmul.mubr.bf16.gmra.mxu0 %v4397
        %v4612 = vpop.f32.mrf.mxu0
        %v4613 = vadd.f32 0.0, %v4612
        %v4614 = vpop.f32.mrf.mxu0
        %v4615 = vpop.f32.mrf.mxu0
        %v4616 = vadd.f32 0.0, %v4615
        %v4617 = vpop.f32.mrf.mxu0
        %4618 = vmatprep.mubr.bf16.mxu0 0
        %4619 = vmatmul.mubr.bf16.gmra.mxu0 %v4406
        %v4620 = vpop.f32.mrf.mxu0
        %v4621 = vadd.f32 0.0, %v4620
        %v4622 = vpop.f32.mrf.mxu0
        %v4623 = vpop.f32.mrf.mxu0
        %v4624 = vadd.f32 0.0, %v4623
        %v4625 = vpop.f32.mrf.mxu0
        %4626 = vmatprep.mubr.bf16.mxu0 0
        %4627 = vmatmul.mubr.bf16.gmra.mxu0 %v4415
        %v4628 = vpop.f32.mrf.mxu0
        %v4629 = vadd.f32 0.0, %v4628
        %v4630 = vpop.f32.mrf.mxu0
        %v4631 = vpop.f32.mrf.mxu0
        %v4632 = vadd.f32 0.0, %v4631
        %v4633 = vpop.f32.mrf.mxu0
        %4634 = vmatprep.mubr.bf16.mxu0 0
        %4635 = vmatmul.mubr.bf16.gmra.mxu0 %v4424
        %v4636 = vpop.f32.mrf.mxu0
        %v4637 = vadd.f32 0.0, %v4636
        %v4638 = vpop.f32.mrf.mxu0
        %v4639 = vpop.f32.mrf.mxu0
        %v4640 = vadd.f32 0.0, %v4639
        %v4641 = vpop.f32.mrf.mxu0
        %4642 = vmatprep.mubr.bf16.mxu0 0
        %4643 = vmatmul.mubr.bf16.gmra.mxu0 %v4425
        %v4644 = vpop.f32.mrf.mxu0
        %v4645 = vadd.f32 0.0, %v4644
        %v4646 = vpop.f32.mrf.mxu0
        %v4647 = vpop.f32.mrf.mxu0
        %v4648 = vadd.f32 0.0, %v4647
        %v4649 = vpop.f32.mrf.mxu0
        %4650 = vdwg.mxu0
        %v4651 = vadd.f32 %v4218, %v4525
        %v4652 = vadd.f32 %v4219, %v4528
        %v4653 = vadd.f32 %v4220, %v4533
        %v4654 = vadd.f32 %v4221, %v4536
        %v4655 = vadd.f32 %v4222, %v4541
        %v4656 = vadd.f32 %v4223, %v4544
        %v4657 = vadd.f32 %v4224, %v4549
        %v4658 = vadd.f32 %v4225, %v4552
        %v4659 = vadd.f32 %v4226, %v4557
        %v4660 = vadd.f32 %v4227, %v4560
        %v4661 = vadd.f32 %v4228, %v4565
        %v4662 = vadd.f32 %v4229, %v4568
        %v4663 = vadd.f32 %v4230, %v4573
        %v4664 = vadd.f32 %v4231, %v4576
        %v4665 = vadd.f32 %v4232, %v4581
        %v4666 = vadd.f32 %v4233, %v4584
        %v4667 = vadd.f32 %v4234, %v4589
        %v4668 = vadd.f32 %v4235, %v4592
        %v4669 = vadd.f32 %v4236, %v4597
        %v4670 = vadd.f32 %v4237, %v4600
        %v4671 = vadd.f32 %v4238, %v4605
        %v4672 = vadd.f32 %v4239, %v4608
        %v4673 = vadd.f32 %v4240, %v4613
        %v4674 = vadd.f32 %v4241, %v4616
        %v4675 = vadd.f32 %v4242, %v4621
        %v4676 = vadd.f32 %v4243, %v4624
        %v4677 = vadd.f32 %v4244, %v4629
        %v4678 = vadd.f32 %v4245, %v4632
        %v4679 = vadd.f32 %v4246, %v4637
        %v4680 = vadd.f32 %v4247, %v4640
        %v4681 = vadd.f32 %v4248, %v4645
        %v4682 = vadd.f32 %v4249, %v4648
        %v4683 = vld [vmem:[#allocation8 + $0x1c0] sm:$0xf]
        %v4684 = vld [vmem:[#allocation8 + $0x1c4] sm:$0xf]
        %v4685 = vld [vmem:[#allocation8 + $0x1c8] sm:$0xf]
        %v4686 = vld [vmem:[#allocation8 + $0x1cc] sm:$0xf]
        %v4687 = vld [vmem:[#allocation8 + $0x1d0] sm:$0xf]
        %v4688 = vld [vmem:[#allocation8 + $0x1d4] sm:$0xf]
        %v4689 = vld [vmem:[#allocation8 + $0x1d8] sm:$0xf]
        %v4690 = vld [vmem:[#allocation8 + $0x1dc] sm:$0xf]
        %v4691 = vld [vmem:[#allocation8 + $0x1e0] sm:$0xf]
        %v4692 = vld [vmem:[#allocation8 + $0x1e4] sm:$0xf]
        %v4693 = vld [vmem:[#allocation8 + $0x1e8] sm:$0xf]
        %v4694 = vld [vmem:[#allocation8 + $0x1ec] sm:$0xf]
        %v4695 = vld [vmem:[#allocation8 + $0x1f0] sm:$0xf]
        %v4696 = vld [vmem:[#allocation8 + $0x1f4] sm:$0xf]
        %v4697 = vld [vmem:[#allocation8 + $0x1f8] sm:$0xf]
        %v4698 = vld [vmem:[#allocation8 + $0x1fc] sm:$0xf]
        %v4699 = vsel %vm903, %v3563, %v1729
        %v4717 = vunpack.c.l.b16 %v4683
        %v4718 = vunpack.c.l.b16 %v4684
        %v4719 = vunpack.c.l.b16 %v4685
        %v4720 = vunpack.c.l.b16 %v4686
        %v4721 = vunpack.c.l.b16 %v4687
        %v4722 = vunpack.c.l.b16 %v4688
        %v4723 = vunpack.c.l.b16 %v4689
        %v4724 = vunpack.c.l.b16 %v4690
        %v4725 = vunpack.c.l.b16 %v4691
        %v4726 = vunpack.c.l.b16 %v4692
        %v4727 = vunpack.c.l.b16 %v4693
        %v4728 = vunpack.c.l.b16 %v4694
        %v4729 = vunpack.c.l.b16 %v4695
        %v4730 = vunpack.c.l.b16 %v4696
        %v4731 = vunpack.c.l.b16 %v4697
        %v4732 = vunpack.c.l.b16 %v4698
        %v4733 = vpack.c.b16 %v4718, %v4717
        %v4734 = vpack.c.b16 %v4720, %v4719
        %v4735 = vpack.c.b16 %v4722, %v4721
        %v4736 = vpack.c.b16 %v4724, %v4723
        %v4737 = vpack.c.b16 %v4726, %v4725
        %v4738 = vpack.c.b16 %v4728, %v4727
        %v4739 = vpack.c.b16 %v4730, %v4729
        %v4740 = vpack.c.b16 %v4732, %v4731
        %4749 = vmatprep.subr.bf16.mxu0 0
        %4750 = vmatpush1.bf16.msra.mxu0 %v4740
        %4751 = vmatprep.subr.bf16.mxu0 0
        %4752 = vmatpush1.bf16.msra.mxu0 %v4739
        %4753 = vmatprep.subr.bf16.mxu0 0
        %4754 = vmatpush1.bf16.msra.mxu0 %v4738
        %4755 = vmatprep.subr.bf16.mxu0 0
        %4756 = vmatpush1.bf16.msra.mxu0 %v4737
        %4757 = vmatprep.subr.bf16.mxu0 0
        %4758 = vmatpush1.bf16.msra.mxu0 %v4736
        %4759 = vmatprep.subr.bf16.mxu0 0
        %4760 = vmatpush1.bf16.msra.mxu0 %v4735
        %4761 = vmatprep.subr.bf16.mxu0 0
        %4762 = vmatpush1.bf16.msra.mxu0 %v4734
        %4763 = vmatprep.subr.bf16.mxu0 0
        %4764 = vmatpush1.bf16.msra.mxu0 %v4733
        %4765 = vmatprep.subr.bf16.mxu0 0
        %4766 = vmatpush2.bf16.msra.mxu0 0
        %4767 = vmatprep.subr.bf16.mxu0 0
        %4768 = vmatpush2.bf16.msra.mxu0 0
        %4769 = vmatprep.subr.bf16.mxu0 0
        %4770 = vmatpush2.bf16.msra.mxu0 0
        %4771 = vmatprep.subr.bf16.mxu0 0
        %4772 = vmatpush2.bf16.msra.mxu0 0
        %4773 = vmatprep.subr.bf16.mxu0 0
        %4774 = vmatpush2.bf16.msra.mxu0 0
        %4775 = vmatprep.subr.bf16.mxu0 0
        %4776 = vmatpush2.bf16.msra.mxu0 0
        %4777 = vmatprep.subr.bf16.mxu0 0
        %4778 = vmatpush2.bf16.msra.mxu0 0
        %4779 = vmatprep.subr.bf16.mxu0 0
        %4780 = vmatpush2.bf16.msra.mxu0 0
        %4781 = vmatprep.mubr.bf16.mxu0 0
        %4782 = vmatmul.mubr.bf16.gmra.mxu0 %v1735
        %v4783 = vpop.f32.mrf.mxu0
        %v4784 = vadd.f32 0.0, %v4783
        %v4785 = vpop.f32.mrf.mxu0
        %v4786 = vpop.f32.mrf.mxu0
        %v4787 = vadd.f32 0.0, %v4786
        %v4788 = vpop.f32.mrf.mxu0
        %4789 = vmatprep.mubr.bf16.mxu0 0
        %4790 = vmatmul.mubr.bf16.gmra.mxu0 %v1737
        %v4791 = vpop.f32.mrf.mxu0
        %v4792 = vadd.f32 0.0, %v4791
        %v4793 = vpop.f32.mrf.mxu0
        %v4794 = vpop.f32.mrf.mxu0
        %v4795 = vadd.f32 0.0, %v4794
        %v4796 = vpop.f32.mrf.mxu0
        %4797 = vmatprep.mubr.bf16.mxu0 0
        %4798 = vmatmul.mubr.bf16.gmra.mxu0 %v1739
        %v4799 = vpop.f32.mrf.mxu0
        %v4800 = vadd.f32 0.0, %v4799
        %v4801 = vpop.f32.mrf.mxu0
        %v4802 = vpop.f32.mrf.mxu0
        %v4803 = vadd.f32 0.0, %v4802
        %v4804 = vpop.f32.mrf.mxu0
        %4805 = vmatprep.mubr.bf16.mxu0 0
        %4806 = vmatmul.mubr.bf16.gmra.mxu0 %v1741
        %v4807 = vpop.f32.mrf.mxu0
        %v4808 = vadd.f32 0.0, %v4807
        %v4809 = vpop.f32.mrf.mxu0
        %v4810 = vpop.f32.mrf.mxu0
        %v4811 = vadd.f32 0.0, %v4810
        %v4812 = vpop.f32.mrf.mxu0
        %4813 = vmatprep.mubr.bf16.mxu0 0
        %4814 = vmatmul.mubr.bf16.gmra.mxu0 %v1743
        %v4815 = vpop.f32.mrf.mxu0
        %v4816 = vadd.f32 0.0, %v4815
        %v4817 = vpop.f32.mrf.mxu0
        %v4818 = vpop.f32.mrf.mxu0
        %v4819 = vadd.f32 0.0, %v4818
        %v4820 = vpop.f32.mrf.mxu0
        %4821 = vmatprep.mubr.bf16.mxu0 0
        %4822 = vmatmul.mubr.bf16.gmra.mxu0 %v1745
        %v4823 = vpop.f32.mrf.mxu0
        %v4824 = vadd.f32 0.0, %v4823
        %v4825 = vpop.f32.mrf.mxu0
        %v4826 = vpop.f32.mrf.mxu0
        %v4827 = vadd.f32 0.0, %v4826
        %v4828 = vpop.f32.mrf.mxu0
        %4829 = vmatprep.mubr.bf16.mxu0 0
        %4830 = vmatmul.mubr.bf16.gmra.mxu0 %v1747
        %v4831 = vpop.f32.mrf.mxu0
        %v4832 = vadd.f32 0.0, %v4831
        %v4833 = vpop.f32.mrf.mxu0
        %v4834 = vpop.f32.mrf.mxu0
        %v4835 = vadd.f32 0.0, %v4834
        %v4836 = vpop.f32.mrf.mxu0
        %4837 = vmatprep.mubr.bf16.mxu0 0
        %4838 = vmatmul.mubr.bf16.gmra.mxu0 %v1749
        %v4839 = vpop.f32.mrf.mxu0
        %v4840 = vadd.f32 0.0, %v4839
        %v4841 = vpop.f32.mrf.mxu0
        %v4842 = vpop.f32.mrf.mxu0
        %v4843 = vadd.f32 0.0, %v4842
        %v4844 = vpop.f32.mrf.mxu0
        %4845 = vmatprep.mubr.bf16.mxu0 0
        %4846 = vmatmul.mubr.bf16.gmra.mxu0 %v1751
        %v4847 = vpop.f32.mrf.mxu0
        %v4848 = vadd.f32 0.0, %v4847
        %v4849 = vpop.f32.mrf.mxu0
        %v4850 = vpop.f32.mrf.mxu0
        %v4851 = vadd.f32 0.0, %v4850
        %v4852 = vpop.f32.mrf.mxu0
        %4853 = vmatprep.mubr.bf16.mxu0 0
        %4854 = vmatmul.mubr.bf16.gmra.mxu0 %v1753
        %v4855 = vpop.f32.mrf.mxu0
        %v4856 = vadd.f32 0.0, %v4855
        %v4857 = vpop.f32.mrf.mxu0
        %v4858 = vpop.f32.mrf.mxu0
        %v4859 = vadd.f32 0.0, %v4858
        %v4860 = vpop.f32.mrf.mxu0
        %4861 = vmatprep.mubr.bf16.mxu0 0
        %4862 = vmatmul.mubr.bf16.gmra.mxu0 %v1755
        %v4863 = vpop.f32.mrf.mxu0
        %v4864 = vadd.f32 0.0, %v4863
        %v4865 = vpop.f32.mrf.mxu0
        %v4866 = vpop.f32.mrf.mxu0
        %v4867 = vadd.f32 0.0, %v4866
        %v4868 = vpop.f32.mrf.mxu0
        %4869 = vmatprep.mubr.bf16.mxu0 0
        %4870 = vmatmul.mubr.bf16.gmra.mxu0 %v1757
        %v4871 = vpop.f32.mrf.mxu0
        %v4872 = vadd.f32 0.0, %v4871
        %v4873 = vpop.f32.mrf.mxu0
        %v4874 = vpop.f32.mrf.mxu0
        %v4875 = vadd.f32 0.0, %v4874
        %v4876 = vpop.f32.mrf.mxu0
        %4877 = vmatprep.mubr.bf16.mxu0 0
        %4878 = vmatmul.mubr.bf16.gmra.mxu0 %v1759
        %v4879 = vpop.f32.mrf.mxu0
        %v4880 = vadd.f32 0.0, %v4879
        %v4881 = vpop.f32.mrf.mxu0
        %v4882 = vpop.f32.mrf.mxu0
        %v4883 = vadd.f32 0.0, %v4882
        %v4884 = vpop.f32.mrf.mxu0
        %4885 = vmatprep.mubr.bf16.mxu0 0
        %4886 = vmatmul.mubr.bf16.gmra.mxu0 %v1761
        %v4887 = vpop.f32.mrf.mxu0
        %v4888 = vadd.f32 0.0, %v4887
        %v4889 = vpop.f32.mrf.mxu0
        %v4890 = vpop.f32.mrf.mxu0
        %v4891 = vadd.f32 0.0, %v4890
        %v4892 = vpop.f32.mrf.mxu0
        %4893 = vmatprep.mubr.bf16.mxu0 0
        %4894 = vmatmul.mubr.bf16.gmra.mxu0 %v3564
        %v4895 = vpop.f32.mrf.mxu0
        %v4896 = vadd.f32 0.0, %v4895
        %v4897 = vpop.f32.mrf.mxu0
        %v4898 = vpop.f32.mrf.mxu0
        %v4899 = vadd.f32 0.0, %v4898
        %v4900 = vpop.f32.mrf.mxu0
        %4901 = vmatprep.mubr.bf16.mxu0 0
        %4902 = vmatmul.mubr.bf16.gmra.mxu0 %v4699
        %v4903 = vpop.f32.mrf.mxu0
        %v4904 = vadd.f32 0.0, %v4903
        %v4905 = vpop.f32.mrf.mxu0
        %v4906 = vpop.f32.mrf.mxu0
        %v4907 = vadd.f32 0.0, %v4906
        %v4908 = vpop.f32.mrf.mxu0
        %4909 = vdwg.mxu0
        %v4910 = vadd.f32 %v4651, %v4784
        %v4911 = vadd.f32 %v4652, %v4787
        %v4912 = vadd.f32 %v4653, %v4792
        %v4913 = vadd.f32 %v4654, %v4795
        %v4914 = vadd.f32 %v4655, %v4800
        %v4915 = vadd.f32 %v4656, %v4803
        %v4916 = vadd.f32 %v4657, %v4808
        %v4917 = vadd.f32 %v4658, %v4811
        %v4918 = vadd.f32 %v4659, %v4816
        %v4919 = vadd.f32 %v4660, %v4819
        %v4920 = vadd.f32 %v4661, %v4824
        %v4921 = vadd.f32 %v4662, %v4827
        %v4922 = vadd.f32 %v4663, %v4832
        %v4923 = vadd.f32 %v4664, %v4835
        %v4924 = vadd.f32 %v4665, %v4840
        %v4925 = vadd.f32 %v4666, %v4843
        %v4926 = vadd.f32 %v4667, %v4848
        %v4927 = vadd.f32 %v4668, %v4851
        %v4928 = vadd.f32 %v4669, %v4856
        %v4929 = vadd.f32 %v4670, %v4859
        %v4930 = vadd.f32 %v4671, %v4864
        %v4931 = vadd.f32 %v4672, %v4867
        %v4932 = vadd.f32 %v4673, %v4872
        %v4933 = vadd.f32 %v4674, %v4875
        %v4934 = vadd.f32 %v4675, %v4880
        %v4935 = vadd.f32 %v4676, %v4883
        %v4936 = vadd.f32 %v4677, %v4888
        %v4937 = vadd.f32 %v4678, %v4891
        %v4938 = vadd.f32 %v4679, %v4896
        %v4939 = vadd.f32 %v4680, %v4899
        %v4940 = vadd.f32 %v4681, %v4904
        %v4941 = vadd.f32 %v4682, %v4907
        %v4942 = vsel %vm3807, 0, %v906
        %v4943 = vsel %vm2651, 0, %v908
        %v4944 = vsel %vm2652, 0, %v910
        %v4945 = vsel %vm2653, 0, %v912
        %v4946 = vsel %vm2654, 0, %v914
        %v4947 = vsel %vm2655, 0, %v916
        %v4948 = vsel %vm2656, 0, %v918
        %v4949 = vsel %vm2657, 0, %v920
        %v4950 = vsel %vm2658, 0, %v922
        %v4951 = vsel %vm2659, 0, %v924
        %v4952 = vsel %vm2660, 0, %v926
        %v4953 = vsel %vm2661, 0, %v928
        %v4954 = vsel %vm2662, 0, %v930
        %v4955 = vsel %vm2663, 0, %v932
        %v4956 = vsel %vm2664, 0, %v934
        %v4957 = vsel %vm2665, 0, %v956
        %v4958 = vld [vmem:[#allocation8 + $0x200] sm:$0xf]
        %v4959 = vld [vmem:[#allocation8 + $0x204] sm:$0xf]
        %v4960 = vld [vmem:[#allocation8 + $0x208] sm:$0xf]
        %v4961 = vld [vmem:[#allocation8 + $0x20c] sm:$0xf]
        %v4962 = vld [vmem:[#allocation8 + $0x210] sm:$0xf]
        %v4963 = vld [vmem:[#allocation8 + $0x214] sm:$0xf]
        %v4964 = vld [vmem:[#allocation8 + $0x218] sm:$0xf]
        %v4965 = vld [vmem:[#allocation8 + $0x21c] sm:$0xf]
        %v4966 = vld [vmem:[#allocation8 + $0x220] sm:$0xf]
        %v4967 = vld [vmem:[#allocation8 + $0x224] sm:$0xf]
        %v4968 = vld [vmem:[#allocation8 + $0x228] sm:$0xf]
        %v4969 = vld [vmem:[#allocation8 + $0x22c] sm:$0xf]
        %v4970 = vld [vmem:[#allocation8 + $0x230] sm:$0xf]
        %v4971 = vld [vmem:[#allocation8 + $0x234] sm:$0xf]
        %v4972 = vld [vmem:[#allocation8 + $0x238] sm:$0xf]
        %v4973 = vld [vmem:[#allocation8 + $0x23c] sm:$0xf]
        %v4975 = vshrl.u32 %v4942, 16
        %v4977 = vrot.slane %v4975, 4
        %v4978 = vshll.u32 %v4942, 16
        %v4980 = vrot.slane %v4978, 5
        %v4981 = vor.u32 %v4977, %v4980
        %v4983 = vshrl.u32 %v4943, 16
        %v4985 = vrot.slane %v4983, 4
        %v4986 = vshll.u32 %v4943, 16
        %v4988 = vrot.slane %v4986, 5
        %v4989 = vor.u32 %v4985, %v4988
        %v4990 = vsel %vm1519, %v4981, %v4989
        %v4992 = vshrl.u32 %v4944, 16
        %v4994 = vrot.slane %v4992, 4
        %v4995 = vshll.u32 %v4944, 16
        %v4997 = vrot.slane %v4995, 5
        %v4998 = vor.u32 %v4994, %v4997
        %v4999 = vsel %vm1519, %v4989, %v4998
        %v5001 = vshrl.u32 %v4945, 16
        %v5003 = vrot.slane %v5001, 4
        %v5004 = vshll.u32 %v4945, 16
        %v5006 = vrot.slane %v5004, 5
        %v5007 = vor.u32 %v5003, %v5006
        %v5008 = vsel %vm1519, %v4998, %v5007
        %v5010 = vshrl.u32 %v4946, 16
        %v5012 = vrot.slane %v5010, 4
        %v5013 = vshll.u32 %v4946, 16
        %v5015 = vrot.slane %v5013, 5
        %v5016 = vor.u32 %v5012, %v5015
        %v5017 = vsel %vm1519, %v5007, %v5016
        %v5019 = vshrl.u32 %v4947, 16
        %v5021 = vrot.slane %v5019, 4
        %v5022 = vshll.u32 %v4947, 16
        %v5024 = vrot.slane %v5022, 5
        %v5025 = vor.u32 %v5021, %v5024
        %v5026 = vsel %vm1519, %v5016, %v5025
        %v5028 = vshrl.u32 %v4948, 16
        %v5030 = vrot.slane %v5028, 4
        %v5031 = vshll.u32 %v4948, 16
        %v5033 = vrot.slane %v5031, 5
        %v5034 = vor.u32 %v5030, %v5033
        %v5035 = vsel %vm1519, %v5025, %v5034
        %v5037 = vshrl.u32 %v4949, 16
        %v5039 = vrot.slane %v5037, 4
        %v5040 = vshll.u32 %v4949, 16
        %v5042 = vrot.slane %v5040, 5
        %v5043 = vor.u32 %v5039, %v5042
        %v5044 = vsel %vm1519, %v5034, %v5043
        %v5046 = vshrl.u32 %v4950, 16
        %v5048 = vrot.slane %v5046, 4
        %v5049 = vshll.u32 %v4950, 16
        %v5051 = vrot.slane %v5049, 5
        %v5052 = vor.u32 %v5048, %v5051
        %v5053 = vsel %vm1519, %v5043, %v5052
        %v5055 = vshrl.u32 %v4951, 16
        %v5057 = vrot.slane %v5055, 4
        %v5058 = vshll.u32 %v4951, 16
        %v5060 = vrot.slane %v5058, 5
        %v5061 = vor.u32 %v5057, %v5060
        %v5062 = vsel %vm1519, %v5052, %v5061
        %v5064 = vshrl.u32 %v4952, 16
        %v5066 = vrot.slane %v5064, 4
        %v5067 = vshll.u32 %v4952, 16
        %v5069 = vrot.slane %v5067, 5
        %v5070 = vor.u32 %v5066, %v5069
        %v5071 = vsel %vm1519, %v5061, %v5070
        %v5073 = vshrl.u32 %v4953, 16
        %v5075 = vrot.slane %v5073, 4
        %v5076 = vshll.u32 %v4953, 16
        %v5078 = vrot.slane %v5076, 5
        %v5079 = vor.u32 %v5075, %v5078
        %v5080 = vsel %vm1519, %v5070, %v5079
        %v5082 = vshrl.u32 %v4954, 16
        %v5084 = vrot.slane %v5082, 4
        %v5085 = vshll.u32 %v4954, 16
        %v5087 = vrot.slane %v5085, 5
        %v5088 = vor.u32 %v5084, %v5087
        %v5089 = vsel %vm1519, %v5079, %v5088
        %v5091 = vshrl.u32 %v4955, 16
        %v5093 = vrot.slane %v5091, 4
        %v5094 = vshll.u32 %v4955, 16
        %v5096 = vrot.slane %v5094, 5
        %v5097 = vor.u32 %v5093, %v5096
        %v5098 = vsel %vm1519, %v5088, %v5097
        %v5100 = vshrl.u32 %v4956, 16
        %v5102 = vrot.slane %v5100, 4
        %v5103 = vshll.u32 %v4956, 16
        %v5105 = vrot.slane %v5103, 5
        %v5106 = vor.u32 %v5102, %v5105
        %v5107 = vsel %vm1519, %v5097, %v5106
        %v5109 = vshrl.u32 %v4957, 16
        %v5111 = vrot.slane %v5109, 4
        %v5112 = vshll.u32 %v4957, 16
        %v5114 = vrot.slane %v5112, 5
        %v5115 = vor.u32 %v5111, %v5114
        %v5116 = vsel %vm1519, %v5106, %v5115
        %v5117 = vsel %vm1519, %v5115, %v2701
        %v5150 = vunpack.c.l.b16 %v4958
        %v5151 = vunpack.c.l.b16 %v4959
        %v5152 = vunpack.c.l.b16 %v4960
        %v5153 = vunpack.c.l.b16 %v4961
        %v5154 = vunpack.c.l.b16 %v4962
        %v5155 = vunpack.c.l.b16 %v4963
        %v5156 = vunpack.c.l.b16 %v4964
        %v5157 = vunpack.c.l.b16 %v4965
        %v5158 = vunpack.c.l.b16 %v4966
        %v5159 = vunpack.c.l.b16 %v4967
        %v5160 = vunpack.c.l.b16 %v4968
        %v5161 = vunpack.c.l.b16 %v4969
        %v5162 = vunpack.c.l.b16 %v4970
        %v5163 = vunpack.c.l.b16 %v4971
        %v5164 = vunpack.c.l.b16 %v4972
        %v5165 = vunpack.c.l.b16 %v4973
        %v5166 = vpack.c.b16 %v5151, %v5150
        %v5167 = vpack.c.b16 %v5153, %v5152
        %v5168 = vpack.c.b16 %v5155, %v5154
        %v5169 = vpack.c.b16 %v5157, %v5156
        %v5170 = vpack.c.b16 %v5159, %v5158
        %v5171 = vpack.c.b16 %v5161, %v5160
        %v5172 = vpack.c.b16 %v5163, %v5162
        %v5173 = vpack.c.b16 %v5165, %v5164
        %5182 = vmatprep.subr.bf16.mxu0 0
        %5183 = vmatpush1.bf16.msra.mxu0 %v5173
        %5184 = vmatprep.subr.bf16.mxu0 0
        %5185 = vmatpush1.bf16.msra.mxu0 %v5172
        %5186 = vmatprep.subr.bf16.mxu0 0
        %5187 = vmatpush1.bf16.msra.mxu0 %v5171
        %5188 = vmatprep.subr.bf16.mxu0 0
        %5189 = vmatpush1.bf16.msra.mxu0 %v5170
        %5190 = vmatprep.subr.bf16.mxu0 0
        %5191 = vmatpush1.bf16.msra.mxu0 %v5169
        %5192 = vmatprep.subr.bf16.mxu0 0
        %5193 = vmatpush1.bf16.msra.mxu0 %v5168
        %5194 = vmatprep.subr.bf16.mxu0 0
        %5195 = vmatpush1.bf16.msra.mxu0 %v5167
        %5196 = vmatprep.subr.bf16.mxu0 0
        %5197 = vmatpush1.bf16.msra.mxu0 %v5166
        %5198 = vmatprep.subr.bf16.mxu0 0
        %5199 = vmatpush2.bf16.msra.mxu0 0
        %5200 = vmatprep.subr.bf16.mxu0 0
        %5201 = vmatpush2.bf16.msra.mxu0 0
        %5202 = vmatprep.subr.bf16.mxu0 0
        %5203 = vmatpush2.bf16.msra.mxu0 0
        %5204 = vmatprep.subr.bf16.mxu0 0
        %5205 = vmatpush2.bf16.msra.mxu0 0
        %5206 = vmatprep.subr.bf16.mxu0 0
        %5207 = vmatpush2.bf16.msra.mxu0 0
        %5208 = vmatprep.subr.bf16.mxu0 0
        %5209 = vmatpush2.bf16.msra.mxu0 0
        %5210 = vmatprep.subr.bf16.mxu0 0
        %5211 = vmatpush2.bf16.msra.mxu0 0
        %5212 = vmatprep.subr.bf16.mxu0 0
        %5213 = vmatpush2.bf16.msra.mxu0 0
        %5214 = vmatprep.mubr.bf16.mxu0 0
        %5215 = vmatmul.mubr.bf16.gmra.mxu0 %v4990
        %v5216 = vpop.f32.mrf.mxu0
        %v5217 = vadd.f32 0.0, %v5216
        %v5218 = vpop.f32.mrf.mxu0
        %v5219 = vpop.f32.mrf.mxu0
        %v5220 = vadd.f32 0.0, %v5219
        %v5221 = vpop.f32.mrf.mxu0
        %5222 = vmatprep.mubr.bf16.mxu0 0
        %5223 = vmatmul.mubr.bf16.gmra.mxu0 %v4999
        %v5224 = vpop.f32.mrf.mxu0
        %v5225 = vadd.f32 0.0, %v5224
        %v5226 = vpop.f32.mrf.mxu0
        %v5227 = vpop.f32.mrf.mxu0
        %v5228 = vadd.f32 0.0, %v5227
        %v5229 = vpop.f32.mrf.mxu0
        %5230 = vmatprep.mubr.bf16.mxu0 0
        %5231 = vmatmul.mubr.bf16.gmra.mxu0 %v5008
        %v5232 = vpop.f32.mrf.mxu0
        %v5233 = vadd.f32 0.0, %v5232
        %v5234 = vpop.f32.mrf.mxu0
        %v5235 = vpop.f32.mrf.mxu0
        %v5236 = vadd.f32 0.0, %v5235
        %v5237 = vpop.f32.mrf.mxu0
        %5238 = vmatprep.mubr.bf16.mxu0 0
        %5239 = vmatmul.mubr.bf16.gmra.mxu0 %v5017
        %v5240 = vpop.f32.mrf.mxu0
        %v5241 = vadd.f32 0.0, %v5240
        %v5242 = vpop.f32.mrf.mxu0
        %v5243 = vpop.f32.mrf.mxu0
        %v5244 = vadd.f32 0.0, %v5243
        %v5245 = vpop.f32.mrf.mxu0
        %5246 = vmatprep.mubr.bf16.mxu0 0
        %5247 = vmatmul.mubr.bf16.gmra.mxu0 %v5026
        %v5248 = vpop.f32.mrf.mxu0
        %v5249 = vadd.f32 0.0, %v5248
        %v5250 = vpop.f32.mrf.mxu0
        %v5251 = vpop.f32.mrf.mxu0
        %v5252 = vadd.f32 0.0, %v5251
        %v5253 = vpop.f32.mrf.mxu0
        %5254 = vmatprep.mubr.bf16.mxu0 0
        %5255 = vmatmul.mubr.bf16.gmra.mxu0 %v5035
        %v5256 = vpop.f32.mrf.mxu0
        %v5257 = vadd.f32 0.0, %v5256
        %v5258 = vpop.f32.mrf.mxu0
        %v5259 = vpop.f32.mrf.mxu0
        %v5260 = vadd.f32 0.0, %v5259
        %v5261 = vpop.f32.mrf.mxu0
        %5262 = vmatprep.mubr.bf16.mxu0 0
        %5263 = vmatmul.mubr.bf16.gmra.mxu0 %v5044
        %v5264 = vpop.f32.mrf.mxu0
        %v5265 = vadd.f32 0.0, %v5264
        %v5266 = vpop.f32.mrf.mxu0
        %v5267 = vpop.f32.mrf.mxu0
        %v5268 = vadd.f32 0.0, %v5267
        %v5269 = vpop.f32.mrf.mxu0
        %5270 = vmatprep.mubr.bf16.mxu0 0
        %5271 = vmatmul.mubr.bf16.gmra.mxu0 %v5053
        %v5272 = vpop.f32.mrf.mxu0
        %v5273 = vadd.f32 0.0, %v5272
        %v5274 = vpop.f32.mrf.mxu0
        %v5275 = vpop.f32.mrf.mxu0
        %v5276 = vadd.f32 0.0, %v5275
        %v5277 = vpop.f32.mrf.mxu0
        %5278 = vmatprep.mubr.bf16.mxu0 0
        %5279 = vmatmul.mubr.bf16.gmra.mxu0 %v5062
        %v5280 = vpop.f32.mrf.mxu0
        %v5281 = vadd.f32 0.0, %v5280
        %v5282 = vpop.f32.mrf.mxu0
        %v5283 = vpop.f32.mrf.mxu0
        %v5284 = vadd.f32 0.0, %v5283
        %v5285 = vpop.f32.mrf.mxu0
        %5286 = vmatprep.mubr.bf16.mxu0 0
        %5287 = vmatmul.mubr.bf16.gmra.mxu0 %v5071
        %v5288 = vpop.f32.mrf.mxu0
        %v5289 = vadd.f32 0.0, %v5288
        %v5290 = vpop.f32.mrf.mxu0
        %v5291 = vpop.f32.mrf.mxu0
        %v5292 = vadd.f32 0.0, %v5291
        %v5293 = vpop.f32.mrf.mxu0
        %5294 = vmatprep.mubr.bf16.mxu0 0
        %5295 = vmatmul.mubr.bf16.gmra.mxu0 %v5080
        %v5296 = vpop.f32.mrf.mxu0
        %v5297 = vadd.f32 0.0, %v5296
        %v5298 = vpop.f32.mrf.mxu0
        %v5299 = vpop.f32.mrf.mxu0
        %v5300 = vadd.f32 0.0, %v5299
        %v5301 = vpop.f32.mrf.mxu0
        %5302 = vmatprep.mubr.bf16.mxu0 0
        %5303 = vmatmul.mubr.bf16.gmra.mxu0 %v5089
        %v5304 = vpop.f32.mrf.mxu0
        %v5305 = vadd.f32 0.0, %v5304
        %v5306 = vpop.f32.mrf.mxu0
        %v5307 = vpop.f32.mrf.mxu0
        %v5308 = vadd.f32 0.0, %v5307
        %v5309 = vpop.f32.mrf.mxu0
        %5310 = vmatprep.mubr.bf16.mxu0 0
        %5311 = vmatmul.mubr.bf16.gmra.mxu0 %v5098
        %v5312 = vpop.f32.mrf.mxu0
        %v5313 = vadd.f32 0.0, %v5312
        %v5314 = vpop.f32.mrf.mxu0
        %v5315 = vpop.f32.mrf.mxu0
        %v5316 = vadd.f32 0.0, %v5315
        %v5317 = vpop.f32.mrf.mxu0
        %5318 = vmatprep.mubr.bf16.mxu0 0
        %5319 = vmatmul.mubr.bf16.gmra.mxu0 %v5107
        %v5320 = vpop.f32.mrf.mxu0
        %v5321 = vadd.f32 0.0, %v5320
        %v5322 = vpop.f32.mrf.mxu0
        %v5323 = vpop.f32.mrf.mxu0
        %v5324 = vadd.f32 0.0, %v5323
        %v5325 = vpop.f32.mrf.mxu0
        %5326 = vmatprep.mubr.bf16.mxu0 0
        %5327 = vmatmul.mubr.bf16.gmra.mxu0 %v5116
        %v5328 = vpop.f32.mrf.mxu0
        %v5329 = vadd.f32 0.0, %v5328
        %v5330 = vpop.f32.mrf.mxu0
        %v5331 = vpop.f32.mrf.mxu0
        %v5332 = vadd.f32 0.0, %v5331
        %v5333 = vpop.f32.mrf.mxu0
        %5334 = vmatprep.mubr.bf16.mxu0 0
        %5335 = vmatmul.mubr.bf16.gmra.mxu0 %v5117
        %v5336 = vpop.f32.mrf.mxu0
        %v5337 = vadd.f32 0.0, %v5336
        %v5338 = vpop.f32.mrf.mxu0
        %v5339 = vpop.f32.mrf.mxu0
        %v5340 = vadd.f32 0.0, %v5339
        %v5341 = vpop.f32.mrf.mxu0
        %5342 = vdwg.mxu0
        %v5343 = vadd.f32 %v4910, %v5217
        %v5344 = vadd.f32 %v4911, %v5220
        %v5345 = vadd.f32 %v4912, %v5225
        %v5346 = vadd.f32 %v4913, %v5228
        %v5347 = vadd.f32 %v4914, %v5233
        %v5348 = vadd.f32 %v4915, %v5236
        %v5349 = vadd.f32 %v4916, %v5241
        %v5350 = vadd.f32 %v4917, %v5244
        %v5351 = vadd.f32 %v4918, %v5249
        %v5352 = vadd.f32 %v4919, %v5252
        %v5353 = vadd.f32 %v4920, %v5257
        %v5354 = vadd.f32 %v4921, %v5260
        %v5355 = vadd.f32 %v4922, %v5265
        %v5356 = vadd.f32 %v4923, %v5268
        %v5357 = vadd.f32 %v4924, %v5273
        %v5358 = vadd.f32 %v4925, %v5276
        %v5359 = vadd.f32 %v4926, %v5281
        %v5360 = vadd.f32 %v4927, %v5284
        %v5361 = vadd.f32 %v4928, %v5289
        %v5362 = vadd.f32 %v4929, %v5292
        %v5363 = vadd.f32 %v4930, %v5297
        %v5364 = vadd.f32 %v4931, %v5300
        %v5365 = vadd.f32 %v4932, %v5305
        %v5366 = vadd.f32 %v4933, %v5308
        %v5367 = vadd.f32 %v4934, %v5313
        %v5368 = vadd.f32 %v4935, %v5316
        %v5369 = vadd.f32 %v4936, %v5321
        %v5370 = vadd.f32 %v4937, %v5324
        %v5371 = vadd.f32 %v4938, %v5329
        %v5372 = vadd.f32 %v4939, %v5332
        %v5373 = vadd.f32 %v4940, %v5337
        %v5374 = vadd.f32 %v4941, %v5340
        %v5375 = vld [vmem:[%s4] sm:$0x1]
        %v5377 = vlaneseq
        %v5378 = vshrl.u32 %v5377, 7
        %v5379 = vsub.s32 0, %v5378
        %v5380 = vrot.slane %v5375, %v5379
        %v5382 = vadd.f32 %v5343, %v5380
        %v5383 = vadd.f32 %v5344, %v5380
        %v5384 = vadd.f32 %v5345, %v5380
        %v5385 = vadd.f32 %v5346, %v5380
        %v5386 = vadd.f32 %v5347, %v5380
        %v5387 = vadd.f32 %v5348, %v5380
        %v5388 = vadd.f32 %v5349, %v5380
        %v5389 = vadd.f32 %v5350, %v5380
        %v5390 = vadd.f32 %v5351, %v5380
        %v5391 = vadd.f32 %v5352, %v5380
        %v5392 = vadd.f32 %v5353, %v5380
        %v5393 = vadd.f32 %v5354, %v5380
        %v5394 = vadd.f32 %v5355, %v5380
        %v5395 = vadd.f32 %v5356, %v5380
        %v5396 = vadd.f32 %v5357, %v5380
        %v5397 = vadd.f32 %v5358, %v5380
        %v5398 = vadd.f32 %v5359, %v5380
        %v5399 = vadd.f32 %v5360, %v5380
        %v5400 = vadd.f32 %v5361, %v5380
        %v5401 = vadd.f32 %v5362, %v5380
        %v5402 = vadd.f32 %v5363, %v5380
        %v5403 = vadd.f32 %v5364, %v5380
        %v5404 = vadd.f32 %v5365, %v5380
        %v5405 = vadd.f32 %v5366, %v5380
        %v5406 = vadd.f32 %v5367, %v5380
        %v5407 = vadd.f32 %v5368, %v5380
        %v5408 = vadd.f32 %v5369, %v5380
        %v5409 = vadd.f32 %v5370, %v5380
        %v5410 = vadd.f32 %v5371, %v5380
        %v5411 = vadd.f32 %v5372, %v5380
        %v5412 = vadd.f32 %v5373, %v5380
        %v5413 = vadd.f32 %v5374, %v5380
        %v5414 = vmax.f32 %v5382, 0.0
        %v5415 = vmax.f32 %v5383, 0.0
        %v5416 = vmax.f32 %v5384, 0.0
        %v5417 = vmax.f32 %v5385, 0.0
        %v5418 = vmax.f32 %v5386, 0.0
        %v5419 = vmax.f32 %v5387, 0.0
        %v5420 = vmax.f32 %v5388, 0.0
        %v5421 = vmax.f32 %v5389, 0.0
        %v5422 = vmax.f32 %v5390, 0.0
        %v5423 = vmax.f32 %v5391, 0.0
        %v5424 = vmax.f32 %v5392, 0.0
        %v5425 = vmax.f32 %v5393, 0.0
        %v5426 = vmax.f32 %v5394, 0.0
        %v5427 = vmax.f32 %v5395, 0.0
        %v5428 = vmax.f32 %v5396, 0.0
        %v5429 = vmax.f32 %v5397, 0.0
        %v5430 = vmax.f32 %v5398, 0.0
        %v5431 = vmax.f32 %v5399, 0.0
        %v5432 = vmax.f32 %v5400, 0.0
        %v5433 = vmax.f32 %v5401, 0.0
        %v5434 = vmax.f32 %v5402, 0.0
        %v5435 = vmax.f32 %v5403, 0.0
        %v5436 = vmax.f32 %v5404, 0.0
        %v5437 = vmax.f32 %v5405, 0.0
        %v5438 = vmax.f32 %v5406, 0.0
        %v5439 = vmax.f32 %v5407, 0.0
        %v5440 = vmax.f32 %v5408, 0.0
        %v5441 = vmax.f32 %v5409, 0.0
        %v5442 = vmax.f32 %v5410, 0.0
        %v5443 = vmax.f32 %v5411, 0.0
        %v5444 = vmax.f32 %v5412, 0.0
        %v5445 = vmax.f32 %v5413, 0.0
        %v5446 = vmin.f32 %v5382, 0.0
        %v5447 = vmin.f32 %v5383, 0.0
        %v5448 = vmin.f32 %v5384, 0.0
        %v5449 = vmin.f32 %v5385, 0.0
        %v5450 = vmin.f32 %v5386, 0.0
        %v5451 = vmin.f32 %v5387, 0.0
        %v5452 = vmin.f32 %v5388, 0.0
        %v5453 = vmin.f32 %v5389, 0.0
        %v5454 = vmin.f32 %v5390, 0.0
        %v5455 = vmin.f32 %v5391, 0.0
        %v5456 = vmin.f32 %v5392, 0.0
        %v5457 = vmin.f32 %v5393, 0.0
        %v5458 = vmin.f32 %v5394, 0.0
        %v5459 = vmin.f32 %v5395, 0.0
        %v5460 = vmin.f32 %v5396, 0.0
        %v5461 = vmin.f32 %v5397, 0.0
        %v5462 = vmin.f32 %v5398, 0.0
        %v5463 = vmin.f32 %v5399, 0.0
        %v5464 = vmin.f32 %v5400, 0.0
        %v5465 = vmin.f32 %v5401, 0.0
        %v5466 = vmin.f32 %v5402, 0.0
        %v5467 = vmin.f32 %v5403, 0.0
        %v5468 = vmin.f32 %v5404, 0.0
        %v5469 = vmin.f32 %v5405, 0.0
        %v5470 = vmin.f32 %v5406, 0.0
        %v5471 = vmin.f32 %v5407, 0.0
        %v5472 = vmin.f32 %v5408, 0.0
        %v5473 = vmin.f32 %v5409, 0.0
        %v5474 = vmin.f32 %v5410, 0.0
        %v5475 = vmin.f32 %v5411, 0.0
        %v5476 = vmin.f32 %v5412, 0.0
        %v5477 = vmin.f32 %v5413, 0.0
        %v5478 = vmul.f32 %v805, %v5446
        %v5479 = vmul.f32 %v805, %v5447
        %v5480 = vmul.f32 %v805, %v5448
        %v5481 = vmul.f32 %v805, %v5449
        %v5482 = vmul.f32 %v805, %v5450
        %v5483 = vmul.f32 %v805, %v5451
        %v5484 = vmul.f32 %v805, %v5452
        %v5485 = vmul.f32 %v805, %v5453
        %v5486 = vmul.f32 %v805, %v5454
        %v5487 = vmul.f32 %v805, %v5455
        %v5488 = vmul.f32 %v805, %v5456
        %v5489 = vmul.f32 %v805, %v5457
        %v5490 = vmul.f32 %v805, %v5458
        %v5491 = vmul.f32 %v805, %v5459
        %v5492 = vmul.f32 %v805, %v5460
        %v5493 = vmul.f32 %v805, %v5461
        %v5494 = vmul.f32 %v805, %v5462
        %v5495 = vmul.f32 %v805, %v5463
        %v5496 = vmul.f32 %v805, %v5464
        %v5497 = vmul.f32 %v805, %v5465
        %v5498 = vmul.f32 %v805, %v5466
        %v5499 = vmul.f32 %v805, %v5467
        %v5500 = vmul.f32 %v805, %v5468
        %v5501 = vmul.f32 %v805, %v5469
        %v5502 = vmul.f32 %v805, %v5470
        %v5503 = vmul.f32 %v805, %v5471
        %v5504 = vmul.f32 %v805, %v5472
        %v5505 = vmul.f32 %v805, %v5473
        %v5506 = vmul.f32 %v805, %v5474
        %v5507 = vmul.f32 %v805, %v5475
        %v5508 = vmul.f32 %v805, %v5476
        %v5509 = vmul.f32 %v805, %v5477
        %v5510 = vadd.f32 %v5414, %v5478
        %v5511 = vadd.f32 %v5415, %v5479
        %v5512 = vadd.f32 %v5416, %v5480
        %v5513 = vadd.f32 %v5417, %v5481
        %v5514 = vadd.f32 %v5418, %v5482
        %v5515 = vadd.f32 %v5419, %v5483
        %v5516 = vadd.f32 %v5420, %v5484
        %v5517 = vadd.f32 %v5421, %v5485
        %v5518 = vadd.f32 %v5422, %v5486
        %v5519 = vadd.f32 %v5423, %v5487
        %v5520 = vadd.f32 %v5424, %v5488
        %v5521 = vadd.f32 %v5425, %v5489
        %v5522 = vadd.f32 %v5426, %v5490
        %v5523 = vadd.f32 %v5427, %v5491
        %v5524 = vadd.f32 %v5428, %v5492
        %v5525 = vadd.f32 %v5429, %v5493
        %v5526 = vadd.f32 %v5430, %v5494
        %v5527 = vadd.f32 %v5431, %v5495
        %v5528 = vadd.f32 %v5432, %v5496
        %v5529 = vadd.f32 %v5433, %v5497
        %v5530 = vadd.f32 %v5434, %v5498
        %v5531 = vadd.f32 %v5435, %v5499
        %v5532 = vadd.f32 %v5436, %v5500
        %v5533 = vadd.f32 %v5437, %v5501
        %v5534 = vadd.f32 %v5438, %v5502
        %v5535 = vadd.f32 %v5439, %v5503
        %v5536 = vadd.f32 %v5440, %v5504
        %v5537 = vadd.f32 %v5441, %v5505
        %v5538 = vadd.f32 %v5442, %v5506
        %v5539 = vadd.f32 %v5443, %v5507
        %v5540 = vadd.f32 %v5444, %v5508
        %v5541 = vadd.f32 %v5445, %v5509
        %v5542 = vpack.c.bf16 %v5511, %v5510
        %v5543 = vpack.c.bf16 %v5513, %v5512
        %v5544 = vpack.c.bf16 %v5515, %v5514
        %v5545 = vpack.c.bf16 %v5517, %v5516
        %v5546 = vpack.c.bf16 %v5519, %v5518
        %v5547 = vpack.c.bf16 %v5521, %v5520
        %v5548 = vpack.c.bf16 %v5523, %v5522
        %v5549 = vpack.c.bf16 %v5525, %v5524
        %v5550 = vpack.c.bf16 %v5527, %v5526
        %v5551 = vpack.c.bf16 %v5529, %v5528
        %v5552 = vpack.c.bf16 %v5531, %v5530
        %v5553 = vpack.c.bf16 %v5533, %v5532
        %v5554 = vpack.c.bf16 %v5535, %v5534
        %v5555 = vpack.c.bf16 %v5537, %v5536
        %v5556 = vpack.c.bf16 %v5539, %v5538
        %v5557 = vpack.c.bf16 %v5541, %v5540
        %v5558 = vld [vmem:[#allocation9] sm:$0xf]
        %v5559 = vld [vmem:[#allocation9 + $0x4] sm:$0xf]
        %v5560 = vld [vmem:[#allocation9 + $0x8] sm:$0xf]
        %v5561 = vld [vmem:[#allocation9 + $0xc] sm:$0xf]
        %v5562 = vld [vmem:[#allocation9 + $0x10] sm:$0xf]
        %v5563 = vld [vmem:[#allocation9 + $0x14] sm:$0xf]
        %v5564 = vld [vmem:[#allocation9 + $0x18] sm:$0xf]
        %v5565 = vld [vmem:[#allocation9 + $0x1c] sm:$0xf]
        %v5566 = vld [vmem:[#allocation9 + $0x20] sm:$0xf]
        %v5567 = vld [vmem:[#allocation9 + $0x24] sm:$0xf]
        %v5568 = vld [vmem:[#allocation9 + $0x28] sm:$0xf]
        %v5569 = vld [vmem:[#allocation9 + $0x2c] sm:$0xf]
        %v5570 = vld [vmem:[#allocation9 + $0x30] sm:$0xf]
        %v5571 = vld [vmem:[#allocation9 + $0x34] sm:$0xf]
        %v5572 = vld [vmem:[#allocation9 + $0x38] sm:$0xf]
        %v5573 = vld [vmem:[#allocation9 + $0x3c] sm:$0xf]
        %v5574 = vld [vmem:[%s6] sm:$0x1]
        %v5576 = vlaneseq
        %v5577 = vshrl.u32 %v5576, 7
        %v5578 = vsub.s32 0, %v5577
        %v5579 = vrot.slane %v5574, %v5578
        %v5597 = vunpack.c.l.b16 %v5558
        %v5598 = vunpack.c.l.b16 %v5559
        %v5599 = vunpack.c.l.b16 %v5560
        %v5600 = vunpack.c.l.b16 %v5561
        %v5601 = vunpack.c.l.b16 %v5562
        %v5602 = vunpack.c.l.b16 %v5563
        %v5603 = vunpack.c.l.b16 %v5564
        %v5604 = vunpack.c.l.b16 %v5565
        %v5605 = vunpack.c.l.b16 %v5566
        %v5606 = vunpack.c.l.b16 %v5567
        %v5607 = vunpack.c.l.b16 %v5568
        %v5608 = vunpack.c.l.b16 %v5569
        %v5609 = vunpack.c.l.b16 %v5570
        %v5610 = vunpack.c.l.b16 %v5571
        %v5611 = vunpack.c.l.b16 %v5572
        %v5612 = vunpack.c.l.b16 %v5573
        %v5613 = vpack.c.b16 %v5598, %v5597
        %v5614 = vpack.c.b16 %v5600, %v5599
        %v5615 = vpack.c.b16 %v5602, %v5601
        %v5616 = vpack.c.b16 %v5604, %v5603
        %v5617 = vpack.c.b16 %v5606, %v5605
        %v5618 = vpack.c.b16 %v5608, %v5607
        %v5619 = vpack.c.b16 %v5610, %v5609
        %v5620 = vpack.c.b16 %v5612, %v5611
        %5629 = vmatprep.subr.bf16.mxu0 0
        %5630 = vmatpush1.bf16.msra.mxu0 %v5620
        %5631 = vmatprep.subr.bf16.mxu0 0
        %5632 = vmatpush1.bf16.msra.mxu0 %v5619
        %5633 = vmatprep.subr.bf16.mxu0 0
        %5634 = vmatpush1.bf16.msra.mxu0 %v5618
        %5635 = vmatprep.subr.bf16.mxu0 0
        %5636 = vmatpush1.bf16.msra.mxu0 %v5617
        %5637 = vmatprep.subr.bf16.mxu0 0
        %5638 = vmatpush1.bf16.msra.mxu0 %v5616
        %5639 = vmatprep.subr.bf16.mxu0 0
        %5640 = vmatpush1.bf16.msra.mxu0 %v5615
        %5641 = vmatprep.subr.bf16.mxu0 0
        %5642 = vmatpush1.bf16.msra.mxu0 %v5614
        %5643 = vmatprep.subr.bf16.mxu0 0
        %5644 = vmatpush1.bf16.msra.mxu0 %v5613
        %5645 = vmatprep.subr.bf16.mxu0 0
        %5646 = vmatpush2.bf16.msra.mxu0 0
        %5647 = vmatprep.subr.bf16.mxu0 0
        %5648 = vmatpush2.bf16.msra.mxu0 0
        %5649 = vmatprep.subr.bf16.mxu0 0
        %5650 = vmatpush2.bf16.msra.mxu0 0
        %5651 = vmatprep.subr.bf16.mxu0 0
        %5652 = vmatpush2.bf16.msra.mxu0 0
        %5653 = vmatprep.subr.bf16.mxu0 0
        %5654 = vmatpush2.bf16.msra.mxu0 0
        %5655 = vmatprep.subr.bf16.mxu0 0
        %5656 = vmatpush2.bf16.msra.mxu0 0
        %5657 = vmatprep.subr.bf16.mxu0 0
        %5658 = vmatpush2.bf16.msra.mxu0 0
        %5659 = vmatprep.subr.bf16.mxu0 0
        %5660 = vmatpush2.bf16.msra.mxu0 0
        %5661 = vmatprep.mubr.bf16.mxu0 0
        %5662 = vmatmul.mubr.bf16.gmra.mxu0 %v5542
        %v5663 = vpop.f32.mrf.mxu0
        %v5664 = vadd.f32 %v5579, %v5663
        %v5665 = vpop.f32.mrf.mxu0
        %v5666 = vpop.f32.mrf.mxu0
        %v5667 = vadd.f32 %v5579, %v5666
        %v5668 = vpop.f32.mrf.mxu0
        %5669 = vmatprep.mubr.bf16.mxu0 0
        %5670 = vmatmul.mubr.bf16.gmra.mxu0 %v5543
        %v5671 = vpop.f32.mrf.mxu0
        %v5672 = vadd.f32 %v5579, %v5671
        %v5673 = vpop.f32.mrf.mxu0
        %v5674 = vpop.f32.mrf.mxu0
        %v5675 = vadd.f32 %v5579, %v5674
        %v5676 = vpop.f32.mrf.mxu0
        %5677 = vmatprep.mubr.bf16.mxu0 0
        %5678 = vmatmul.mubr.bf16.gmra.mxu0 %v5544
        %v5679 = vpop.f32.mrf.mxu0
        %v5680 = vadd.f32 %v5579, %v5679
        %v5681 = vpop.f32.mrf.mxu0
        %v5682 = vpop.f32.mrf.mxu0
        %v5683 = vadd.f32 %v5579, %v5682
        %v5684 = vpop.f32.mrf.mxu0
        %5685 = vmatprep.mubr.bf16.mxu0 0
        %5686 = vmatmul.mubr.bf16.gmra.mxu0 %v5545
        %v5687 = vpop.f32.mrf.mxu0
        %v5688 = vadd.f32 %v5579, %v5687
        %v5689 = vpop.f32.mrf.mxu0
        %v5690 = vpop.f32.mrf.mxu0
        %v5691 = vadd.f32 %v5579, %v5690
        %v5692 = vpop.f32.mrf.mxu0
        %5693 = vmatprep.mubr.bf16.mxu0 0
        %5694 = vmatmul.mubr.bf16.gmra.mxu0 %v5546
        %v5695 = vpop.f32.mrf.mxu0
        %v5696 = vadd.f32 %v5579, %v5695
        %v5697 = vpop.f32.mrf.mxu0
        %v5698 = vpop.f32.mrf.mxu0
        %v5699 = vadd.f32 %v5579, %v5698
        %v5700 = vpop.f32.mrf.mxu0
        %5701 = vmatprep.mubr.bf16.mxu0 0
        %5702 = vmatmul.mubr.bf16.gmra.mxu0 %v5547
        %v5703 = vpop.f32.mrf.mxu0
        %v5704 = vadd.f32 %v5579, %v5703
        %v5705 = vpop.f32.mrf.mxu0
        %v5706 = vpop.f32.mrf.mxu0
        %v5707 = vadd.f32 %v5579, %v5706
        %v5708 = vpop.f32.mrf.mxu0
        %5709 = vmatprep.mubr.bf16.mxu0 0
        %5710 = vmatmul.mubr.bf16.gmra.mxu0 %v5548
        %v5711 = vpop.f32.mrf.mxu0
        %v5712 = vadd.f32 %v5579, %v5711
        %v5713 = vpop.f32.mrf.mxu0
        %v5714 = vpop.f32.mrf.mxu0
        %v5715 = vadd.f32 %v5579, %v5714
        %v5716 = vpop.f32.mrf.mxu0
        %5717 = vmatprep.mubr.bf16.mxu0 0
        %5718 = vmatmul.mubr.bf16.gmra.mxu0 %v5549
        %v5719 = vpop.f32.mrf.mxu0
        %v5720 = vadd.f32 %v5579, %v5719
        %v5721 = vpop.f32.mrf.mxu0
        %v5722 = vpop.f32.mrf.mxu0
        %v5723 = vadd.f32 %v5579, %v5722
        %v5724 = vpop.f32.mrf.mxu0
        %5725 = vmatprep.mubr.bf16.mxu0 0
        %5726 = vmatmul.mubr.bf16.gmra.mxu0 %v5550
        %v5727 = vpop.f32.mrf.mxu0
        %v5728 = vadd.f32 %v5579, %v5727
        %v5729 = vpop.f32.mrf.mxu0
        %v5730 = vpop.f32.mrf.mxu0
        %v5731 = vadd.f32 %v5579, %v5730
        %v5732 = vpop.f32.mrf.mxu0
        %5733 = vmatprep.mubr.bf16.mxu0 0
        %5734 = vmatmul.mubr.bf16.gmra.mxu0 %v5551
        %v5735 = vpop.f32.mrf.mxu0
        %v5736 = vadd.f32 %v5579, %v5735
        %v5737 = vpop.f32.mrf.mxu0
        %v5738 = vpop.f32.mrf.mxu0
        %v5739 = vadd.f32 %v5579, %v5738
        %v5740 = vpop.f32.mrf.mxu0
        %5741 = vmatprep.mubr.bf16.mxu0 0
        %5742 = vmatmul.mubr.bf16.gmra.mxu0 %v5552
        %v5743 = vpop.f32.mrf.mxu0
        %v5744 = vadd.f32 %v5579, %v5743
        %v5745 = vpop.f32.mrf.mxu0
        %v5746 = vpop.f32.mrf.mxu0
        %v5747 = vadd.f32 %v5579, %v5746
        %v5748 = vpop.f32.mrf.mxu0
        %5749 = vmatprep.mubr.bf16.mxu0 0
        %5750 = vmatmul.mubr.bf16.gmra.mxu0 %v5553
        %v5751 = vpop.f32.mrf.mxu0
        %v5752 = vadd.f32 %v5579, %v5751
        %v5753 = vpop.f32.mrf.mxu0
        %v5754 = vpop.f32.mrf.mxu0
        %v5755 = vadd.f32 %v5579, %v5754
        %v5756 = vpop.f32.mrf.mxu0
        %5757 = vmatprep.mubr.bf16.mxu0 0
        %5758 = vmatmul.mubr.bf16.gmra.mxu0 %v5554
        %v5759 = vpop.f32.mrf.mxu0
        %v5760 = vadd.f32 %v5579, %v5759
        %v5761 = vpop.f32.mrf.mxu0
        %v5762 = vpop.f32.mrf.mxu0
        %v5763 = vadd.f32 %v5579, %v5762
        %v5764 = vpop.f32.mrf.mxu0
        %5765 = vmatprep.mubr.bf16.mxu0 0
        %5766 = vmatmul.mubr.bf16.gmra.mxu0 %v5555
        %v5767 = vpop.f32.mrf.mxu0
        %v5768 = vadd.f32 %v5579, %v5767
        %v5769 = vpop.f32.mrf.mxu0
        %v5770 = vpop.f32.mrf.mxu0
        %v5771 = vadd.f32 %v5579, %v5770
        %v5772 = vpop.f32.mrf.mxu0
        %5773 = vmatprep.mubr.bf16.mxu0 0
        %5774 = vmatmul.mubr.bf16.gmra.mxu0 %v5556
        %v5775 = vpop.f32.mrf.mxu0
        %v5776 = vadd.f32 %v5579, %v5775
        %v5777 = vpop.f32.mrf.mxu0
        %v5778 = vpop.f32.mrf.mxu0
        %v5779 = vadd.f32 %v5579, %v5778
        %v5780 = vpop.f32.mrf.mxu0
        %5781 = vmatprep.mubr.bf16.mxu0 0
        %5782 = vmatmul.mubr.bf16.gmra.mxu0 %v5557
        %v5783 = vpop.f32.mrf.mxu0
        %v5784 = vadd.f32 %v5579, %v5783
        %v5785 = vpop.f32.mrf.mxu0
        %v5786 = vpop.f32.mrf.mxu0
        %v5787 = vadd.f32 %v5579, %v5786
        %v5788 = vpop.f32.mrf.mxu0
        %5789 = vdwg.mxu0
        %v5790 = vpack.c.bf16 %v5667, %v5664
        %v5791 = vpack.c.bf16 %v5675, %v5672
        %v5792 = vpack.c.bf16 %v5683, %v5680
        %v5793 = vpack.c.bf16 %v5691, %v5688
        %v5794 = vpack.c.bf16 %v5699, %v5696
        %v5795 = vpack.c.bf16 %v5707, %v5704
        %v5796 = vpack.c.bf16 %v5715, %v5712
        %v5797 = vpack.c.bf16 %v5723, %v5720
        %v5798 = vpack.c.bf16 %v5731, %v5728
        %v5799 = vpack.c.bf16 %v5739, %v5736
        %v5800 = vpack.c.bf16 %v5747, %v5744
        %v5801 = vpack.c.bf16 %v5755, %v5752
        %v5802 = vpack.c.bf16 %v5763, %v5760
        %v5803 = vpack.c.bf16 %v5771, %v5768
        %v5804 = vpack.c.bf16 %v5779, %v5776
        %v5805 = vpack.c.bf16 %v5787, %v5784
        %v5822 = vunpack.c.l.b16 %v5790
        %v5823 = vunpack.c.h.b16 %v5790
        %v5824 = vunpack.c.l.b16 %v5791
        %v5825 = vunpack.c.h.b16 %v5791
        %v5826 = vunpack.c.l.b16 %v5792
        %v5827 = vunpack.c.h.b16 %v5792
        %v5828 = vunpack.c.l.b16 %v5793
        %v5829 = vunpack.c.h.b16 %v5793
        %v5830 = vunpack.c.l.b16 %v5794
        %v5831 = vunpack.c.h.b16 %v5794
        %v5832 = vunpack.c.l.b16 %v5795
        %v5833 = vunpack.c.h.b16 %v5795
        %v5834 = vunpack.c.l.b16 %v5796
        %v5835 = vunpack.c.h.b16 %v5796
        %v5836 = vunpack.c.l.b16 %v5797
        %v5837 = vunpack.c.h.b16 %v5797
        %v5838 = vunpack.c.l.b16 %v5798
        %v5839 = vunpack.c.h.b16 %v5798
        %v5840 = vunpack.c.l.b16 %v5799
        %v5841 = vunpack.c.h.b16 %v5799
        %v5842 = vunpack.c.l.b16 %v5800
        %v5843 = vunpack.c.h.b16 %v5800
        %v5844 = vunpack.c.l.b16 %v5801
        %v5845 = vunpack.c.h.b16 %v5801
        %v5846 = vunpack.c.l.b16 %v5802
        %v5847 = vunpack.c.h.b16 %v5802
        %v5848 = vunpack.c.l.b16 %v5803
        %v5849 = vunpack.c.h.b16 %v5803
        %v5850 = vunpack.c.l.b16 %v5804
        %v5851 = vunpack.c.h.b16 %v5804
        %v5852 = vunpack.c.l.b16 %v5805
        %v5853 = vunpack.c.h.b16 %v5805
        %v5854 = vpack.c.b16 %v5822, %v5822
        %v5855 = vpack.c.b16 %v5823, %v5823
        %v5856 = vpack.c.b16 %v5824, %v5824
        %v5857 = vpack.c.b16 %v5825, %v5825
        %v5858 = vpack.c.b16 %v5826, %v5826
        %v5859 = vpack.c.b16 %v5827, %v5827
        %v5860 = vpack.c.b16 %v5828, %v5828
        %v5861 = vpack.c.b16 %v5829, %v5829
        %v5862 = vpack.c.b16 %v5830, %v5830
        %v5863 = vpack.c.b16 %v5831, %v5831
        %v5864 = vpack.c.b16 %v5832, %v5832
        %v5865 = vpack.c.b16 %v5833, %v5833
        %v5866 = vpack.c.b16 %v5834, %v5834
        %v5867 = vpack.c.b16 %v5835, %v5835
        %v5868 = vpack.c.b16 %v5836, %v5836
        %v5869 = vpack.c.b16 %v5837, %v5837
        %v5870 = vpack.c.b16 %v5838, %v5838
        %v5871 = vpack.c.b16 %v5839, %v5839
        %v5872 = vpack.c.b16 %v5840, %v5840
        %v5873 = vpack.c.b16 %v5841, %v5841
        %v5874 = vpack.c.b16 %v5842, %v5842
        %v5875 = vpack.c.b16 %v5843, %v5843
        %v5876 = vpack.c.b16 %v5844, %v5844
        %v5877 = vpack.c.b16 %v5845, %v5845
        %v5878 = vpack.c.b16 %v5846, %v5846
        %v5879 = vpack.c.b16 %v5847, %v5847
        %v5880 = vpack.c.b16 %v5848, %v5848
        %v5881 = vpack.c.b16 %v5849, %v5849
        %v5882 = vpack.c.b16 %v5850, %v5850
        %v5883 = vpack.c.b16 %v5851, %v5851
        %v5884 = vpack.c.b16 %v5852, %v5852
        %v5885 = vpack.c.b16 %v5853, %v5853
        %5918 = vst [vmem:[%s369] sm:$0xf] %v5854
        %5919 = vst [vmem:[%s369 + $0x4] sm:$0xf] %v5855
        %5920 = vst [vmem:[%s369 + $0x8] sm:$0xf] %v5856
        %5921 = vst [vmem:[%s369 + $0xc] sm:$0xf] %v5857
        %5922 = vst [vmem:[%s369 + $0x10] sm:$0xf] %v5858
        %5923 = vst [vmem:[%s369 + $0x14] sm:$0xf] %v5859
        %5924 = vst [vmem:[%s369 + $0x18] sm:$0xf] %v5860
        %5925 = vst [vmem:[%s369 + $0x1c] sm:$0xf] %v5861
        %5926 = vst [vmem:[%s369 + $0x20] sm:$0xf] %v5862
        %5927 = vst [vmem:[%s369 + $0x24] sm:$0xf] %v5863
        %5928 = vst [vmem:[%s369 + $0x28] sm:$0xf] %v5864
        %5929 = vst [vmem:[%s369 + $0x2c] sm:$0xf] %v5865
        %5930 = vst [vmem:[%s369 + $0x30] sm:$0xf] %v5866
        %5931 = vst [vmem:[%s369 + $0x34] sm:$0xf] %v5867
        %5932 = vst [vmem:[%s369 + $0x38] sm:$0xf] %v5868
        %5933 = vst [vmem:[%s369 + $0x3c] sm:$0xf] %v5869
        %5934 = vst [vmem:[%s369 + $0x40] sm:$0xf] %v5870
        %5935 = vst [vmem:[%s369 + $0x44] sm:$0xf] %v5871
        %5936 = vst [vmem:[%s369 + $0x48] sm:$0xf] %v5872
        %5937 = vst [vmem:[%s369 + $0x4c] sm:$0xf] %v5873
        %5938 = vst [vmem:[%s369 + $0x50] sm:$0xf] %v5874
        %5939 = vst [vmem:[%s369 + $0x54] sm:$0xf] %v5875
        %5940 = vst [vmem:[%s369 + $0x58] sm:$0xf] %v5876
        %5941 = vst [vmem:[%s369 + $0x5c] sm:$0xf] %v5877
        %5942 = vst [vmem:[%s369 + $0x60] sm:$0xf] %v5878
        %5943 = vst [vmem:[%s369 + $0x64] sm:$0xf] %v5879
        %5944 = vst [vmem:[%s369 + $0x68] sm:$0xf] %v5880
        %5945 = vst [vmem:[%s369 + $0x6c] sm:$0xf] %v5881
        %5946 = vst [vmem:[%s369 + $0x70] sm:$0xf] %v5882
        %5947 = vst [vmem:[%s369 + $0x74] sm:$0xf] %v5883
        %5948 = vst [vmem:[%s369 + $0x78] sm:$0xf] %v5884
        %5949 = vst [vmem:[%s369 + $0x7c] sm:$0xf] %v5885
        %s5950 = sand.u32 %s210, 1
        %s5951 = scalar_lea.sflag [#allocation5], %s5950
        %s5952 = sand.u32 %s210, 1
        %s5953 = smul.addr %s5952, 128
        %s5954 = scalar_lea.vmem [#allocation11], %s5953
        // Predicated region
        $region69: #{tpu_custom_call.1} parent=51 // pred_check
          %p5955 = pneg %p220
        $region70: #{tpu_custom_call.1} parent=51 // pred_check_branch
          %5957 = sbr.rel (%p5955) target = $region72
        $region71: #{tpu_custom_call.1} parent=51 // pred_region
          %s5959 = ssub.s32 2048, 2048
          %5960 = vsyncadd %s5951, %s5959
          %s5961 = smul.addr %s29, 32
          %s5962 = smul.addr %s5961, 64
          %s5963 = scalar_lea.hbm %s8, %s5962
          %s5964 = sshll.u32 %s5954, 4
          %s5965 = int_to_ptr.vmem [resolvable:$true] %s5964
          %5970 = dma.vmem_to_hbm [thread:$0]  %s5965, 2048, %s5963, %s5951, 64, 64, 4
        $region72: #{tpu_custom_call.1} parent=51 // pred_fallthru
          _
      $region52: #{tpu_custom_call.1} parent=5 // pred_fallthru
        _
      %p5971 = scmp.le.s32.totalorder 2, %s24
      // Predicated region
      $region73: #{tpu_custom_call.1} parent=5 // pred_check
        %p5972 = pneg %p5971
      $region74: #{tpu_custom_call.1} parent=5 // pred_check_branch
        %5974 = sbr.rel (%p5972) target = $region76
      $region75: #{tpu_custom_call.1} parent=5 // pred_region
        %s5975 = ssub.s32 %s24, 2
        // Predicated region
        $region77: #{tpu_custom_call.1} parent=75 // pred_check
          %p5976 = pneg %p226
        $region78: #{tpu_custom_call.1} parent=75 // pred_check_branch
          %5978 = sbr.rel (%p5976) target = $region80
        $region79: #{tpu_custom_call.1} parent=75 // pred_region
          %s5979 = sand.u32 %s211, 1
          %s5980 = scalar_lea.sflag [#allocation5], %s5979
          %s5981 = sand.u32 %s211, 1
          %s5982 = smul.addr %s5981, 128
          %s5983 = scalar_lea.vmem [#allocation11], %s5982
          %5984 = dma.done %s5980, 2048
        $region80: #{tpu_custom_call.1} parent=75 // pred_fallthru
          _
      $region76: #{tpu_custom_call.1} parent=5 // pred_fallthru
        _
    $region6: #{tpu_custom_call.1} parent=1 // loop_footer
      %s28 = sadd.s32 1, %s24
    $region7: #{tpu_custom_call.1} parent=1 // loop_footer_branch
      %23 = sbr.rel target = $region3
    $region8: #{tpu_custom_call.1} parent=1 // loop_exit
      _
    %5985 = vsyncpa [#allocation4], 1
    %s5986 = scalar_lea.sflag [#allocation4], 1
    %5987 = vsyncpa %s5986, 1
    %5988 = vsyncpa [#allocation7], 1
    %5989 = vsyncpa [#allocation10], 1
    %5990 = vsyncpa [#allocation5], 1
    %s5991 = scalar_lea.sflag [#allocation5], 1
    %5992 = vsyncpa %s5991, 1

</llo_original>
